<compile_context>
chip_gen: v7x
topology: tpu7x:2x2x1
jax: 0.10.0
libtpu: 0.0.40
codegen_flags: <defaults>
</compile_context>

<pallas_src>
import math
import functools

import jax
import jax.numpy as jnp
from jax import lax
from jax.experimental import pallas as pl
from jax.experimental.pallas import tpu as pltpu

# ---- module hyper-params (from __init__) -----------------------------------
KSIZE = 4
DIM = 256                      # hard-coded `dim` in the module
NHEAD = 2                      # tr_r_enc_head
HEAD_DIM = DIM // NHEAD        # 128 -> one lane tile per head
DIM_FF = DIM * 2               # dim * dim_forward
N_LAYERS = 9                   # tr_r_enc_layers
INPUT_NC = 3
OUTPUT_NC = 3
LN_EPS = 1e-5

MM_DT = jnp.bfloat16           # matmul operand dtype (f32 accumulation)


# ---------------------------------------------------------------------------
# In-kernel math helpers
# ---------------------------------------------------------------------------
def _gelu_tanh(x):
    # tanh-based GELU: tanh lowers to the EUP slot, freeing VALU vs. an erf
    # polynomial.  ~1e-3-level deviation from PyTorch's exact erf GELU.
    c = 0.7978845608028654     # sqrt(2/pi)
    return 0.5 * x * (1.0 + jnp.tanh(c * (x + 0.044715 * x * x * x)))


def _layernorm(x, g, b):
    mu = jnp.mean(x, axis=-1, keepdims=True)
    xc = x - mu
    var = jnp.mean(xc * xc, axis=-1, keepdims=True)
    return xc * lax.rsqrt(var + LN_EPS) * g + b


# ---------------------------------------------------------------------------
# Fused kernel: patch embedding + 9 post-norm encoder layers + decoder GEMM.
# Grid = (row_blocks,).  All layer weights are VMEM-resident; the activation is
# the fori_loop carry (never leaves VMEM between layers).
# ---------------------------------------------------------------------------
def _fused_vit_kernel(patch_ref, emb_w_ref, emb_b_ref,
                      wqkv_ref, bqkv_ref, wo_ref, bo_ref,
                      g1_ref, be1_ref, w1_ref, b1_ref,
                      w2_ref, b2_ref, g2_ref, be2_ref,
                      dec_w_ref, dec_b_ref,
                      o_ref, *, b_blk, seq_len):
    rows = b_blk * seq_len
    scale = 1.0 / math.sqrt(HEAD_DIM)

    # ---- patch_to_embedding Linear(patch_dim -> dim); K zero-padded to 128 --
    x = (jnp.dot(patch_ref[...].astype(MM_DT), emb_w_ref[...],
                 preferred_element_type=jnp.float32) + emb_b_ref[...])   # (rows, D) f32

    # ---- 9 TransformerEncoderLayers (post-norm, eval mode) ------------------
    def layer_body(l, x):
        # packed QKV projection
        qkv = (jnp.dot(x.astype(MM_DT), wqkv_ref[l],
                       preferred_element_type=jnp.float32)
               + bqkv_ref[l])                                            # (rows, 3D)
        wo_l = wo_ref[l]                                                 # (D, D) bf16

        # multi-head self-attention; output projection folded per head
        attn = None
        for h in range(NHEAD):                                           # static unroll
            lo = h * HEAD_DIM                                            # lane-aligned
            qh = qkv[:, lo:lo + HEAD_DIM].reshape(b_blk, seq_len, HEAD_DIM)
            kh = qkv[:, DIM + lo:DIM + lo + HEAD_DIM].reshape(b_blk, seq_len, HEAD_DIM)
            vh = qkv[:, 2 * DIM + lo:2 * DIM + lo + HEAD_DIM].reshape(b_blk, seq_len, HEAD_DIM)

            # TODO(synk): full (b_blk, L, L) scores in VMEM -- add KV-block
            # (flash-style) tiling before using large images (L in the 1000s).
            s = jnp.einsum('bqd,bkd->bqk', qh.astype(MM_DT), kh.astype(MM_DT),
                           preferred_element_type=jnp.float32) * scale
            s = s - jnp.max(s, axis=-1, keepdims=True)
            p_ = jnp.exp(s)
            p_ = p_ * pl.reciprocal(jnp.sum(p_, axis=-1, keepdims=True), approx=True)
            oh = jnp.einsum('bqk,bkd->bqd', p_.astype(MM_DT), vh.astype(MM_DT),
                            preferred_element_type=jnp.float32)

            contrib = jnp.dot(oh.reshape(rows, HEAD_DIM).astype(MM_DT),
                              wo_l[lo:lo + HEAD_DIM, :],
                              preferred_element_type=jnp.float32)
            attn = contrib if attn is None else attn + contrib
        attn = attn + bo_ref[l]

        # residual + norm1 (dropout = identity in eval mode)
        x1 = _layernorm(x + attn, g1_ref[l], be1_ref[l])

        # feed-forward: Linear -> GELU -> Linear
        h1 = (jnp.dot(x1.astype(MM_DT), w1_ref[l],
                      preferred_element_type=jnp.float32) + b1_ref[l])
        h1 = _gelu_tanh(h1)
        h2 = (jnp.dot(h1.astype(MM_DT), w2_ref[l],
                      preferred_element_type=jnp.float32) + b2_ref[l])

        # residual + norm2
        return _layernorm(x1 + h2, g2_ref[l], be2_ref[l])

    x = lax.fori_loop(0, N_LAYERS, layer_body, x)

    # ---- ConvTranspose2d as per-patch GEMM; columns zero-padded to 128 ------
    o_ref[...] = (jnp.dot(x.astype(MM_DT), dec_w_ref[...],
                          preferred_element_type=jnp.float32)
                  + dec_b_ref[...]).astype(o_ref.dtype)


_STACKED = ("wqkv", "bqkv", "wo", "bo", "g1", "be1",
            "w1", "b1", "w2", "b2", "g2", "be2")


def _choose_b_blk(B, L, target_rows=512):
    """Largest divisor of B with b_blk*L <= target_rows while leaving >= 2 row
    blocks when B >= 2 (so both v7x TensorCores get work)."""
    min_blocks = 2 if B >= 2 else 1
    candidates = [d for d in range(1, B + 1)
                  if B % d == 0 and B // d >= min_blocks]
    if not candidates:
        candidates = [B]
    fitting = [d for d in candidates if d * L <= max(target_rows, L)]
    return max(fitting) if fitting else min(candidates)


def _fused_transformer(patches, params, *, B, L):
    rows_total = B * L
    patch_pad = patches.shape[1]
    dec_pad = params["dec_w"].shape[1]

    b_blk = _choose_b_blk(B, L)
    blk_rows = b_blk * L
    n_row_blocks = B // b_blk
    assert blk_rows % 8 == 0, "row block must be a multiple of 8 sublanes"

    kernel = functools.partial(_fused_vit_kernel, b_blk=b_blk, seq_len=L)

    def const2(shape):                       # full 2-D array, fetched once
        return pl.BlockSpec(shape, lambda b: (0, 0))

    def const3(shape):                       # full stacked (9, ...) array, fetched once
        return pl.BlockSpec(shape, lambda b: (0, 0, 0))

    in_specs = [pl.BlockSpec((blk_rows, patch_pad), lambda b: (b, 0)),
                const2(params["emb_w"].shape),
                const2(params["emb_b"].shape)]
    in_specs += [const3(params[k].shape) for k in _STACKED]
    in_specs += [const2(params["dec_w"].shape),
                 const2(params["dec_b"].shape)]

    args = ([patches, params["emb_w"], params["emb_b"]]
            + [params[k] for k in _STACKED]
            + [params["dec_w"], params["dec_b"]])

    return pl.pallas_call(
        kernel,
        out_shape=jax.ShapeDtypeStruct((rows_total, dec_pad), jnp.float32),
        grid=(n_row_blocks,),
        in_specs=in_specs,
        out_specs=pl.BlockSpec((blk_rows, dec_pad), lambda b: (b, 0)),
        compiler_params=pltpu.CompilerParams(
            dimension_semantics=("parallel",),
            vmem_limit_bytes=48 * 1024 * 1024),
    )(*args)


# ---------------------------------------------------------------------------
# Deterministic synthetic parameters (shapes follow the PyTorch __init__).
# Linear weights are stored pre-transposed (in, out), stacked over layers;
# matmul weights bf16, biases / LayerNorm params f32.
# TODO(synk): optional int8 (v5e/v6e) / fp8 (v7x) weight storage with
# per-channel scales would halve the resident weight footprint.
# ---------------------------------------------------------------------------
def init_params(key, output_nc=OUTPUT_NC, input_nc=INPUT_NC, ksize=KSIZE):
    patch_dim = ksize * ksize * (input_nc + 1)
    patch_pad = max(128, ((patch_dim + 127) // 128) * 128)   # lane-dense K

    def nrm(k, shape, scale=0.02, dtype=jnp.float32):
        return (scale * jax.random.normal(k, shape, jnp.float32)).astype(dtype)

    keys = jax.random.split(key, 6)
    emb_w = nrm(keys[0], (patch_dim, DIM))                    # nn.Linear.weight.T
    params = {
        "emb_w": jnp.zeros((patch_pad, DIM), MM_DT).at[:patch_dim, :]
                    .set(emb_w.astype(MM_DT)),
        "emb_b": nrm(keys[1], (1, DIM)),
    }

    lk = jax.random.split(keys[2], 8)
    params.update(
        wqkv=nrm(lk[0], (N_LAYERS, DIM, 3 * DIM), dtype=MM_DT),  # in_proj_weight.T
        bqkv=nrm(lk[1], (N_LAYERS, 1, 3 * DIM)),
        wo=nrm(lk[2], (N_LAYERS, DIM, DIM), dtype=MM_DT),        # out_proj.weight.T
        bo=nrm(lk[3], (N_LAYERS, 1, DIM)),
        g1=jnp.ones((N_LAYERS, 1, DIM), jnp.float32),
        be1=jnp.zeros((N_LAYERS, 1, DIM), jnp.float32),
        w1=nrm(lk[4], (N_LAYERS, DIM, DIM_FF), dtype=MM_DT),     # linear1.weight.T
        b1=nrm(lk[5], (N_LAYERS, 1, DIM_FF)),
        w2=nrm(lk[6], (N_LAYERS, DIM_FF, DIM), dtype=MM_DT),     # linear2.weight.T
        b2=nrm(lk[7], (N_LAYERS, 1, DIM)),
        g2=jnp.ones((N_LAYERS, 1, DIM), jnp.float32),
        be2=jnp.zeros((N_LAYERS, 1, DIM), jnp.float32),
    )

    # ConvTranspose2d(dim, output_nc, k, stride=k): weight (C_in, C_out, k, k)
    # flattened to (C_in, C_out*k*k); columns zero-padded to a 128-lane multiple.
    dec_n = output_nc * ksize * ksize
    dec_pad = max(128, ((dec_n + 127) // 128) * 128)
    dec_w = nrm(keys[3], (DIM, dec_n))
    dec_b = jnp.repeat(nrm(keys[4], (output_nc,)), ksize * ksize)
    params["dec_w"] = (jnp.zeros((DIM, dec_pad), MM_DT)
                       .at[:, :dec_n].set(dec_w.astype(MM_DT)))
    params["dec_b"] = (jnp.zeros((1, dec_pad), jnp.float32)
                       .at[0, :dec_n].set(dec_b))
    return params


# ---------------------------------------------------------------------------
# Forward pass (mirrors ViT_Harmonizer.forward, eval mode)
# ---------------------------------------------------------------------------
def vit_harmonizer_forward(inputs, params, output_nc=OUTPUT_NC, ksize=KSIZE):
    B, C, H, W = inputs.shape
    hp, wp = H // ksize, W // ksize
    L = hp * wp

    # Rearrange 'b c (h p1) (w p2) -> b (h w) (p1 p2 c)'   (layout glue)
    x = inputs.reshape(B, C, hp, ksize, wp, ksize)
    x = jnp.transpose(x, (0, 2, 4, 3, 5, 1)).reshape(B * L, ksize * ksize * C)

    # zero-pad patch columns so the kernel's embedding GEMM is lane-dense
    patch_pad = params["emb_w"].shape[0]
    if x.shape[1] < patch_pad:
        x = jnp.pad(x, ((0, 0), (0, patch_pad - x.shape[1])))

    # One fused Pallas call: embedding + 9 encoder layers + decoder GEMM.
    y = _fused_transformer(x, params, B=B, L=L)                  # (B*L, dec_pad)

    # ConvTranspose2d pixel placement (layout glue): drop lane padding, scatter
    # each patch's (C_out, k, k) block into the output image.
    dec_n = output_nc * ksize * ksize
    y = y[:, :dec_n].reshape(B, hp, wp, output_nc, ksize, ksize)
    y = jnp.transpose(y, (0, 3, 1, 4, 2, 5)).reshape(B, output_nc, hp * ksize, wp * ksize)
    return y


if __name__ == "__main__":
    key = jax.random.PRNGKey(0)
    pkey, xkey = jax.random.split(key)

    params = init_params(pkey)
    # (B=2, C=input_nc+1=4, H=16, W=16)  ->  4x4 patches, L=16, patch_dim=64
    inputs = jax.random.normal(xkey, (2, INPUT_NC + 1, 16, 16), jnp.float32)

    fwd = jax.jit(lambda a: vit_harmonizer_forward(a, params))
    out = fwd(inputs)
    jax.block_until_ready(out)

    assert out.shape == (2, OUTPUT_NC, 16, 16), out.shape
    assert out.dtype == jnp.float32
    assert bool(jnp.all(jnp.isfinite(out)))
    print("KERNEL_OK")
</pallas_src>

<mosaic_0001>
module attributes {stable_mosaic.version = 11 : i64} {
  func.func @_fused_vit_kernel(%arg0: i32, %arg1: memref<16x128xf32, #tpu.memory_space<vmem>>, %arg2: memref<128x256xbf16, #tpu.memory_space<vmem>>, %arg3: memref<1x256xf32, #tpu.memory_space<vmem>>, %arg4: memref<9x256x768xbf16, #tpu.memory_space<vmem>>, %arg5: memref<9x1x768xf32, #tpu.memory_space<vmem>>, %arg6: memref<9x256x256xbf16, #tpu.memory_space<vmem>>, %arg7: memref<9x1x256xf32, #tpu.memory_space<vmem>>, %arg8: memref<9x1x256xf32, #tpu.memory_space<vmem>>, %arg9: memref<9x1x256xf32, #tpu.memory_space<vmem>>, %arg10: memref<9x256x512xbf16, #tpu.memory_space<vmem>>, %arg11: memref<9x1x512xf32, #tpu.memory_space<vmem>>, %arg12: memref<9x512x256xbf16, #tpu.memory_space<vmem>>, %arg13: memref<9x1x256xf32, #tpu.memory_space<vmem>>, %arg14: memref<9x1x256xf32, #tpu.memory_space<vmem>>, %arg15: memref<9x1x256xf32, #tpu.memory_space<vmem>>, %arg16: memref<256x128xbf16, #tpu.memory_space<vmem>>, %arg17: memref<1x128xf32, #tpu.memory_space<vmem>>, %arg18: memref<16x128xf32, #tpu.memory_space<vmem>>) attributes {dimension_semantics = [#tpu.dimension_semantics<parallel>], iteration_bounds = array<i64: 2>, scalar_prefetch = 0 : i64, scratch_operands = 0 : i64, tpu.core_type = #tpu.core_type<tc>, window_params = [{transform_indices = @transform_0, window_bounds = array<i64: 16, 128>}, {pipeline_mode = #tpu.pipeline_mode<synchronous>, transform_indices = @transform_1, window_bounds = array<i64: 128, 256>}, {pipeline_mode = #tpu.pipeline_mode<synchronous>, transform_indices = @transform_2, window_bounds = array<i64: 1, 256>}, {pipeline_mode = #tpu.pipeline_mode<synchronous>, transform_indices = @transform_3, window_bounds = array<i64: 9, 256, 768>}, {pipeline_mode = #tpu.pipeline_mode<synchronous>, transform_indices = @transform_4, window_bounds = array<i64: 9, 1, 768>}, {pipeline_mode = #tpu.pipeline_mode<synchronous>, transform_indices = @transform_5, window_bounds = array<i64: 9, 256, 256>}, {pipeline_mode = #tpu.pipeline_mode<synchronous>, transform_indices = @transform_6, window_bounds = array<i64: 9, 1, 256>}, {pipeline_mode = #tpu.pipeline_mode<synchronous>, transform_indices = @transform_7, window_bounds = array<i64: 9, 1, 256>}, {pipeline_mode = #tpu.pipeline_mode<synchronous>, transform_indices = @transform_8, window_bounds = array<i64: 9, 1, 256>}, {pipeline_mode = #tpu.pipeline_mode<synchronous>, transform_indices = @transform_9, window_bounds = array<i64: 9, 256, 512>}, {pipeline_mode = #tpu.pipeline_mode<synchronous>, transform_indices = @transform_10, window_bounds = array<i64: 9, 1, 512>}, {pipeline_mode = #tpu.pipeline_mode<synchronous>, transform_indices = @transform_11, window_bounds = array<i64: 9, 512, 256>}, {pipeline_mode = #tpu.pipeline_mode<synchronous>, transform_indices = @transform_12, window_bounds = array<i64: 9, 1, 256>}, {pipeline_mode = #tpu.pipeline_mode<synchronous>, transform_indices = @transform_13, window_bounds = array<i64: 9, 1, 256>}, {pipeline_mode = #tpu.pipeline_mode<synchronous>, transform_indices = @transform_14, window_bounds = array<i64: 9, 1, 256>}, {pipeline_mode = #tpu.pipeline_mode<synchronous>, transform_indices = @transform_15, window_bounds = array<i64: 256, 128>}, {pipeline_mode = #tpu.pipeline_mode<synchronous>, transform_indices = @transform_16, window_bounds = array<i64: 1, 128>}, {transform_indices = @transform_17, window_bounds = array<i64: 16, 128>}]} {
    %c0 = arith.constant 0 : index
    %c0_0 = arith.constant 0 : index
    %0 = vector.load %arg1[%c0, %c0_0] : memref<16x128xf32, #tpu.memory_space<vmem>>, vector<16x128xf32>
    %1 = arith.truncf %0 : vector<16x128xf32> to vector<16x128xbf16>
    %c0_1 = arith.constant 0 : index
    %c0_2 = arith.constant 0 : index
    %2 = vector.load %arg2[%c0_1, %c0_2] : memref<128x256xbf16, #tpu.memory_space<vmem>>, vector<128x256xbf16>
    %cst = arith.constant dense<0.000000e+00> : vector<16x256xf32>
    %3 = tpu.matmul %1, %2, %cst {dimension_numbers = #tpu.dot_dimension_numbers<[1], [0], [0], [1], [0, 0, 1, 1], [], []>} : vector<16x128xbf16>, vector<128x256xbf16>, vector<16x256xf32> -> vector<16x256xf32>
    %c0_3 = arith.constant 0 : index
    %c0_4 = arith.constant 0 : index
    %4 = vector.load %arg3[%c0_3, %c0_4] : memref<1x256xf32, #tpu.memory_space<vmem>>, vector<1x256xf32>
    %5 = vector.broadcast %4 : vector<1x256xf32> to vector<16x256xf32>
    %6 = arith.addf %3, %5 : vector<16x256xf32>
    %c0_i32 = arith.constant 0 : i32
    %c9_i32 = arith.constant 9 : i32
    %7 = arith.addi %c0_i32, %c9_i32 : i32
    %c1_i32 = arith.constant 1 : i32
    %8 = scf.for %arg19 = %c0_i32 to %7 step %c1_i32 iter_args(%arg20 = %6) -> (vector<16x256xf32>)  : i32 {
      %16 = arith.truncf %arg20 : vector<16x256xf32> to vector<16x256xbf16>
      %17 = arith.index_cast %arg19 : i32 to index
      %c0_13 = arith.constant 0 : index
      %c0_14 = arith.constant 0 : index
      %18 = vector.load %arg4[%17, %c0_13, %c0_14] : memref<9x256x768xbf16, #tpu.memory_space<vmem>>, vector<1x256x768xbf16>
      %19 = vector.shape_cast %18 : vector<1x256x768xbf16> to vector<256x768xbf16>
      %cst_15 = arith.constant dense<0.000000e+00> : vector<16x768xf32>
      %20 = tpu.matmul %16, %19, %cst_15 {dimension_numbers = #tpu.dot_dimension_numbers<[1], [0], [0], [1], [0, 0, 1, 1], [], []>} : vector<16x256xbf16>, vector<256x768xbf16>, vector<16x768xf32> -> vector<16x768xf32>
      %21 = arith.index_cast %arg19 : i32 to index
      %c0_16 = arith.constant 0 : index
      %c0_17 = arith.constant 0 : index
      %22 = vector.load %arg5[%21, %c0_16, %c0_17] : memref<9x1x768xf32, #tpu.memory_space<vmem>>, vector<1x1x768xf32>
      %23 = vector.shape_cast %22 : vector<1x1x768xf32> to vector<1x768xf32>
      %24 = vector.broadcast %23 : vector<1x768xf32> to vector<16x768xf32>
      %25 = arith.addf %20, %24 : vector<16x768xf32>
      %26 = arith.index_cast %arg19 : i32 to index
      %c0_18 = arith.constant 0 : index
      %c0_19 = arith.constant 0 : index
      %27 = vector.load %arg6[%26, %c0_18, %c0_19] : memref<9x256x256xbf16, #tpu.memory_space<vmem>>, vector<1x256x256xbf16>
      %28 = vector.shape_cast %27 : vector<1x256x256xbf16> to vector<256x256xbf16>
      %29 = vector.extract_strided_slice %25 {offsets = [0, 0], sizes = [16, 128], strides = [1, 1]} : vector<16x768xf32> to vector<16x128xf32>
      %30 = vector.shape_cast %29 : vector<16x128xf32> to vector<1x16x128xf32>
      %31 = vector.extract_strided_slice %25 {offsets = [0, 256], sizes = [16, 128], strides = [1, 1]} : vector<16x768xf32> to vector<16x128xf32>
      %32 = vector.shape_cast %31 : vector<16x128xf32> to vector<1x16x128xf32>
      %33 = vector.extract_strided_slice %25 {offsets = [0, 512], sizes = [16, 128], strides = [1, 1]} : vector<16x768xf32> to vector<16x128xf32>
      %34 = vector.shape_cast %33 : vector<16x128xf32> to vector<1x16x128xf32>
      %35 = arith.truncf %30 : vector<1x16x128xf32> to vector<1x16x128xbf16>
      %36 = arith.truncf %32 : vector<1x16x128xf32> to vector<1x16x128xbf16>
      "tpu.trace_start"() <{level = 10 : i32, message = "bqd,bkd->bqk"}> : () -> ()
      %cst_20 = arith.constant dense<0.000000e+00> : vector<1x16x16xf32>
      %37 = tpu.matmul %35, %36, %cst_20 {dimension_numbers = #tpu.dot_dimension_numbers<[2], [2], [1], [1], [0, 0, 0, 1, 1, 1], [0], [0]>} : vector<1x16x128xbf16>, vector<1x16x128xbf16>, vector<1x16x16xf32> -> vector<1x16x16xf32>
      "tpu.trace_stop"() : () -> ()
      %cst_21 = arith.constant 0.0883883461 : f32
      %38 = vector.broadcast %cst_21 : f32 to vector<1x16x16xf32>
      %39 = arith.mulf %37, %38 : vector<1x16x16xf32>
      %cst_22 = arith.constant dense<0xFF800000> : vector<1x16xf32>
      %40 = vector.multi_reduction <maximumf>, %39, %cst_22 [2] : vector<1x16x16xf32> to vector<1x16xf32>
      %41 = vector.shape_cast %40 : vector<1x16xf32> to vector<1x16x1xf32>
      %42 = vector.broadcast %41 : vector<1x16x1xf32> to vector<1x16x16xf32>
      %43 = arith.subf %39, %42 : vector<1x16x16xf32>
      %44 = math.exp %43 : vector<1x16x16xf32>
      %cst_23 = arith.constant dense<0.000000e+00> : vector<1x16xf32>
      %45 = vector.multi_reduction <add>, %44, %cst_23 [2] : vector<1x16x16xf32> to vector<1x16xf32>
      %46 = vector.shape_cast %45 : vector<1x16xf32> to vector<1x16x1xf32>
      %47 = tpu.reciprocal %46 {approx = true} : vector<1x16x1xf32> -> vector<1x16x1xf32>
      %48 = vector.broadcast %47 : vector<1x16x1xf32> to vector<1x16x16xf32>
      %49 = arith.mulf %44, %48 : vector<1x16x16xf32>
      %50 = arith.truncf %49 : vector<1x16x16xf32> to vector<1x16x16xbf16>
      %51 = arith.truncf %34 : vector<1x16x128xf32> to vector<1x16x128xbf16>
      "tpu.trace_start"() <{level = 10 : i32, message = "bqk,bkd->bqd"}> : () -> ()
      %cst_24 = arith.constant dense<0.000000e+00> : vector<1x16x128xf32>
      %52 = tpu.matmul %50, %51, %cst_24 {dimension_numbers = #tpu.dot_dimension_numbers<[2], [1], [1], [2], [0, 0, 0, 1, 1, 2], [0], [0]>} : vector<1x16x16xbf16>, vector<1x16x128xbf16>, vector<1x16x128xf32> -> vector<1x16x128xf32>
      "tpu.trace_stop"() : () -> ()
      %53 = vector.shape_cast %52 : vector<1x16x128xf32> to vector<16x128xf32>
      %54 = arith.truncf %53 : vector<16x128xf32> to vector<16x128xbf16>
      %55 = vector.extract_strided_slice %28 {offsets = [0, 0], sizes = [128, 256], strides = [1, 1]} : vector<256x256xbf16> to vector<128x256xbf16>
      %cst_25 = arith.constant dense<0.000000e+00> : vector<16x256xf32>
      %56 = tpu.matmul %54, %55, %cst_25 {dimension_numbers = #tpu.dot_dimension_numbers<[1], [0], [0], [1], [0, 0, 1, 1], [], []>} : vector<16x128xbf16>, vector<128x256xbf16>, vector<16x256xf32> -> vector<16x256xf32>
      %57 = vector.extract_strided_slice %25 {offsets = [0, 128], sizes = [16, 128], strides = [1, 1]} : vector<16x768xf32> to vector<16x128xf32>
      %58 = vector.shape_cast %57 : vector<16x128xf32> to vector<1x16x128xf32>
      %59 = vector.extract_strided_slice %25 {offsets = [0, 384], sizes = [16, 128], strides = [1, 1]} : vector<16x768xf32> to vector<16x128xf32>
      %60 = vector.shape_cast %59 : vector<16x128xf32> to vector<1x16x128xf32>
      %61 = vector.extract_strided_slice %25 {offsets = [0, 640], sizes = [16, 128], strides = [1, 1]} : vector<16x768xf32> to vector<16x128xf32>
      %62 = vector.shape_cast %61 : vector<16x128xf32> to vector<1x16x128xf32>
      %63 = arith.truncf %58 : vector<1x16x128xf32> to vector<1x16x128xbf16>
      %64 = arith.truncf %60 : vector<1x16x128xf32> to vector<1x16x128xbf16>
      "tpu.trace_start"() <{level = 10 : i32, message = "bqd,bkd->bqk"}> : () -> ()
      %cst_26 = arith.constant dense<0.000000e+00> : vector<1x16x16xf32>
      %65 = tpu.matmul %63, %64, %cst_26 {dimension_numbers = #tpu.dot_dimension_numbers<[2], [2], [1], [1], [0, 0, 0, 1, 1, 1], [0], [0]>} : vector<1x16x128xbf16>, vector<1x16x128xbf16>, vector<1x16x16xf32> -> vector<1x16x16xf32>
      "tpu.trace_stop"() : () -> ()
      %cst_27 = arith.constant 0.0883883461 : f32
      %66 = vector.broadcast %cst_27 : f32 to vector<1x16x16xf32>
      %67 = arith.mulf %65, %66 : vector<1x16x16xf32>
      %cst_28 = arith.constant dense<0xFF800000> : vector<1x16xf32>
      %68 = vector.multi_reduction <maximumf>, %67, %cst_28 [2] : vector<1x16x16xf32> to vector<1x16xf32>
      %69 = vector.shape_cast %68 : vector<1x16xf32> to vector<1x16x1xf32>
      %70 = vector.broadcast %69 : vector<1x16x1xf32> to vector<1x16x16xf32>
      %71 = arith.subf %67, %70 : vector<1x16x16xf32>
      %72 = math.exp %71 : vector<1x16x16xf32>
      %cst_29 = arith.constant dense<0.000000e+00> : vector<1x16xf32>
      %73 = vector.multi_reduction <add>, %72, %cst_29 [2] : vector<1x16x16xf32> to vector<1x16xf32>
      %74 = vector.shape_cast %73 : vector<1x16xf32> to vector<1x16x1xf32>
      %75 = tpu.reciprocal %74 {approx = true} : vector<1x16x1xf32> -> vector<1x16x1xf32>
      %76 = vector.broadcast %75 : vector<1x16x1xf32> to vector<1x16x16xf32>
      %77 = arith.mulf %72, %76 : vector<1x16x16xf32>
      %78 = arith.truncf %77 : vector<1x16x16xf32> to vector<1x16x16xbf16>
      %79 = arith.truncf %62 : vector<1x16x128xf32> to vector<1x16x128xbf16>
      "tpu.trace_start"() <{level = 10 : i32, message = "bqk,bkd->bqd"}> : () -> ()
      %cst_30 = arith.constant dense<0.000000e+00> : vector<1x16x128xf32>
      %80 = tpu.matmul %78, %79, %cst_30 {dimension_numbers = #tpu.dot_dimension_numbers<[2], [1], [1], [2], [0, 0, 0, 1, 1, 2], [0], [0]>} : vector<1x16x16xbf16>, vector<1x16x128xbf16>, vector<1x16x128xf32> -> vector<1x16x128xf32>
      "tpu.trace_stop"() : () -> ()
      %81 = vector.shape_cast %80 : vector<1x16x128xf32> to vector<16x128xf32>
      %82 = arith.truncf %81 : vector<16x128xf32> to vector<16x128xbf16>
      %83 = vector.extract_strided_slice %28 {offsets = [128, 0], sizes = [128, 256], strides = [1, 1]} : vector<256x256xbf16> to vector<128x256xbf16>
      %cst_31 = arith.constant dense<0.000000e+00> : vector<16x256xf32>
      %84 = tpu.matmul %82, %83, %cst_31 {dimension_numbers = #tpu.dot_dimension_numbers<[1], [0], [0], [1], [0, 0, 1, 1], [], []>} : vector<16x128xbf16>, vector<128x256xbf16>, vector<16x256xf32> -> vector<16x256xf32>
      %85 = arith.addf %56, %84 : vector<16x256xf32>
      %86 = arith.index_cast %arg19 : i32 to index
      %c0_32 = arith.constant 0 : index
      %c0_33 = arith.constant 0 : index
      %87 = vector.load %arg7[%86, %c0_32, %c0_33] : memref<9x1x256xf32, #tpu.memory_space<vmem>>, vector<1x1x256xf32>
      %88 = vector.shape_cast %87 : vector<1x1x256xf32> to vector<1x256xf32>
      %89 = vector.broadcast %88 : vector<1x256xf32> to vector<16x256xf32>
      %90 = arith.addf %85, %89 : vector<16x256xf32>
      %91 = arith.addf %arg20, %90 : vector<16x256xf32>
      %92 = arith.index_cast %arg19 : i32 to index
      %c0_34 = arith.constant 0 : index
      %c0_35 = arith.constant 0 : index
      %93 = vector.load %arg8[%92, %c0_34, %c0_35] : memref<9x1x256xf32, #tpu.memory_space<vmem>>, vector<1x1x256xf32>
      %94 = vector.shape_cast %93 : vector<1x1x256xf32> to vector<1x256xf32>
      %95 = arith.index_cast %arg19 : i32 to index
      %c0_36 = arith.constant 0 : index
      %c0_37 = arith.constant 0 : index
      %96 = vector.load %arg9[%95, %c0_36, %c0_37] : memref<9x1x256xf32, #tpu.memory_space<vmem>>, vector<1x1x256xf32>
      %97 = vector.shape_cast %96 : vector<1x1x256xf32> to vector<1x256xf32>
      %cst_38 = arith.constant dense<0.000000e+00> : vector<16xf32>
      %98 = vector.multi_reduction <add>, %91, %cst_38 [1] : vector<16x256xf32> to vector<16xf32>
      %99 = vector.shape_cast %98 : vector<16xf32> to vector<16x1xf32>
      %cst_39 = arith.constant 2.560000e+02 : f32
      %100 = vector.broadcast %cst_39 : f32 to vector<16x1xf32>
      %101 = arith.divf %99, %100 : vector<16x1xf32>
      %102 = vector.broadcast %101 : vector<16x1xf32> to vector<16x256xf32>
      %103 = arith.subf %91, %102 : vector<16x256xf32>
      %104 = arith.mulf %103, %103 : vector<16x256xf32>
      %cst_40 = arith.constant dense<0.000000e+00> : vector<16xf32>
      %105 = vector.multi_reduction <add>, %104, %cst_40 [1] : vector<16x256xf32> to vector<16xf32>
      %106 = vector.shape_cast %105 : vector<16xf32> to vector<16x1xf32>
      %cst_41 = arith.constant 2.560000e+02 : f32
      %107 = vector.broadcast %cst_41 : f32 to vector<16x1xf32>
      %108 = arith.divf %106, %107 : vector<16x1xf32>
      %cst_42 = arith.constant 9.99999974E-6 : f32
      %109 = vector.broadcast %cst_42 : f32 to vector<16x1xf32>
      %110 = arith.addf %108, %109 : vector<16x1xf32>
      %111 = math.rsqrt %110 : vector<16x1xf32>
      %112 = vector.broadcast %111 : vector<16x1xf32> to vector<16x256xf32>
      %113 = arith.mulf %103, %112 : vector<16x256xf32>
      %114 = vector.broadcast %94 : vector<1x256xf32> to vector<16x256xf32>
      %115 = arith.mulf %113, %114 : vector<16x256xf32>
      %116 = vector.broadcast %97 : vector<1x256xf32> to vector<16x256xf32>
      %117 = arith.addf %115, %116 : vector<16x256xf32>
      %118 = arith.truncf %117 : vector<16x256xf32> to vector<16x256xbf16>
      %119 = arith.index_cast %arg19 : i32 to index
      %c0_43 = arith.constant 0 : index
      %c0_44 = arith.constant 0 : index
      %120 = vector.load %arg10[%119, %c0_43, %c0_44] : memref<9x256x512xbf16, #tpu.memory_space<vmem>>, vector<1x256x512xbf16>
      %121 = vector.shape_cast %120 : vector<1x256x512xbf16> to vector<256x512xbf16>
      %cst_45 = arith.constant dense<0.000000e+00> : vector<16x512xf32>
      %122 = tpu.matmul %118, %121, %cst_45 {dimension_numbers = #tpu.dot_dimension_numbers<[1], [0], [0], [1], [0, 0, 1, 1], [], []>} : vector<16x256xbf16>, vector<256x512xbf16>, vector<16x512xf32> -> vector<16x512xf32>
      %123 = arith.index_cast %arg19 : i32 to index
      %c0_46 = arith.constant 0 : index
      %c0_47 = arith.constant 0 : index
      %124 = vector.load %arg11[%123, %c0_46, %c0_47] : memref<9x1x512xf32, #tpu.memory_space<vmem>>, vector<1x1x512xf32>
      %125 = vector.shape_cast %124 : vector<1x1x512xf32> to vector<1x512xf32>
      %126 = vector.broadcast %125 : vector<1x512xf32> to vector<16x512xf32>
      %127 = arith.addf %122, %126 : vector<16x512xf32>
      %cst_48 = arith.constant 5.000000e-01 : f32
      %128 = vector.broadcast %cst_48 : f32 to vector<16x512xf32>
      %129 = arith.mulf %128, %127 : vector<16x512xf32>
      %cst_49 = arith.constant 4.471500e-02 : f32
      %130 = vector.broadcast %cst_49 : f32 to vector<16x512xf32>
      %131 = arith.mulf %130, %127 : vector<16x512xf32>
      %132 = arith.mulf %131, %127 : vector<16x512xf32>
      %133 = arith.mulf %132, %127 : vector<16x512xf32>
      %134 = arith.addf %127, %133 : vector<16x512xf32>
      %cst_50 = arith.constant 0.797884583 : f32
      %135 = vector.broadcast %cst_50 : f32 to vector<16x512xf32>
      %136 = arith.mulf %135, %134 : vector<16x512xf32>
      %137 = math.tanh %136 : vector<16x512xf32>
      %cst_51 = arith.constant 1.000000e+00 : f32
      %138 = vector.broadcast %cst_51 : f32 to vector<16x512xf32>
      %139 = arith.addf %138, %137 : vector<16x512xf32>
      %140 = arith.mulf %129, %139 : vector<16x512xf32>
      %141 = arith.truncf %140 : vector<16x512xf32> to vector<16x512xbf16>
      %142 = arith.index_cast %arg19 : i32 to index
      %c0_52 = arith.constant 0 : index
      %c0_53 = arith.constant 0 : index
      %143 = vector.load %arg12[%142, %c0_52, %c0_53] : memref<9x512x256xbf16, #tpu.memory_space<vmem>>, vector<1x512x256xbf16>
      %144 = vector.shape_cast %143 : vector<1x512x256xbf16> to vector<512x256xbf16>
      %cst_54 = arith.constant dense<0.000000e+00> : vector<16x256xf32>
      %145 = tpu.matmul %141, %144, %cst_54 {dimension_numbers = #tpu.dot_dimension_numbers<[1], [0], [0], [1], [0, 0, 1, 1], [], []>} : vector<16x512xbf16>, vector<512x256xbf16>, vector<16x256xf32> -> vector<16x256xf32>
      %146 = arith.index_cast %arg19 : i32 to index
      %c0_55 = arith.constant 0 : index
      %c0_56 = arith.constant 0 : index
      %147 = vector.load %arg13[%146, %c0_55, %c0_56] : memref<9x1x256xf32, #tpu.memory_space<vmem>>, vector<1x1x256xf32>
      %148 = vector.shape_cast %147 : vector<1x1x256xf32> to vector<1x256xf32>
      %149 = vector.broadcast %148 : vector<1x256xf32> to vector<16x256xf32>
      %150 = arith.addf %145, %149 : vector<16x256xf32>
      %151 = arith.addf %117, %150 : vector<16x256xf32>
      %152 = arith.index_cast %arg19 : i32 to index
      %c0_57 = arith.constant 0 : index
      %c0_58 = arith.constant 0 : index
      %153 = vector.load %arg14[%152, %c0_57, %c0_58] : memref<9x1x256xf32, #tpu.memory_space<vmem>>, vector<1x1x256xf32>
      %154 = vector.shape_cast %153 : vector<1x1x256xf32> to vector<1x256xf32>
      %155 = arith.index_cast %arg19 : i32 to index
      %c0_59 = arith.constant 0 : index
      %c0_60 = arith.constant 0 : index
      %156 = vector.load %arg15[%155, %c0_59, %c0_60] : memref<9x1x256xf32, #tpu.memory_space<vmem>>, vector<1x1x256xf32>
      %157 = vector.shape_cast %156 : vector<1x1x256xf32> to vector<1x256xf32>
      %cst_61 = arith.constant dense<0.000000e+00> : vector<16xf32>
      %158 = vector.multi_reduction <add>, %151, %cst_61 [1] : vector<16x256xf32> to vector<16xf32>
      %159 = vector.shape_cast %158 : vector<16xf32> to vector<16x1xf32>
      %cst_62 = arith.constant 2.560000e+02 : f32
      %160 = vector.broadcast %cst_62 : f32 to vector<16x1xf32>
      %161 = arith.divf %159, %160 : vector<16x1xf32>
      %162 = vector.broadcast %161 : vector<16x1xf32> to vector<16x256xf32>
      %163 = arith.subf %151, %162 : vector<16x256xf32>
      %164 = arith.mulf %163, %163 : vector<16x256xf32>
      %cst_63 = arith.constant dense<0.000000e+00> : vector<16xf32>
      %165 = vector.multi_reduction <add>, %164, %cst_63 [1] : vector<16x256xf32> to vector<16xf32>
      %166 = vector.shape_cast %165 : vector<16xf32> to vector<16x1xf32>
      %cst_64 = arith.constant 2.560000e+02 : f32
      %167 = vector.broadcast %cst_64 : f32 to vector<16x1xf32>
      %168 = arith.divf %166, %167 : vector<16x1xf32>
      %cst_65 = arith.constant 9.99999974E-6 : f32
      %169 = vector.broadcast %cst_65 : f32 to vector<16x1xf32>
      %170 = arith.addf %168, %169 : vector<16x1xf32>
      %171 = math.rsqrt %170 : vector<16x1xf32>
      %172 = vector.broadcast %171 : vector<16x1xf32> to vector<16x256xf32>
      %173 = arith.mulf %163, %172 : vector<16x256xf32>
      %174 = vector.broadcast %154 : vector<1x256xf32> to vector<16x256xf32>
      %175 = arith.mulf %173, %174 : vector<16x256xf32>
      %176 = vector.broadcast %157 : vector<1x256xf32> to vector<16x256xf32>
      %177 = arith.addf %175, %176 : vector<16x256xf32>
      scf.yield %177 : vector<16x256xf32>
    }
    %c9_i32_5 = arith.constant 9 : i32
    %9 = arith.truncf %8 : vector<16x256xf32> to vector<16x256xbf16>
    %c0_6 = arith.constant 0 : index
    %c0_7 = arith.constant 0 : index
    %10 = vector.load %arg16[%c0_6, %c0_7] : memref<256x128xbf16, #tpu.memory_space<vmem>>, vector<256x128xbf16>
    %cst_8 = arith.constant dense<0.000000e+00> : vector<16x128xf32>
    %11 = tpu.matmul %9, %10, %cst_8 {dimension_numbers = #tpu.dot_dimension_numbers<[1], [0], [0], [1], [0, 0, 1, 1], [], []>} : vector<16x256xbf16>, vector<256x128xbf16>, vector<16x128xf32> -> vector<16x128xf32>
    %c0_9 = arith.constant 0 : index
    %c0_10 = arith.constant 0 : index
    %12 = vector.load %arg17[%c0_9, %c0_10] : memref<1x128xf32, #tpu.memory_space<vmem>>, vector<1x128xf32>
    %13 = vector.broadcast %12 : vector<1x128xf32> to vector<16x128xf32>
    %14 = arith.addf %11, %13 : vector<16x128xf32>
    %c0_11 = arith.constant 0 : index
    %c0_12 = arith.constant 0 : index
    %15 = vector.load %arg18[%c0_11, %c0_12] : memref<16x128xf32, #tpu.memory_space<vmem>>, vector<16x128xf32>
    tpu.vector_store %arg18[%c0_11, %c0_12], %14 {strides = array<i32>} : memref<16x128xf32, #tpu.memory_space<vmem>>, vector<16x128xf32>,
    return
  }
  func.func @transform_0(%arg0: i32) -> (i32, i32) {
    %c0_i32 = arith.constant 0 : i32
    %c0_i32_0 = arith.constant 0 : i32
    return %arg0, %c0_i32 : i32, i32
  }
  func.func @transform_1(%arg0: i32) -> (i32, i32) {
    %c0_i32 = arith.constant 0 : i32
    %c0_i32_0 = arith.constant 0 : i32
    %c0_i32_1 = arith.constant 0 : i32
    return %c0_i32, %c0_i32_0 : i32, i32
  }
  func.func @transform_2(%arg0: i32) -> (i32, i32) {
    %c0_i32 = arith.constant 0 : i32
    %c0_i32_0 = arith.constant 0 : i32
    %c0_i32_1 = arith.constant 0 : i32
    return %c0_i32, %c0_i32_0 : i32, i32
  }
  func.func @transform_3(%arg0: i32) -> (i32, i32, i32) {
    %c0_i32 = arith.constant 0 : i32
    %c0_i32_0 = arith.constant 0 : i32
    %c0_i32_1 = arith.constant 0 : i32
    %c0_i32_2 = arith.constant 0 : i32
    return %c0_i32, %c0_i32_0, %c0_i32_1 : i32, i32, i32
  }
  func.func @transform_4(%arg0: i32) -> (i32, i32, i32) {
    %c0_i32 = arith.constant 0 : i32
    %c0_i32_0 = arith.constant 0 : i32
    %c0_i32_1 = arith.constant 0 : i32
    %c0_i32_2 = arith.constant 0 : i32
    return %c0_i32, %c0_i32_0, %c0_i32_1 : i32, i32, i32
  }
  func.func @transform_5(%arg0: i32) -> (i32, i32, i32) {
    %c0_i32 = arith.constant 0 : i32
    %c0_i32_0 = arith.constant 0 : i32
    %c0_i32_1 = arith.constant 0 : i32
    %c0_i32_2 = arith.constant 0 : i32
    return %c0_i32, %c0_i32_0, %c0_i32_1 : i32, i32, i32
  }
  func.func @transform_6(%arg0: i32) -> (i32, i32, i32) {
    %c0_i32 = arith.constant 0 : i32
    %c0_i32_0 = arith.constant 0 : i32
    %c0_i32_1 = arith.constant 0 : i32
    %c0_i32_2 = arith.constant 0 : i32
    return %c0_i32, %c0_i32_0, %c0_i32_1 : i32, i32, i32
  }
  func.func @transform_7(%arg0: i32) -> (i32, i32, i32) {
    %c0_i32 = arith.constant 0 : i32
    %c0_i32_0 = arith.constant 0 : i32
    %c0_i32_1 = arith.constant 0 : i32
    %c0_i32_2 = arith.constant 0 : i32
    return %c0_i32, %c0_i32_0, %c0_i32_1 : i32, i32, i32
  }
  func.func @transform_8(%arg0: i32) -> (i32, i32, i32) {
    %c0_i32 = arith.constant 0 : i32
    %c0_i32_0 = arith.constant 0 : i32
    %c0_i32_1 = arith.constant 0 : i32
    %c0_i32_2 = arith.constant 0 : i32
    return %c0_i32, %c0_i32_0, %c0_i32_1 : i32, i32, i32
  }
  func.func @transform_9(%arg0: i32) -> (i32, i32, i32) {
    %c0_i32 = arith.constant 0 : i32
    %c0_i32_0 = arith.constant 0 : i32
    %c0_i32_1 = arith.constant 0 : i32
    %c0_i32_2 = arith.constant 0 : i32
    return %c0_i32, %c0_i32_0, %c0_i32_1 : i32, i32, i32
  }
  func.func @transform_10(%arg0: i32) -> (i32, i32, i32) {
    %c0_i32 = arith.constant 0 : i32
    %c0_i32_0 = arith.constant 0 : i32
    %c0_i32_1 = arith.constant 0 : i32
    %c0_i32_2 = arith.constant 0 : i32
    return %c0_i32, %c0_i32_0, %c0_i32_1 : i32, i32, i32
  }
  func.func @transform_11(%arg0: i32) -> (i32, i32, i32) {
    %c0_i32 = arith.constant 0 : i32
    %c0_i32_0 = arith.constant 0 : i32
    %c0_i32_1 = arith.constant 0 : i32
    %c0_i32_2 = arith.constant 0 : i32
    return %c0_i32, %c0_i32_0, %c0_i32_1 : i32, i32, i32
  }
  func.func @transform_12(%arg0: i32) -> (i32, i32, i32) {
    %c0_i32 = arith.constant 0 : i32
    %c0_i32_0 = arith.constant 0 : i32
    %c0_i32_1 = arith.constant 0 : i32
    %c0_i32_2 = arith.constant 0 : i32
    return %c0_i32, %c0_i32_0, %c0_i32_1 : i32, i32, i32
  }
  func.func @transform_13(%arg0: i32) -> (i32, i32, i32) {
    %c0_i32 = arith.constant 0 : i32
    %c0_i32_0 = arith.constant 0 : i32
    %c0_i32_1 = arith.constant 0 : i32
    %c0_i32_2 = arith.constant 0 : i32
    return %c0_i32, %c0_i32_0, %c0_i32_1 : i32, i32, i32
  }
  func.func @transform_14(%arg0: i32) -> (i32, i32, i32) {
    %c0_i32 = arith.constant 0 : i32
    %c0_i32_0 = arith.constant 0 : i32
    %c0_i32_1 = arith.constant 0 : i32
    %c0_i32_2 = arith.constant 0 : i32
    return %c0_i32, %c0_i32_0, %c0_i32_1 : i32, i32, i32
  }
  func.func @transform_15(%arg0: i32) -> (i32, i32) {
    %c0_i32 = arith.constant 0 : i32
    %c0_i32_0 = arith.constant 0 : i32
    %c0_i32_1 = arith.constant 0 : i32
    return %c0_i32, %c0_i32_0 : i32, i32
  }
  func.func @transform_16(%arg0: i32) -> (i32, i32) {
    %c0_i32 = arith.constant 0 : i32
    %c0_i32_0 = arith.constant 0 : i32
    %c0_i32_1 = arith.constant 0 : i32
    return %c0_i32, %c0_i32_0 : i32, i32
  }
  func.func @transform_17(%arg0: i32) -> (i32, i32) {
    %c0_i32 = arith.constant 0 : i32
    %c0_i32_0 = arith.constant 0 : i32
    return %arg0, %c0_i32 : i32, i32
  }
}

</mosaic_0001>

<llo_original>
// kernel: _lambda_.1
$region0: #{_lambda_.1}
  #allocation0 [shape = 'u32[]', space=smem, size = 0x4, offset = 0x4, fixed_abs, tag = 'smem constant byte address 0x4 - core index']
  #allocation1 [shape = 'u32[144,128]{1,0:T(1,128)}', space=vmem, size = 0x12000, scoped, tag = 'internal scratch']
  %s0 = inlined_call_operand.vmem [shape: f32[32,128], index: 0, kind: input, shape index: {}]
  %s1 = inlined_call_operand.vmem [shape: bf16[128,256], index: 1, kind: input, shape index: {}]
  %s2 = inlined_call_operand.vmem [shape: f32[1,256], index: 2, kind: input, shape index: {}]
  %s3 = inlined_call_operand.vmem [shape: bf16[9,256,768], index: 3, kind: input, shape index: {}]
  %s4 = inlined_call_operand.vmem [shape: f32[9,1,768], index: 4, kind: input, shape index: {}]
  %s5 = inlined_call_operand.vmem [shape: bf16[9,256,256], index: 5, kind: input, shape index: {}]
  %s6 = inlined_call_operand.vmem [shape: f32[9,1,256], index: 6, kind: input, shape index: {}]
  %s7 = inlined_call_operand.vmem [shape: f32[9,1,256], index: 7, kind: input, shape index: {}, may-alias: {7,13}]
  %s8 = inlined_call_operand.vmem [shape: f32[9,1,256], index: 8, kind: input, shape index: {}, may-alias: {8,14}]
  %s9 = inlined_call_operand.vmem [shape: bf16[9,256,512], index: 9, kind: input, shape index: {}]
  %s10 = inlined_call_operand.vmem [shape: f32[9,1,512], index: 10, kind: input, shape index: {}]
  %s11 = inlined_call_operand.vmem [shape: bf16[9,512,256], index: 11, kind: input, shape index: {}]
  %s12 = inlined_call_operand.vmem [shape: f32[9,1,256], index: 12, kind: input, shape index: {}]
  %s13 = inlined_call_operand.vmem [shape: f32[9,1,256], index: 13, kind: input, shape index: {}, may-alias: {7,13}]
  %s14 = inlined_call_operand.vmem [shape: f32[9,1,256], index: 14, kind: input, shape index: {}, may-alias: {8,14}]
  %s15 = inlined_call_operand.vmem [shape: bf16[256,128], index: 15, kind: input, shape index: {}]
  %s16 = inlined_call_operand.vmem [shape: f32[1,128], index: 16, kind: input, shape index: {}]
  %s17 = inlined_call_operand.vmem [shape: f32[32,128], index: 17, kind: output, shape index: {}]
  %s18 = sld [smem:[#allocation0]]
  $region108: #{_lambda_.1} parent=0
    _
  %s20 = ssub.s32 1, %s18
  %s21 = scalar_select 0, %s20, %s18
  loop: start=0, step=1, limit=4
  $region2: #{_lambda_.1} parent=0 // loop_pre_header
    _
  $region3: #{_lambda_.1} parent=0 // loop_header
    %s23 = sphi 0, %s27
    %p24 = scmp.ge.s32.totalorder %s23, 4
    %s33 = sphi 0, %s35
    %s36 = sphi 0, %s33
    %s37 = sphi 0, %s36
    %s53 = sphi 0, %s37
    %s57 = sphi 0, %s57
    %s59 = sphi 0, %s57
    %s60 = sphi 0, %s59
    %s74 = sphi 0, %s60
    %s78 = sphi 0, %s78
    %s80 = sphi 0, %s78
    %s81 = sphi 0, %s80
    %s95 = sphi 0, %s81
    %s99 = sphi 0, %s99
    %s101 = sphi 0, %s99
    %s102 = sphi 0, %s101
    %s116 = sphi 0, %s102
    %s120 = sphi 0, %s120
    %s122 = sphi 0, %s120
    %s123 = sphi 0, %s122
    %s137 = sphi 0, %s123
    %s141 = sphi 0, %s141
    %s143 = sphi 0, %s141
    %s144 = sphi 0, %s143
    %s158 = sphi 0, %s144
    %s162 = sphi 0, %s162
    %s164 = sphi 0, %s162
    %s165 = sphi 0, %s164
    %s179 = sphi 0, %s165
    %s183 = sphi 0, %s183
    %s185 = sphi 0, %s183
    %s186 = sphi 0, %s185
    %s200 = sphi 0, %s186
    %s204 = sphi 0, %s204
    %s206 = sphi 0, %s204
    %s207 = sphi 0, %s206
    %s221 = sphi 0, %s207
    %s225 = sphi 0, %s225
    %s227 = sphi 0, %s225
    %s228 = sphi 0, %s227
    %s242 = sphi 0, %s228
    %s246 = sphi 0, %s246
    %s248 = sphi 0, %s246
    %s249 = sphi 0, %s248
    %s263 = sphi 0, %s249
    %s267 = sphi 0, %s267
    %s269 = sphi 0, %s267
    %s270 = sphi 0, %s269
    %s284 = sphi 0, %s270
    %s288 = sphi 0, %s288
    %s290 = sphi 0, %s288
    %s291 = sphi 0, %s290
    %s305 = sphi 0, %s291
    %s309 = sphi 0, %s309
    %s311 = sphi 0, %s309
    %s312 = sphi 0, %s311
    %s326 = sphi 0, %s312
    %s330 = sphi 0, %s330
    %s332 = sphi 0, %s330
    %s333 = sphi 0, %s332
    %s347 = sphi 0, %s333
    %s351 = sphi 0, %s351
    %s353 = sphi 0, %s351
    %s354 = sphi 0, %s353
    %s368 = sphi 0, %s354
    %s372 = sphi 0, %s372
    %s374 = sphi 0, %s372
    %s375 = sphi 0, %s374
    %s389 = sphi 0, %s375
    %s395 = sphi 0, %s397
    %s398 = sphi 0, %s395
    %s399 = sphi 0, %s398
    %s415 = sphi 0, %s399
  $region4: #{_lambda_.1} parent=0 // loop_header_branch
    %26 = sbr.rel (%p24) target = $region8
  $region5: #{_lambda_.1} parent=0 // loop_body
    %s28 = ssub.s32 %s23, 1
    %s29 = ssub.s32 %s23, 2
    %s30 = sadd.s32 %s23, 1
    %s31 = ssub.s32 %s23, %s30
    %p32 = scmp.eq.s32.totalorder %s31, 0
    %s34 = sadd.s32 %s33, 1
    %s35 = scalar_select %p32, %s33, %s34
    %p38 = pneg %p32
    %p39 = scmp.eq.s32.totalorder %s23, 1
    %p40 = por %p38, %p39
    %p41 = scmp.ne.s32.totalorder %s33, %s36
    %p42 = scmp.eq.s32.totalorder %s23, 0
    %p43 = por %p41, %p42
    %p44 = scmp.ne.s32.totalorder %s33, %s36
    %p45 = scmp.eq.s32.totalorder %s28, 1
    %p46 = por %p44, %p45
    %p47 = scmp.ne.s32.totalorder %s36, %s37
    %p48 = scmp.eq.s32.totalorder %s28, 0
    %p49 = por %p47, %p48
    %p50 = scmp.ne.s32.totalorder %s36, %s37
    %p51 = scmp.eq.s32.totalorder %s29, 1
    %p52 = por %p50, %p51
    %p54 = scmp.ne.s32.totalorder %s37, %s53
    %p55 = scmp.eq.s32.totalorder %s29, 0
    %p56 = por %p54, %p55
    %s58 = sadd.s32 %s57, 1
    %p61 = scmp.eq.s32.totalorder %s23, 1
    %p62 = scmp.ne.s32.totalorder %s57, %s59
    %p63 = scmp.eq.s32.totalorder %s23, 0
    %p64 = por %p62, %p63
    %p65 = scmp.ne.s32.totalorder %s57, %s59
    %p66 = scmp.eq.s32.totalorder %s28, 1
    %p67 = por %p65, %p66
    %p68 = scmp.ne.s32.totalorder %s59, %s60
    %p69 = scmp.eq.s32.totalorder %s28, 0
    %p70 = por %p68, %p69
    %p71 = scmp.ne.s32.totalorder %s59, %s60
    %p72 = scmp.eq.s32.totalorder %s29, 1
    %p73 = por %p71, %p72
    %p75 = scmp.ne.s32.totalorder %s60, %s74
    %p76 = scmp.eq.s32.totalorder %s29, 0
    %p77 = por %p75, %p76
    %s79 = sadd.s32 %s78, 1
    %p82 = scmp.eq.s32.totalorder %s23, 1
    %p83 = scmp.ne.s32.totalorder %s78, %s80
    %p84 = scmp.eq.s32.totalorder %s23, 0
    %p85 = por %p83, %p84
    %p86 = scmp.ne.s32.totalorder %s78, %s80
    %p87 = scmp.eq.s32.totalorder %s28, 1
    %p88 = por %p86, %p87
    %p89 = scmp.ne.s32.totalorder %s80, %s81
    %p90 = scmp.eq.s32.totalorder %s28, 0
    %p91 = por %p89, %p90
    %p92 = scmp.ne.s32.totalorder %s80, %s81
    %p93 = scmp.eq.s32.totalorder %s29, 1
    %p94 = por %p92, %p93
    %p96 = scmp.ne.s32.totalorder %s81, %s95
    %p97 = scmp.eq.s32.totalorder %s29, 0
    %p98 = por %p96, %p97
    %s100 = sadd.s32 %s99, 1
    %p103 = scmp.eq.s32.totalorder %s23, 1
    %p104 = scmp.ne.s32.totalorder %s99, %s101
    %p105 = scmp.eq.s32.totalorder %s23, 0
    %p106 = por %p104, %p105
    %p107 = scmp.ne.s32.totalorder %s99, %s101
    %p108 = scmp.eq.s32.totalorder %s28, 1
    %p109 = por %p107, %p108
    %p110 = scmp.ne.s32.totalorder %s101, %s102
    %p111 = scmp.eq.s32.totalorder %s28, 0
    %p112 = por %p110, %p111
    %p113 = scmp.ne.s32.totalorder %s101, %s102
    %p114 = scmp.eq.s32.totalorder %s29, 1
    %p115 = por %p113, %p114
    %p117 = scmp.ne.s32.totalorder %s102, %s116
    %p118 = scmp.eq.s32.totalorder %s29, 0
    %p119 = por %p117, %p118
    %s121 = sadd.s32 %s120, 1
    %p124 = scmp.eq.s32.totalorder %s23, 1
    %p125 = scmp.ne.s32.totalorder %s120, %s122
    %p126 = scmp.eq.s32.totalorder %s23, 0
    %p127 = por %p125, %p126
    %p128 = scmp.ne.s32.totalorder %s120, %s122
    %p129 = scmp.eq.s32.totalorder %s28, 1
    %p130 = por %p128, %p129
    %p131 = scmp.ne.s32.totalorder %s122, %s123
    %p132 = scmp.eq.s32.totalorder %s28, 0
    %p133 = por %p131, %p132
    %p134 = scmp.ne.s32.totalorder %s122, %s123
    %p135 = scmp.eq.s32.totalorder %s29, 1
    %p136 = por %p134, %p135
    %p138 = scmp.ne.s32.totalorder %s123, %s137
    %p139 = scmp.eq.s32.totalorder %s29, 0
    %p140 = por %p138, %p139
    %s142 = sadd.s32 %s141, 1
    %p145 = scmp.eq.s32.totalorder %s23, 1
    %p146 = scmp.ne.s32.totalorder %s141, %s143
    %p147 = scmp.eq.s32.totalorder %s23, 0
    %p148 = por %p146, %p147
    %p149 = scmp.ne.s32.totalorder %s141, %s143
    %p150 = scmp.eq.s32.totalorder %s28, 1
    %p151 = por %p149, %p150
    %p152 = scmp.ne.s32.totalorder %s143, %s144
    %p153 = scmp.eq.s32.totalorder %s28, 0
    %p154 = por %p152, %p153
    %p155 = scmp.ne.s32.totalorder %s143, %s144
    %p156 = scmp.eq.s32.totalorder %s29, 1
    %p157 = por %p155, %p156
    %p159 = scmp.ne.s32.totalorder %s144, %s158
    %p160 = scmp.eq.s32.totalorder %s29, 0
    %p161 = por %p159, %p160
    %s163 = sadd.s32 %s162, 1
    %p166 = scmp.eq.s32.totalorder %s23, 1
    %p167 = scmp.ne.s32.totalorder %s162, %s164
    %p168 = scmp.eq.s32.totalorder %s23, 0
    %p169 = por %p167, %p168
    %p170 = scmp.ne.s32.totalorder %s162, %s164
    %p171 = scmp.eq.s32.totalorder %s28, 1
    %p172 = por %p170, %p171
    %p173 = scmp.ne.s32.totalorder %s164, %s165
    %p174 = scmp.eq.s32.totalorder %s28, 0
    %p175 = por %p173, %p174
    %p176 = scmp.ne.s32.totalorder %s164, %s165
    %p177 = scmp.eq.s32.totalorder %s29, 1
    %p178 = por %p176, %p177
    %p180 = scmp.ne.s32.totalorder %s165, %s179
    %p181 = scmp.eq.s32.totalorder %s29, 0
    %p182 = por %p180, %p181
    %s184 = sadd.s32 %s183, 1
    %p187 = scmp.eq.s32.totalorder %s23, 1
    %p188 = scmp.ne.s32.totalorder %s183, %s185
    %p189 = scmp.eq.s32.totalorder %s23, 0
    %p190 = por %p188, %p189
    %p191 = scmp.ne.s32.totalorder %s183, %s185
    %p192 = scmp.eq.s32.totalorder %s28, 1
    %p193 = por %p191, %p192
    %p194 = scmp.ne.s32.totalorder %s185, %s186
    %p195 = scmp.eq.s32.totalorder %s28, 0
    %p196 = por %p194, %p195
    %p197 = scmp.ne.s32.totalorder %s185, %s186
    %p198 = scmp.eq.s32.totalorder %s29, 1
    %p199 = por %p197, %p198
    %p201 = scmp.ne.s32.totalorder %s186, %s200
    %p202 = scmp.eq.s32.totalorder %s29, 0
    %p203 = por %p201, %p202
    %s205 = sadd.s32 %s204, 1
    %p208 = scmp.eq.s32.totalorder %s23, 1
    %p209 = scmp.ne.s32.totalorder %s204, %s206
    %p210 = scmp.eq.s32.totalorder %s23, 0
    %p211 = por %p209, %p210
    %p212 = scmp.ne.s32.totalorder %s204, %s206
    %p213 = scmp.eq.s32.totalorder %s28, 1
    %p214 = por %p212, %p213
    %p215 = scmp.ne.s32.totalorder %s206, %s207
    %p216 = scmp.eq.s32.totalorder %s28, 0
    %p217 = por %p215, %p216
    %p218 = scmp.ne.s32.totalorder %s206, %s207
    %p219 = scmp.eq.s32.totalorder %s29, 1
    %p220 = por %p218, %p219
    %p222 = scmp.ne.s32.totalorder %s207, %s221
    %p223 = scmp.eq.s32.totalorder %s29, 0
    %p224 = por %p222, %p223
    %s226 = sadd.s32 %s225, 1
    %p229 = scmp.eq.s32.totalorder %s23, 1
    %p230 = scmp.ne.s32.totalorder %s225, %s227
    %p231 = scmp.eq.s32.totalorder %s23, 0
    %p232 = por %p230, %p231
    %p233 = scmp.ne.s32.totalorder %s225, %s227
    %p234 = scmp.eq.s32.totalorder %s28, 1
    %p235 = por %p233, %p234
    %p236 = scmp.ne.s32.totalorder %s227, %s228
    %p237 = scmp.eq.s32.totalorder %s28, 0
    %p238 = por %p236, %p237
    %p239 = scmp.ne.s32.totalorder %s227, %s228
    %p240 = scmp.eq.s32.totalorder %s29, 1
    %p241 = por %p239, %p240
    %p243 = scmp.ne.s32.totalorder %s228, %s242
    %p244 = scmp.eq.s32.totalorder %s29, 0
    %p245 = por %p243, %p244
    %s247 = sadd.s32 %s246, 1
    %p250 = scmp.eq.s32.totalorder %s23, 1
    %p251 = scmp.ne.s32.totalorder %s246, %s248
    %p252 = scmp.eq.s32.totalorder %s23, 0
    %p253 = por %p251, %p252
    %p254 = scmp.ne.s32.totalorder %s246, %s248
    %p255 = scmp.eq.s32.totalorder %s28, 1
    %p256 = por %p254, %p255
    %p257 = scmp.ne.s32.totalorder %s248, %s249
    %p258 = scmp.eq.s32.totalorder %s28, 0
    %p259 = por %p257, %p258
    %p260 = scmp.ne.s32.totalorder %s248, %s249
    %p261 = scmp.eq.s32.totalorder %s29, 1
    %p262 = por %p260, %p261
    %p264 = scmp.ne.s32.totalorder %s249, %s263
    %p265 = scmp.eq.s32.totalorder %s29, 0
    %p266 = por %p264, %p265
    %s268 = sadd.s32 %s267, 1
    %p271 = scmp.eq.s32.totalorder %s23, 1
    %p272 = scmp.ne.s32.totalorder %s267, %s269
    %p273 = scmp.eq.s32.totalorder %s23, 0
    %p274 = por %p272, %p273
    %p275 = scmp.ne.s32.totalorder %s267, %s269
    %p276 = scmp.eq.s32.totalorder %s28, 1
    %p277 = por %p275, %p276
    %p278 = scmp.ne.s32.totalorder %s269, %s270
    %p279 = scmp.eq.s32.totalorder %s28, 0
    %p280 = por %p278, %p279
    %p281 = scmp.ne.s32.totalorder %s269, %s270
    %p282 = scmp.eq.s32.totalorder %s29, 1
    %p283 = por %p281, %p282
    %p285 = scmp.ne.s32.totalorder %s270, %s284
    %p286 = scmp.eq.s32.totalorder %s29, 0
    %p287 = por %p285, %p286
    %s289 = sadd.s32 %s288, 1
    %p292 = scmp.eq.s32.totalorder %s23, 1
    %p293 = scmp.ne.s32.totalorder %s288, %s290
    %p294 = scmp.eq.s32.totalorder %s23, 0
    %p295 = por %p293, %p294
    %p296 = scmp.ne.s32.totalorder %s288, %s290
    %p297 = scmp.eq.s32.totalorder %s28, 1
    %p298 = por %p296, %p297
    %p299 = scmp.ne.s32.totalorder %s290, %s291
    %p300 = scmp.eq.s32.totalorder %s28, 0
    %p301 = por %p299, %p300
    %p302 = scmp.ne.s32.totalorder %s290, %s291
    %p303 = scmp.eq.s32.totalorder %s29, 1
    %p304 = por %p302, %p303
    %p306 = scmp.ne.s32.totalorder %s291, %s305
    %p307 = scmp.eq.s32.totalorder %s29, 0
    %p308 = por %p306, %p307
    %s310 = sadd.s32 %s309, 1
    %p313 = scmp.eq.s32.totalorder %s23, 1
    %p314 = scmp.ne.s32.totalorder %s309, %s311
    %p315 = scmp.eq.s32.totalorder %s23, 0
    %p316 = por %p314, %p315
    %p317 = scmp.ne.s32.totalorder %s309, %s311
    %p318 = scmp.eq.s32.totalorder %s28, 1
    %p319 = por %p317, %p318
    %p320 = scmp.ne.s32.totalorder %s311, %s312
    %p321 = scmp.eq.s32.totalorder %s28, 0
    %p322 = por %p320, %p321
    %p323 = scmp.ne.s32.totalorder %s311, %s312
    %p324 = scmp.eq.s32.totalorder %s29, 1
    %p325 = por %p323, %p324
    %p327 = scmp.ne.s32.totalorder %s312, %s326
    %p328 = scmp.eq.s32.totalorder %s29, 0
    %p329 = por %p327, %p328
    %s331 = sadd.s32 %s330, 1
    %p334 = scmp.eq.s32.totalorder %s23, 1
    %p335 = scmp.ne.s32.totalorder %s330, %s332
    %p336 = scmp.eq.s32.totalorder %s23, 0
    %p337 = por %p335, %p336
    %p338 = scmp.ne.s32.totalorder %s330, %s332
    %p339 = scmp.eq.s32.totalorder %s28, 1
    %p340 = por %p338, %p339
    %p341 = scmp.ne.s32.totalorder %s332, %s333
    %p342 = scmp.eq.s32.totalorder %s28, 0
    %p343 = por %p341, %p342
    %p344 = scmp.ne.s32.totalorder %s332, %s333
    %p345 = scmp.eq.s32.totalorder %s29, 1
    %p346 = por %p344, %p345
    %p348 = scmp.ne.s32.totalorder %s333, %s347
    %p349 = scmp.eq.s32.totalorder %s29, 0
    %p350 = por %p348, %p349
    %s352 = sadd.s32 %s351, 1
    %p355 = scmp.eq.s32.totalorder %s23, 1
    %p356 = scmp.ne.s32.totalorder %s351, %s353
    %p357 = scmp.eq.s32.totalorder %s23, 0
    %p358 = por %p356, %p357
    %p359 = scmp.ne.s32.totalorder %s351, %s353
    %p360 = scmp.eq.s32.totalorder %s28, 1
    %p361 = por %p359, %p360
    %p362 = scmp.ne.s32.totalorder %s353, %s354
    %p363 = scmp.eq.s32.totalorder %s28, 0
    %p364 = por %p362, %p363
    %p365 = scmp.ne.s32.totalorder %s353, %s354
    %p366 = scmp.eq.s32.totalorder %s29, 1
    %p367 = por %p365, %p366
    %p369 = scmp.ne.s32.totalorder %s354, %s368
    %p370 = scmp.eq.s32.totalorder %s29, 0
    %p371 = por %p369, %p370
    %s373 = sadd.s32 %s372, 1
    %p376 = scmp.eq.s32.totalorder %s23, 1
    %p377 = scmp.ne.s32.totalorder %s372, %s374
    %p378 = scmp.eq.s32.totalorder %s23, 0
    %p379 = por %p377, %p378
    %p380 = scmp.ne.s32.totalorder %s372, %s374
    %p381 = scmp.eq.s32.totalorder %s28, 1
    %p382 = por %p380, %p381
    %p383 = scmp.ne.s32.totalorder %s374, %s375
    %p384 = scmp.eq.s32.totalorder %s28, 0
    %p385 = por %p383, %p384
    %p386 = scmp.ne.s32.totalorder %s374, %s375
    %p387 = scmp.eq.s32.totalorder %s29, 1
    %p388 = por %p386, %p387
    %p390 = scmp.ne.s32.totalorder %s375, %s389
    %p391 = scmp.eq.s32.totalorder %s29, 0
    %p392 = por %p390, %p391
    %s393 = ssub.s32 %s23, %s30
    %p394 = scmp.eq.s32.totalorder %s393, 0
    %s396 = sadd.s32 %s395, 1
    %s397 = scalar_select %p394, %s395, %s396
    %p400 = pneg %p394
    %p401 = scmp.eq.s32.totalorder %s23, 1
    %p402 = por %p400, %p401
    %p403 = scmp.ne.s32.totalorder %s395, %s398
    %p404 = scmp.eq.s32.totalorder %s23, 0
    %p405 = por %p403, %p404
    %p406 = scmp.ne.s32.totalorder %s395, %s398
    %p407 = scmp.eq.s32.totalorder %s28, 1
    %p408 = por %p406, %p407
    %p409 = scmp.ne.s32.totalorder %s398, %s399
    %p410 = scmp.eq.s32.totalorder %s28, 0
    %p411 = por %p409, %p410
    %p412 = scmp.ne.s32.totalorder %s398, %s399
    %p413 = scmp.eq.s32.totalorder %s29, 1
    %p414 = por %p412, %p413
    %p416 = scmp.ne.s32.totalorder %s399, %s415
    %p417 = scmp.eq.s32.totalorder %s29, 0
    %p418 = por %p416, %p417
    %p419 = scmp.le.s32.totalorder 1, %s23
    %p420 = scmp.lt.s32.totalorder %s23, 3
    %p421 = pnand %p419, %p420
    %p422 = pneg %p421
    // Predicated region
    $region9: #{_lambda_.1} parent=5 // pred_check
      _
    $region10: #{_lambda_.1} parent=5 // pred_check_branch
      %424 = sbr.rel (%p421) target = $region12
    $region11: #{_lambda_.1} parent=5 // pred_region
      %s425 = ssub.s32 %s23, 1
      // Predicated region
      $region13: #{_lambda_.1} parent=11 // pred_check
        %p426 = pneg %p70
      $region14: #{_lambda_.1} parent=11 // pred_check_branch
        %428 = sbr.rel (%p426) target = $region16
      $region15: #{_lambda_.1} parent=11 // pred_region
        _
      $region16: #{_lambda_.1} parent=11 // pred_fallthru
        _
      // Predicated region
      $region17: #{_lambda_.1} parent=11 // pred_check
        %p429 = pneg %p91
      $region18: #{_lambda_.1} parent=11 // pred_check_branch
        %431 = sbr.rel (%p429) target = $region20
      $region19: #{_lambda_.1} parent=11 // pred_region
        _
      $region20: #{_lambda_.1} parent=11 // pred_fallthru
        _
      // Predicated region
      $region21: #{_lambda_.1} parent=11 // pred_check
        %p432 = pneg %p112
      $region22: #{_lambda_.1} parent=11 // pred_check_branch
        %434 = sbr.rel (%p432) target = $region24
      $region23: #{_lambda_.1} parent=11 // pred_region
        _
      $region24: #{_lambda_.1} parent=11 // pred_fallthru
        _
      // Predicated region
      $region25: #{_lambda_.1} parent=11 // pred_check
        %p435 = pneg %p133
      $region26: #{_lambda_.1} parent=11 // pred_check_branch
        %437 = sbr.rel (%p435) target = $region28
      $region27: #{_lambda_.1} parent=11 // pred_region
        _
      $region28: #{_lambda_.1} parent=11 // pred_fallthru
        _
      // Predicated region
      $region29: #{_lambda_.1} parent=11 // pred_check
        %p438 = pneg %p154
      $region30: #{_lambda_.1} parent=11 // pred_check_branch
        %440 = sbr.rel (%p438) target = $region32
      $region31: #{_lambda_.1} parent=11 // pred_region
        _
      $region32: #{_lambda_.1} parent=11 // pred_fallthru
        _
      // Predicated region
      $region33: #{_lambda_.1} parent=11 // pred_check
        %p441 = pneg %p175
      $region34: #{_lambda_.1} parent=11 // pred_check_branch
        %443 = sbr.rel (%p441) target = $region36
      $region35: #{_lambda_.1} parent=11 // pred_region
        _
      $region36: #{_lambda_.1} parent=11 // pred_fallthru
        _
      // Predicated region
      $region37: #{_lambda_.1} parent=11 // pred_check
        %p444 = pneg %p196
      $region38: #{_lambda_.1} parent=11 // pred_check_branch
        %446 = sbr.rel (%p444) target = $region40
      $region39: #{_lambda_.1} parent=11 // pred_region
        _
      $region40: #{_lambda_.1} parent=11 // pred_fallthru
        _
      // Predicated region
      $region41: #{_lambda_.1} parent=11 // pred_check
        %p447 = pneg %p217
      $region42: #{_lambda_.1} parent=11 // pred_check_branch
        %449 = sbr.rel (%p447) target = $region44
      $region43: #{_lambda_.1} parent=11 // pred_region
        _
      $region44: #{_lambda_.1} parent=11 // pred_fallthru
        _
      // Predicated region
      $region45: #{_lambda_.1} parent=11 // pred_check
        %p450 = pneg %p238
      $region46: #{_lambda_.1} parent=11 // pred_check_branch
        %452 = sbr.rel (%p450) target = $region48
      $region47: #{_lambda_.1} parent=11 // pred_region
        _
      $region48: #{_lambda_.1} parent=11 // pred_fallthru
        _
      // Predicated region
      $region49: #{_lambda_.1} parent=11 // pred_check
        %p453 = pneg %p259
      $region50: #{_lambda_.1} parent=11 // pred_check_branch
        %455 = sbr.rel (%p453) target = $region52
      $region51: #{_lambda_.1} parent=11 // pred_region
        _
      $region52: #{_lambda_.1} parent=11 // pred_fallthru
        _
      // Predicated region
      $region53: #{_lambda_.1} parent=11 // pred_check
        %p456 = pneg %p280
      $region54: #{_lambda_.1} parent=11 // pred_check_branch
        %458 = sbr.rel (%p456) target = $region56
      $region55: #{_lambda_.1} parent=11 // pred_region
        _
      $region56: #{_lambda_.1} parent=11 // pred_fallthru
        _
      // Predicated region
      $region57: #{_lambda_.1} parent=11 // pred_check
        %p459 = pneg %p301
      $region58: #{_lambda_.1} parent=11 // pred_check_branch
        %461 = sbr.rel (%p459) target = $region60
      $region59: #{_lambda_.1} parent=11 // pred_region
        _
      $region60: #{_lambda_.1} parent=11 // pred_fallthru
        _
      // Predicated region
      $region61: #{_lambda_.1} parent=11 // pred_check
        %p462 = pneg %p322
      $region62: #{_lambda_.1} parent=11 // pred_check_branch
        %464 = sbr.rel (%p462) target = $region64
      $region63: #{_lambda_.1} parent=11 // pred_region
        _
      $region64: #{_lambda_.1} parent=11 // pred_fallthru
        _
      // Predicated region
      $region65: #{_lambda_.1} parent=11 // pred_check
        %p465 = pneg %p343
      $region66: #{_lambda_.1} parent=11 // pred_check_branch
        %467 = sbr.rel (%p465) target = $region68
      $region67: #{_lambda_.1} parent=11 // pred_region
        _
      $region68: #{_lambda_.1} parent=11 // pred_fallthru
        _
      // Predicated region
      $region69: #{_lambda_.1} parent=11 // pred_check
        %p468 = pneg %p364
      $region70: #{_lambda_.1} parent=11 // pred_check_branch
        %470 = sbr.rel (%p468) target = $region72
      $region71: #{_lambda_.1} parent=11 // pred_region
        _
      $region72: #{_lambda_.1} parent=11 // pred_fallthru
        _
      // Predicated region
      $region73: #{_lambda_.1} parent=11 // pred_check
        %p471 = pneg %p385
      $region74: #{_lambda_.1} parent=11 // pred_check_branch
        %473 = sbr.rel (%p471) target = $region76
      $region75: #{_lambda_.1} parent=11 // pred_region
        _
      $region76: #{_lambda_.1} parent=11 // pred_fallthru
        _
    $region12: #{_lambda_.1} parent=5 // pred_fallthru
      _
    %p474 = scmp.lt.s32.totalorder %s23, 2
    // Predicated region
    $region77: #{_lambda_.1} parent=5 // pred_check
      %p475 = pneg %p474
    $region78: #{_lambda_.1} parent=5 // pred_check_branch
      %477 = sbr.rel (%p475) target = $region80
    $region79: #{_lambda_.1} parent=5 // pred_region
      // Predicated region
      $region81: #{_lambda_.1} parent=79 // pred_check
        %p478 = pneg %p43
      $region82: #{_lambda_.1} parent=79 // pred_check_branch
        %480 = sbr.rel (%p478) target = $region84
      $region83: #{_lambda_.1} parent=79 // pred_region
        %s481 = smul.u32 2, %s23
        %p482 = scmp.lt.s32.totalorder %s481, 3
        %s483 = scalar_select %p482, %s481, 3
        %s484 = smul.addr %s483, 8
        %s485 = scalar_lea.vmem %s0, %s484
        %s486 = smul.u32 2, %s23
      $region84: #{_lambda_.1} parent=79 // pred_fallthru
        _
    $region80: #{_lambda_.1} parent=5 // pred_fallthru
      _
    %p487 = scmp.le.s32.totalorder 1, %s23
    %p488 = scmp.lt.s32.totalorder %s23, 3
    %p489 = pnand %p487, %p488
    %p490 = pneg %p489
    // Predicated region
    $region85: #{_lambda_.1} parent=5 // pred_check
      _
    $region86: #{_lambda_.1} parent=5 // pred_check_branch
      %492 = sbr.rel (%p489) target = $region88
    $region87: #{_lambda_.1} parent=5 // pred_region
      %s493 = ssub.s32 %s23, 1
      %s494 = smul.u32 2, %s28
      %p495 = scmp.lt.s32.totalorder %s494, 3
      %s496 = scalar_select %p495, %s494, 3
      %s497 = smul.addr %s496, 8
      %s498 = scalar_lea.vmem %s0, %s497
      %p499 = pneg %p49
      %p500 = pneg %p46
      %p501 = pneg %p70
      %p502 = pneg %p67
      %p503 = pneg %p91
      %p504 = pneg %p88
      %p505 = pneg %p112
      %p506 = pneg %p109
      %p507 = pneg %p133
      %p508 = pneg %p130
      %p509 = pneg %p154
      %p510 = pneg %p151
      %p511 = pneg %p175
      %p512 = pneg %p172
      %p513 = pneg %p196
      %p514 = pneg %p193
      %p515 = pneg %p217
      %p516 = pneg %p214
      %p517 = pneg %p238
      %p518 = pneg %p235
      %p519 = pneg %p259
      %p520 = pneg %p256
      %p521 = pneg %p280
      %p522 = pneg %p277
      %p523 = pneg %p301
      %p524 = pneg %p298
      %p525 = pneg %p322
      %p526 = pneg %p319
      %p527 = pneg %p343
      %p528 = pneg %p340
      %p529 = pneg %p364
      %p530 = pneg %p361
      %p531 = pneg %p385
      %p532 = pneg %p382
      %p533 = pneg %p411
      %p534 = pneg %p408
      %s535 = smul.u32 2, %s28
      %p536 = scmp.lt.s32.totalorder %s535, 3
      %s537 = scalar_select %p536, %s535, 3
      %s538 = smul.addr %s537, 8
      %s539 = scalar_lea.vmem %s17, %s538
      %s540 = smul.u32 2, %s28
      %p541 = scmp.lt.s32.totalorder %s540, 3
      %s542 = scalar_select %p541, %s540, 3
      %s543 = smul.addr %s542, 8
      %s544 = scalar_lea.vmem %s0, %s543
      %s545 = smul.u32 2, %s28
      %s546 = smul.u32 2, %s28
      %p547 = scmp.lt.s32.totalorder %s546, 3
      %s548 = scalar_select %p547, %s546, 3
      %s549 = smul.addr %s548, 8
      %s550 = scalar_lea.vmem %s17, %s549
      %s551 = smul.u32 2, %s28
      %v553 = vld [vmem:[%s544] sm:$0xff]
      %v554 = vld [vmem:[%s544 + $0x8] sm:$0xff]
      %v555 = vpack.c.bf16 %v554, %v553
      %v556 = vld [vmem:[%s1] sm:$0xff]
      %v557 = vld [vmem:[%s1 + $0x8] sm:$0xff]
      %v558 = vld [vmem:[%s1 + $0x10] sm:$0xff]
      %v559 = vld [vmem:[%s1 + $0x18] sm:$0xff]
      %v560 = vld [vmem:[%s1 + $0x20] sm:$0xff]
      %v561 = vld [vmem:[%s1 + $0x28] sm:$0xff]
      %v562 = vld [vmem:[%s1 + $0x30] sm:$0xff]
      %v563 = vld [vmem:[%s1 + $0x38] sm:$0xff]
      %v564 = vld [vmem:[%s1 + $0x40] sm:$0xff]
      %v565 = vld [vmem:[%s1 + $0x48] sm:$0xff]
      %v566 = vld [vmem:[%s1 + $0x50] sm:$0xff]
      %v567 = vld [vmem:[%s1 + $0x58] sm:$0xff]
      %v568 = vld [vmem:[%s1 + $0x60] sm:$0xff]
      %v569 = vld [vmem:[%s1 + $0x68] sm:$0xff]
      %v570 = vld [vmem:[%s1 + $0x70] sm:$0xff]
      %v571 = vld [vmem:[%s1 + $0x78] sm:$0xff]
      %v572 = vld [vmem:[%s2] sm:$0x3]
      %v574 = vlaneseq
      %v575 = vshrl.u32 %v574, 7
      %v576 = vsub.s32 0, %v575
      %v577 = vrot.slane %v572, %v576
      %v578 = vlaneseq
      %v579 = vshrl.u32 %v578, 7
      %v580 = vsub.s32 1, %v579
      %v581 = vrot.slane %v572, %v580
      %v600 = vunpack.c.l.b16 %v556
      %v601 = vunpack.c.h.b16 %v556
      %v602 = vunpack.c.l.b16 %v557
      %v603 = vunpack.c.h.b16 %v557
      %v604 = vunpack.c.l.b16 %v558
      %v605 = vunpack.c.h.b16 %v558
      %v606 = vunpack.c.l.b16 %v559
      %v607 = vunpack.c.h.b16 %v559
      %v608 = vunpack.c.l.b16 %v560
      %v609 = vunpack.c.h.b16 %v560
      %v610 = vunpack.c.l.b16 %v561
      %v611 = vunpack.c.h.b16 %v561
      %v612 = vunpack.c.l.b16 %v562
      %v613 = vunpack.c.h.b16 %v562
      %v614 = vunpack.c.l.b16 %v563
      %v615 = vunpack.c.h.b16 %v563
      %v616 = vunpack.c.l.b16 %v564
      %v617 = vunpack.c.h.b16 %v564
      %v618 = vunpack.c.l.b16 %v565
      %v619 = vunpack.c.h.b16 %v565
      %v620 = vunpack.c.l.b16 %v566
      %v621 = vunpack.c.h.b16 %v566
      %v622 = vunpack.c.l.b16 %v567
      %v623 = vunpack.c.h.b16 %v567
      %v624 = vunpack.c.l.b16 %v568
      %v625 = vunpack.c.h.b16 %v568
      %v626 = vunpack.c.l.b16 %v569
      %v627 = vunpack.c.h.b16 %v569
      %v628 = vunpack.c.l.b16 %v570
      %v629 = vunpack.c.h.b16 %v570
      %v630 = vunpack.c.l.b16 %v571
      %v631 = vunpack.c.h.b16 %v571
      %v632 = vpack.c.b16 %v602, %v600
      %v633 = vpack.c.b16 %v603, %v601
      %v634 = vpack.c.b16 %v606, %v604
      %v635 = vpack.c.b16 %v607, %v605
      %v636 = vpack.c.b16 %v610, %v608
      %v637 = vpack.c.b16 %v611, %v609
      %v638 = vpack.c.b16 %v614, %v612
      %v639 = vpack.c.b16 %v615, %v613
      %v640 = vpack.c.b16 %v618, %v616
      %v641 = vpack.c.b16 %v619, %v617
      %v642 = vpack.c.b16 %v622, %v620
      %v643 = vpack.c.b16 %v623, %v621
      %v644 = vpack.c.b16 %v626, %v624
      %v645 = vpack.c.b16 %v627, %v625
      %v646 = vpack.c.b16 %v630, %v628
      %v647 = vpack.c.b16 %v631, %v629
      %664 = vmatprep.subr.bf16.mxu0 %v633
      %665 = vmatpush1.bf16.msra.mxu0 %v632
      %666 = vmatprep.subr.bf16.mxu0 %v635
      %667 = vmatpush1.bf16.msra.mxu0 %v634
      %668 = vmatprep.subr.bf16.mxu0 %v637
      %669 = vmatpush1.bf16.msra.mxu0 %v636
      %670 = vmatprep.subr.bf16.mxu0 %v639
      %671 = vmatpush1.bf16.msra.mxu0 %v638
      %672 = vmatprep.subr.bf16.mxu0 %v641
      %673 = vmatpush1.bf16.msra.mxu0 %v640
      %674 = vmatprep.subr.bf16.mxu0 %v643
      %675 = vmatpush1.bf16.msra.mxu0 %v642
      %676 = vmatprep.subr.bf16.mxu0 %v645
      %677 = vmatpush1.bf16.msra.mxu0 %v644
      %678 = vmatprep.subr.bf16.mxu0 %v647
      %679 = vmatpush1.bf16.msra.mxu0 %v646
      %680 = vmatprep.subr.bf16.mxu0 0
      %681 = vmatpush1.bf16.msra.mxu0 0
      %682 = vmatprep.subr.bf16.mxu0 0
      %683 = vmatpush1.bf16.msra.mxu0 0
      %684 = vmatprep.subr.bf16.mxu0 0
      %685 = vmatpush1.bf16.msra.mxu0 0
      %686 = vmatprep.subr.bf16.mxu0 0
      %687 = vmatpush1.bf16.msra.mxu0 0
      %688 = vmatprep.subr.bf16.mxu0 0
      %689 = vmatpush1.bf16.msra.mxu0 0
      %690 = vmatprep.subr.bf16.mxu0 0
      %691 = vmatpush1.bf16.msra.mxu0 0
      %692 = vmatprep.subr.bf16.mxu0 0
      %693 = vmatpush1.bf16.msra.mxu0 0
      %694 = vmatprep.subr.bf16.mxu0 0
      %695 = vmatpush1.bf16.msra.mxu0 0
      %696 = vmatprep.mubr.bf16.mxu0 0
      %697 = vmatmul.mubr.bf16.gmra.mrb[0].mxu0 %v555
      %v698 = vpop.f32.mrb[0].mxu0
      %v699 = vadd.f32 %v577, %v698
      %v700 = vpop.f32.mrb[0].mxu0
      %v701 = vadd.f32 %v581, %v700
      %v702 = vpop.f32.mrb[0].mxu0
      %v703 = vadd.f32 %v577, %v702
      %v704 = vpop.f32.mrb[0].mxu0
      %v705 = vadd.f32 %v581, %v704
      %706 = vdwg.mxu0
      loop: start=0, step=1, limit=9
      $region89: #{_lambda_.1} parent=87 // loop_pre_header
        _
      $region90: #{_lambda_.1} parent=87 // loop_header
        %s708 = sphi 0, %s712
        %p709 = scmp.ge.s32.totalorder %s708, 9
        %v713 = vphi %v699, %v3186
        %v714 = vphi %v701, %v3187
        %v715 = vphi %v703, %v3188
        %v716 = vphi %v705, %v3189
      $region91: #{_lambda_.1} parent=87 // loop_header_branch
        %711 = sbr.rel (%p709) target = $region95
      $region92: #{_lambda_.1} parent=87 // loop_body
        %v717 = vpack.c.bf16 %v715, %v713
        %v718 = vpack.c.bf16 %v716, %v714
        %s719 = smul.u32 %s708, 192
        %s720 = smul.addr %s719, 4
        %s721 = scalar_lea.vmem %s3, %s720
        %v722 = vld [vmem:[%s721] sm:$0xff]
        %v723 = vld [vmem:[%s721 + $0x8] sm:$0xff]
        %v724 = vld [vmem:[%s721 + $0x10] sm:$0xff]
        %v725 = vld [vmem:[%s721 + $0x18] sm:$0xff]
        %v726 = vld [vmem:[%s721 + $0x20] sm:$0xff]
        %v727 = vld [vmem:[%s721 + $0x28] sm:$0xff]
        %v728 = vld [vmem:[%s721 + $0x30] sm:$0xff]
        %v729 = vld [vmem:[%s721 + $0x38] sm:$0xff]
        %v730 = vld [vmem:[%s721 + $0x40] sm:$0xff]
        %v731 = vld [vmem:[%s721 + $0x48] sm:$0xff]
        %v732 = vld [vmem:[%s721 + $0x50] sm:$0xff]
        %v733 = vld [vmem:[%s721 + $0x58] sm:$0xff]
        %v734 = vld [vmem:[%s721 + $0x60] sm:$0xff]
        %v735 = vld [vmem:[%s721 + $0x68] sm:$0xff]
        %v736 = vld [vmem:[%s721 + $0x70] sm:$0xff]
        %v737 = vld [vmem:[%s721 + $0x78] sm:$0xff]
        %v738 = vld [vmem:[%s721 + $0x80] sm:$0xff]
        %v739 = vld [vmem:[%s721 + $0x88] sm:$0xff]
        %v740 = vld [vmem:[%s721 + $0x90] sm:$0xff]
        %v741 = vld [vmem:[%s721 + $0x98] sm:$0xff]
        %v742 = vld [vmem:[%s721 + $0xa0] sm:$0xff]
        %v743 = vld [vmem:[%s721 + $0xa8] sm:$0xff]
        %v744 = vld [vmem:[%s721 + $0xb0] sm:$0xff]
        %v745 = vld [vmem:[%s721 + $0xb8] sm:$0xff]
        %v746 = vld [vmem:[%s721 + $0xc0] sm:$0xff]
        %v747 = vld [vmem:[%s721 + $0xc8] sm:$0xff]
        %v748 = vld [vmem:[%s721 + $0xd0] sm:$0xff]
        %v749 = vld [vmem:[%s721 + $0xd8] sm:$0xff]
        %v750 = vld [vmem:[%s721 + $0xe0] sm:$0xff]
        %v751 = vld [vmem:[%s721 + $0xe8] sm:$0xff]
        %v752 = vld [vmem:[%s721 + $0xf0] sm:$0xff]
        %v753 = vld [vmem:[%s721 + $0xf8] sm:$0xff]
        %v754 = vld [vmem:[%s721 + $0x100] sm:$0xff]
        %v755 = vld [vmem:[%s721 + $0x108] sm:$0xff]
        %v756 = vld [vmem:[%s721 + $0x110] sm:$0xff]
        %v757 = vld [vmem:[%s721 + $0x118] sm:$0xff]
        %v758 = vld [vmem:[%s721 + $0x120] sm:$0xff]
        %v759 = vld [vmem:[%s721 + $0x128] sm:$0xff]
        %v760 = vld [vmem:[%s721 + $0x130] sm:$0xff]
        %v761 = vld [vmem:[%s721 + $0x138] sm:$0xff]
        %v762 = vld [vmem:[%s721 + $0x140] sm:$0xff]
        %v763 = vld [vmem:[%s721 + $0x148] sm:$0xff]
        %v764 = vld [vmem:[%s721 + $0x150] sm:$0xff]
        %v765 = vld [vmem:[%s721 + $0x158] sm:$0xff]
        %v766 = vld [vmem:[%s721 + $0x160] sm:$0xff]
        %v767 = vld [vmem:[%s721 + $0x168] sm:$0xff]
        %v768 = vld [vmem:[%s721 + $0x170] sm:$0xff]
        %v769 = vld [vmem:[%s721 + $0x178] sm:$0xff]
        %v770 = vld [vmem:[%s721 + $0x180] sm:$0xff]
        %v771 = vld [vmem:[%s721 + $0x188] sm:$0xff]
        %v772 = vld [vmem:[%s721 + $0x190] sm:$0xff]
        %v773 = vld [vmem:[%s721 + $0x198] sm:$0xff]
        %v774 = vld [vmem:[%s721 + $0x1a0] sm:$0xff]
        %v775 = vld [vmem:[%s721 + $0x1a8] sm:$0xff]
        %v776 = vld [vmem:[%s721 + $0x1b0] sm:$0xff]
        %v777 = vld [vmem:[%s721 + $0x1b8] sm:$0xff]
        %v778 = vld [vmem:[%s721 + $0x1c0] sm:$0xff]
        %v779 = vld [vmem:[%s721 + $0x1c8] sm:$0xff]
        %v780 = vld [vmem:[%s721 + $0x1d0] sm:$0xff]
        %v781 = vld [vmem:[%s721 + $0x1d8] sm:$0xff]
        %v782 = vld [vmem:[%s721 + $0x1e0] sm:$0xff]
        %v783 = vld [vmem:[%s721 + $0x1e8] sm:$0xff]
        %v784 = vld [vmem:[%s721 + $0x1f0] sm:$0xff]
        %v785 = vld [vmem:[%s721 + $0x1f8] sm:$0xff]
        %v786 = vld [vmem:[%s721 + $0x200] sm:$0xff]
        %v787 = vld [vmem:[%s721 + $0x208] sm:$0xff]
        %v788 = vld [vmem:[%s721 + $0x210] sm:$0xff]
        %v789 = vld [vmem:[%s721 + $0x218] sm:$0xff]
        %v790 = vld [vmem:[%s721 + $0x220] sm:$0xff]
        %v791 = vld [vmem:[%s721 + $0x228] sm:$0xff]
        %v792 = vld [vmem:[%s721 + $0x230] sm:$0xff]
        %v793 = vld [vmem:[%s721 + $0x238] sm:$0xff]
        %v794 = vld [vmem:[%s721 + $0x240] sm:$0xff]
        %v795 = vld [vmem:[%s721 + $0x248] sm:$0xff]
        %v796 = vld [vmem:[%s721 + $0x250] sm:$0xff]
        %v797 = vld [vmem:[%s721 + $0x258] sm:$0xff]
        %v798 = vld [vmem:[%s721 + $0x260] sm:$0xff]
        %v799 = vld [vmem:[%s721 + $0x268] sm:$0xff]
        %v800 = vld [vmem:[%s721 + $0x270] sm:$0xff]
        %v801 = vld [vmem:[%s721 + $0x278] sm:$0xff]
        %v802 = vld [vmem:[%s721 + $0x280] sm:$0xff]
        %v803 = vld [vmem:[%s721 + $0x288] sm:$0xff]
        %v804 = vld [vmem:[%s721 + $0x290] sm:$0xff]
        %v805 = vld [vmem:[%s721 + $0x298] sm:$0xff]
        %v806 = vld [vmem:[%s721 + $0x2a0] sm:$0xff]
        %v807 = vld [vmem:[%s721 + $0x2a8] sm:$0xff]
        %v808 = vld [vmem:[%s721 + $0x2b0] sm:$0xff]
        %v809 = vld [vmem:[%s721 + $0x2b8] sm:$0xff]
        %v810 = vld [vmem:[%s721 + $0x2c0] sm:$0xff]
        %v811 = vld [vmem:[%s721 + $0x2c8] sm:$0xff]
        %v812 = vld [vmem:[%s721 + $0x2d0] sm:$0xff]
        %v813 = vld [vmem:[%s721 + $0x2d8] sm:$0xff]
        %v814 = vld [vmem:[%s721 + $0x2e0] sm:$0xff]
        %v815 = vld [vmem:[%s721 + $0x2e8] sm:$0xff]
        %v816 = vld [vmem:[%s721 + $0x2f0] sm:$0xff]
        %v817 = vld [vmem:[%s721 + $0x2f8] sm:$0xff]
        %s818 = smul.u32 %s708, 6
        %s819 = scalar_lea.vmem %s4, %s818
        %v820 = vld [vmem:[%s819] sm:$0x3f]
        %v822 = vlaneseq
        %v823 = vshrl.u32 %v822, 7
        %v824 = vsub.s32 0, %v823
        %v825 = vrot.slane %v820, %v824
        %v826 = vlaneseq
        %v827 = vshrl.u32 %v826, 7
        %v828 = vsub.s32 1, %v827
        %v829 = vrot.slane %v820, %v828
        %v830 = vlaneseq
        %v831 = vshrl.u32 %v830, 7
        %v832 = vsub.s32 2, %v831
        %v833 = vrot.slane %v820, %v832
        %v834 = vlaneseq
        %v835 = vshrl.u32 %v834, 7
        %v836 = vsub.s32 3, %v835
        %v837 = vrot.slane %v820, %v836
        %v838 = vlaneseq
        %v839 = vshrl.u32 %v838, 7
        %v840 = vsub.s32 4, %v839
        %v841 = vrot.slane %v820, %v840
        %v842 = vlaneseq
        %v843 = vshrl.u32 %v842, 7
        %v844 = vsub.s32 5, %v843
        %v845 = vrot.slane %v820, %v844
        %v948 = vunpack.c.l.b16 %v722
        %v949 = vunpack.c.h.b16 %v722
        %v950 = vunpack.c.l.b16 %v723
        %v951 = vunpack.c.h.b16 %v723
        %v952 = vunpack.c.l.b16 %v724
        %v953 = vunpack.c.h.b16 %v724
        %v954 = vunpack.c.l.b16 %v725
        %v955 = vunpack.c.h.b16 %v725
        %v956 = vunpack.c.l.b16 %v726
        %v957 = vunpack.c.h.b16 %v726
        %v958 = vunpack.c.l.b16 %v727
        %v959 = vunpack.c.h.b16 %v727
        %v960 = vunpack.c.l.b16 %v728
        %v961 = vunpack.c.h.b16 %v728
        %v962 = vunpack.c.l.b16 %v729
        %v963 = vunpack.c.h.b16 %v729
        %v964 = vunpack.c.l.b16 %v730
        %v965 = vunpack.c.h.b16 %v730
        %v966 = vunpack.c.l.b16 %v731
        %v967 = vunpack.c.h.b16 %v731
        %v968 = vunpack.c.l.b16 %v732
        %v969 = vunpack.c.h.b16 %v732
        %v970 = vunpack.c.l.b16 %v733
        %v971 = vunpack.c.h.b16 %v733
        %v972 = vunpack.c.l.b16 %v734
        %v973 = vunpack.c.h.b16 %v734
        %v974 = vunpack.c.l.b16 %v735
        %v975 = vunpack.c.h.b16 %v735
        %v976 = vunpack.c.l.b16 %v736
        %v977 = vunpack.c.h.b16 %v736
        %v978 = vunpack.c.l.b16 %v737
        %v979 = vunpack.c.h.b16 %v737
        %v980 = vunpack.c.l.b16 %v738
        %v981 = vunpack.c.h.b16 %v738
        %v982 = vunpack.c.l.b16 %v739
        %v983 = vunpack.c.h.b16 %v739
        %v984 = vunpack.c.l.b16 %v740
        %v985 = vunpack.c.h.b16 %v740
        %v986 = vunpack.c.l.b16 %v741
        %v987 = vunpack.c.h.b16 %v741
        %v988 = vunpack.c.l.b16 %v742
        %v989 = vunpack.c.h.b16 %v742
        %v990 = vunpack.c.l.b16 %v743
        %v991 = vunpack.c.h.b16 %v743
        %v992 = vunpack.c.l.b16 %v744
        %v993 = vunpack.c.h.b16 %v744
        %v994 = vunpack.c.l.b16 %v745
        %v995 = vunpack.c.h.b16 %v745
        %v996 = vunpack.c.l.b16 %v746
        %v997 = vunpack.c.h.b16 %v746
        %v998 = vunpack.c.l.b16 %v747
        %v999 = vunpack.c.h.b16 %v747
        %v1000 = vunpack.c.l.b16 %v748
        %v1001 = vunpack.c.h.b16 %v748
        %v1002 = vunpack.c.l.b16 %v749
        %v1003 = vunpack.c.h.b16 %v749
        %v1004 = vunpack.c.l.b16 %v750
        %v1005 = vunpack.c.h.b16 %v750
        %v1006 = vunpack.c.l.b16 %v751
        %v1007 = vunpack.c.h.b16 %v751
        %v1008 = vunpack.c.l.b16 %v752
        %v1009 = vunpack.c.h.b16 %v752
        %v1010 = vunpack.c.l.b16 %v753
        %v1011 = vunpack.c.h.b16 %v753
        %v1012 = vunpack.c.l.b16 %v754
        %v1013 = vunpack.c.h.b16 %v754
        %v1014 = vunpack.c.l.b16 %v755
        %v1015 = vunpack.c.h.b16 %v755
        %v1016 = vunpack.c.l.b16 %v756
        %v1017 = vunpack.c.h.b16 %v756
        %v1018 = vunpack.c.l.b16 %v757
        %v1019 = vunpack.c.h.b16 %v757
        %v1020 = vunpack.c.l.b16 %v758
        %v1021 = vunpack.c.h.b16 %v758
        %v1022 = vunpack.c.l.b16 %v759
        %v1023 = vunpack.c.h.b16 %v759
        %v1024 = vunpack.c.l.b16 %v760
        %v1025 = vunpack.c.h.b16 %v760
        %v1026 = vunpack.c.l.b16 %v761
        %v1027 = vunpack.c.h.b16 %v761
        %v1028 = vunpack.c.l.b16 %v762
        %v1029 = vunpack.c.h.b16 %v762
        %v1030 = vunpack.c.l.b16 %v763
        %v1031 = vunpack.c.h.b16 %v763
        %v1032 = vunpack.c.l.b16 %v764
        %v1033 = vunpack.c.h.b16 %v764
        %v1034 = vunpack.c.l.b16 %v765
        %v1035 = vunpack.c.h.b16 %v765
        %v1036 = vunpack.c.l.b16 %v766
        %v1037 = vunpack.c.h.b16 %v766
        %v1038 = vunpack.c.l.b16 %v767
        %v1039 = vunpack.c.h.b16 %v767
        %v1040 = vunpack.c.l.b16 %v768
        %v1041 = vunpack.c.h.b16 %v768
        %v1042 = vunpack.c.l.b16 %v769
        %v1043 = vunpack.c.h.b16 %v769
        %v1044 = vunpack.c.l.b16 %v770
        %v1045 = vunpack.c.h.b16 %v770
        %v1046 = vunpack.c.l.b16 %v771
        %v1047 = vunpack.c.h.b16 %v771
        %v1048 = vunpack.c.l.b16 %v772
        %v1049 = vunpack.c.h.b16 %v772
        %v1050 = vunpack.c.l.b16 %v773
        %v1051 = vunpack.c.h.b16 %v773
        %v1052 = vunpack.c.l.b16 %v774
        %v1053 = vunpack.c.h.b16 %v774
        %v1054 = vunpack.c.l.b16 %v775
        %v1055 = vunpack.c.h.b16 %v775
        %v1056 = vunpack.c.l.b16 %v776
        %v1057 = vunpack.c.h.b16 %v776
        %v1058 = vunpack.c.l.b16 %v777
        %v1059 = vunpack.c.h.b16 %v777
        %v1060 = vunpack.c.l.b16 %v778
        %v1061 = vunpack.c.h.b16 %v778
        %v1062 = vunpack.c.l.b16 %v779
        %v1063 = vunpack.c.h.b16 %v779
        %v1064 = vunpack.c.l.b16 %v780
        %v1065 = vunpack.c.h.b16 %v780
        %v1066 = vunpack.c.l.b16 %v781
        %v1067 = vunpack.c.h.b16 %v781
        %v1068 = vunpack.c.l.b16 %v782
        %v1069 = vunpack.c.h.b16 %v782
        %v1070 = vunpack.c.l.b16 %v783
        %v1071 = vunpack.c.h.b16 %v783
        %v1072 = vunpack.c.l.b16 %v784
        %v1073 = vunpack.c.h.b16 %v784
        %v1074 = vunpack.c.l.b16 %v785
        %v1075 = vunpack.c.h.b16 %v785
        %v1076 = vunpack.c.l.b16 %v786
        %v1077 = vunpack.c.h.b16 %v786
        %v1078 = vunpack.c.l.b16 %v787
        %v1079 = vunpack.c.h.b16 %v787
        %v1080 = vunpack.c.l.b16 %v788
        %v1081 = vunpack.c.h.b16 %v788
        %v1082 = vunpack.c.l.b16 %v789
        %v1083 = vunpack.c.h.b16 %v789
        %v1084 = vunpack.c.l.b16 %v790
        %v1085 = vunpack.c.h.b16 %v790
        %v1086 = vunpack.c.l.b16 %v791
        %v1087 = vunpack.c.h.b16 %v791
        %v1088 = vunpack.c.l.b16 %v792
        %v1089 = vunpack.c.h.b16 %v792
        %v1090 = vunpack.c.l.b16 %v793
        %v1091 = vunpack.c.h.b16 %v793
        %v1092 = vunpack.c.l.b16 %v794
        %v1093 = vunpack.c.h.b16 %v794
        %v1094 = vunpack.c.l.b16 %v795
        %v1095 = vunpack.c.h.b16 %v795
        %v1096 = vunpack.c.l.b16 %v796
        %v1097 = vunpack.c.h.b16 %v796
        %v1098 = vunpack.c.l.b16 %v797
        %v1099 = vunpack.c.h.b16 %v797
        %v1100 = vunpack.c.l.b16 %v798
        %v1101 = vunpack.c.h.b16 %v798
        %v1102 = vunpack.c.l.b16 %v799
        %v1103 = vunpack.c.h.b16 %v799
        %v1104 = vunpack.c.l.b16 %v800
        %v1105 = vunpack.c.h.b16 %v800
        %v1106 = vunpack.c.l.b16 %v801
        %v1107 = vunpack.c.h.b16 %v801
        %v1108 = vunpack.c.l.b16 %v802
        %v1109 = vunpack.c.h.b16 %v802
        %v1110 = vunpack.c.l.b16 %v803
        %v1111 = vunpack.c.h.b16 %v803
        %v1112 = vunpack.c.l.b16 %v804
        %v1113 = vunpack.c.h.b16 %v804
        %v1114 = vunpack.c.l.b16 %v805
        %v1115 = vunpack.c.h.b16 %v805
        %v1116 = vunpack.c.l.b16 %v806
        %v1117 = vunpack.c.h.b16 %v806
        %v1118 = vunpack.c.l.b16 %v807
        %v1119 = vunpack.c.h.b16 %v807
        %v1120 = vunpack.c.l.b16 %v808
        %v1121 = vunpack.c.h.b16 %v808
        %v1122 = vunpack.c.l.b16 %v809
        %v1123 = vunpack.c.h.b16 %v809
        %v1124 = vunpack.c.l.b16 %v810
        %v1125 = vunpack.c.h.b16 %v810
        %v1126 = vunpack.c.l.b16 %v811
        %v1127 = vunpack.c.h.b16 %v811
        %v1128 = vunpack.c.l.b16 %v812
        %v1129 = vunpack.c.h.b16 %v812
        %v1130 = vunpack.c.l.b16 %v813
        %v1131 = vunpack.c.h.b16 %v813
        %v1132 = vunpack.c.l.b16 %v814
        %v1133 = vunpack.c.h.b16 %v814
        %v1134 = vunpack.c.l.b16 %v815
        %v1135 = vunpack.c.h.b16 %v815
        %v1136 = vunpack.c.l.b16 %v816
        %v1137 = vunpack.c.h.b16 %v816
        %v1138 = vunpack.c.l.b16 %v817
        %v1139 = vunpack.c.h.b16 %v817
        %v1140 = vpack.c.b16 %v954, %v948
        %v1141 = vpack.c.b16 %v955, %v949
        %v1142 = vpack.c.b16 %v956, %v950
        %v1143 = vpack.c.b16 %v957, %v951
        %v1144 = vpack.c.b16 %v958, %v952
        %v1145 = vpack.c.b16 %v959, %v953
        %v1146 = vpack.c.b16 %v966, %v960
        %v1147 = vpack.c.b16 %v967, %v961
        %v1148 = vpack.c.b16 %v968, %v962
        %v1149 = vpack.c.b16 %v969, %v963
        %v1150 = vpack.c.b16 %v970, %v964
        %v1151 = vpack.c.b16 %v971, %v965
        %v1152 = vpack.c.b16 %v978, %v972
        %v1153 = vpack.c.b16 %v979, %v973
        %v1154 = vpack.c.b16 %v980, %v974
        %v1155 = vpack.c.b16 %v981, %v975
        %v1156 = vpack.c.b16 %v982, %v976
        %v1157 = vpack.c.b16 %v983, %v977
        %v1158 = vpack.c.b16 %v990, %v984
        %v1159 = vpack.c.b16 %v991, %v985
        %v1160 = vpack.c.b16 %v992, %v986
        %v1161 = vpack.c.b16 %v993, %v987
        %v1162 = vpack.c.b16 %v994, %v988
        %v1163 = vpack.c.b16 %v995, %v989
        %v1164 = vpack.c.b16 %v1002, %v996
        %v1165 = vpack.c.b16 %v1003, %v997
        %v1166 = vpack.c.b16 %v1004, %v998
        %v1167 = vpack.c.b16 %v1005, %v999
        %v1168 = vpack.c.b16 %v1006, %v1000
        %v1169 = vpack.c.b16 %v1007, %v1001
        %v1170 = vpack.c.b16 %v1014, %v1008
        %v1171 = vpack.c.b16 %v1015, %v1009
        %v1172 = vpack.c.b16 %v1016, %v1010
        %v1173 = vpack.c.b16 %v1017, %v1011
        %v1174 = vpack.c.b16 %v1018, %v1012
        %v1175 = vpack.c.b16 %v1019, %v1013
        %v1176 = vpack.c.b16 %v1026, %v1020
        %v1177 = vpack.c.b16 %v1027, %v1021
        %v1178 = vpack.c.b16 %v1028, %v1022
        %v1179 = vpack.c.b16 %v1029, %v1023
        %v1180 = vpack.c.b16 %v1030, %v1024
        %v1181 = vpack.c.b16 %v1031, %v1025
        %v1182 = vpack.c.b16 %v1038, %v1032
        %v1183 = vpack.c.b16 %v1039, %v1033
        %v1184 = vpack.c.b16 %v1040, %v1034
        %v1185 = vpack.c.b16 %v1041, %v1035
        %v1186 = vpack.c.b16 %v1042, %v1036
        %v1187 = vpack.c.b16 %v1043, %v1037
        %v1188 = vpack.c.b16 %v1050, %v1044
        %v1189 = vpack.c.b16 %v1051, %v1045
        %v1190 = vpack.c.b16 %v1052, %v1046
        %v1191 = vpack.c.b16 %v1053, %v1047
        %v1192 = vpack.c.b16 %v1054, %v1048
        %v1193 = vpack.c.b16 %v1055, %v1049
        %v1194 = vpack.c.b16 %v1062, %v1056
        %v1195 = vpack.c.b16 %v1063, %v1057
        %v1196 = vpack.c.b16 %v1064, %v1058
        %v1197 = vpack.c.b16 %v1065, %v1059
        %v1198 = vpack.c.b16 %v1066, %v1060
        %v1199 = vpack.c.b16 %v1067, %v1061
        %v1200 = vpack.c.b16 %v1074, %v1068
        %v1201 = vpack.c.b16 %v1075, %v1069
        %v1202 = vpack.c.b16 %v1076, %v1070
        %v1203 = vpack.c.b16 %v1077, %v1071
        %v1204 = vpack.c.b16 %v1078, %v1072
        %v1205 = vpack.c.b16 %v1079, %v1073
        %v1206 = vpack.c.b16 %v1086, %v1080
        %v1207 = vpack.c.b16 %v1087, %v1081
        %v1208 = vpack.c.b16 %v1088, %v1082
        %v1209 = vpack.c.b16 %v1089, %v1083
        %v1210 = vpack.c.b16 %v1090, %v1084
        %v1211 = vpack.c.b16 %v1091, %v1085
        %v1212 = vpack.c.b16 %v1098, %v1092
        %v1213 = vpack.c.b16 %v1099, %v1093
        %v1214 = vpack.c.b16 %v1100, %v1094
        %v1215 = vpack.c.b16 %v1101, %v1095
        %v1216 = vpack.c.b16 %v1102, %v1096
        %v1217 = vpack.c.b16 %v1103, %v1097
        %v1218 = vpack.c.b16 %v1110, %v1104
        %v1219 = vpack.c.b16 %v1111, %v1105
        %v1220 = vpack.c.b16 %v1112, %v1106
        %v1221 = vpack.c.b16 %v1113, %v1107
        %v1222 = vpack.c.b16 %v1114, %v1108
        %v1223 = vpack.c.b16 %v1115, %v1109
        %v1224 = vpack.c.b16 %v1122, %v1116
        %v1225 = vpack.c.b16 %v1123, %v1117
        %v1226 = vpack.c.b16 %v1124, %v1118
        %v1227 = vpack.c.b16 %v1125, %v1119
        %v1228 = vpack.c.b16 %v1126, %v1120
        %v1229 = vpack.c.b16 %v1127, %v1121
        %v1230 = vpack.c.b16 %v1134, %v1128
        %v1231 = vpack.c.b16 %v1135, %v1129
        %v1232 = vpack.c.b16 %v1136, %v1130
        %v1233 = vpack.c.b16 %v1137, %v1131
        %v1234 = vpack.c.b16 %v1138, %v1132
        %v1235 = vpack.c.b16 %v1139, %v1133
        %1332 = vmatprep.subr.bf16.mxu0 %v1141
        %1333 = vmatpush1.bf16.msra.mxu0 %v1140
        %1334 = vmatprep.subr.bf16.mxu0 %v1147
        %1335 = vmatpush1.bf16.msra.mxu0 %v1146
        %1336 = vmatprep.subr.bf16.mxu0 %v1153
        %1337 = vmatpush1.bf16.msra.mxu0 %v1152
        %1338 = vmatprep.subr.bf16.mxu0 %v1159
        %1339 = vmatpush1.bf16.msra.mxu0 %v1158
        %1340 = vmatprep.subr.bf16.mxu0 %v1165
        %1341 = vmatpush1.bf16.msra.mxu0 %v1164
        %1342 = vmatprep.subr.bf16.mxu0 %v1171
        %1343 = vmatpush1.bf16.msra.mxu0 %v1170
        %1344 = vmatprep.subr.bf16.mxu0 %v1177
        %1345 = vmatpush1.bf16.msra.mxu0 %v1176
        %1346 = vmatprep.subr.bf16.mxu0 %v1183
        %1347 = vmatpush1.bf16.msra.mxu0 %v1182
        %1348 = vmatprep.subr.bf16.mxu0 %v1189
        %1349 = vmatpush1.bf16.msra.mxu0 %v1188
        %1350 = vmatprep.subr.bf16.mxu0 %v1195
        %1351 = vmatpush1.bf16.msra.mxu0 %v1194
        %1352 = vmatprep.subr.bf16.mxu0 %v1201
        %1353 = vmatpush1.bf16.msra.mxu0 %v1200
        %1354 = vmatprep.subr.bf16.mxu0 %v1207
        %1355 = vmatpush1.bf16.msra.mxu0 %v1206
        %1356 = vmatprep.subr.bf16.mxu0 %v1213
        %1357 = vmatpush1.bf16.msra.mxu0 %v1212
        %1358 = vmatprep.subr.bf16.mxu0 %v1219
        %1359 = vmatpush1.bf16.msra.mxu0 %v1218
        %1360 = vmatprep.subr.bf16.mxu0 %v1225
        %1361 = vmatpush1.bf16.msra.mxu0 %v1224
        %1362 = vmatprep.subr.bf16.mxu0 %v1231
        %1363 = vmatpush1.bf16.msra.mxu0 %v1230
        %1364 = vmatprep.mubr.bf16.mxu0 %v718
        %1365 = vmatmul.mubr.bf16.gmra.mrb[0].mxu0 %v717
        %v1366 = vpop.f32.mrb[0].mxu0
        %v1367 = vadd.f32 %v825, %v1366
        %v1368 = vpop.f32.mrb[0].mxu0
        %v1369 = vadd.f32 %v829, %v1368
        %v1370 = vpop.f32.mrb[0].mxu0
        %v1371 = vadd.f32 %v825, %v1370
        %v1372 = vpop.f32.mrb[0].mxu0
        %v1373 = vadd.f32 %v829, %v1372
        %1374 = vdwg.mxu0
        %1375 = vmatprep.subr.bf16.mxu0 %v1143
        %1376 = vmatpush1.bf16.msra.mxu0 %v1142
        %1377 = vmatprep.subr.bf16.mxu0 %v1149
        %1378 = vmatpush1.bf16.msra.mxu0 %v1148
        %1379 = vmatprep.subr.bf16.mxu0 %v1155
        %1380 = vmatpush1.bf16.msra.mxu0 %v1154
        %1381 = vmatprep.subr.bf16.mxu0 %v1161
        %1382 = vmatpush1.bf16.msra.mxu0 %v1160
        %1383 = vmatprep.subr.bf16.mxu0 %v1167
        %1384 = vmatpush1.bf16.msra.mxu0 %v1166
        %1385 = vmatprep.subr.bf16.mxu0 %v1173
        %1386 = vmatpush1.bf16.msra.mxu0 %v1172
        %1387 = vmatprep.subr.bf16.mxu0 %v1179
        %1388 = vmatpush1.bf16.msra.mxu0 %v1178
        %1389 = vmatprep.subr.bf16.mxu0 %v1185
        %1390 = vmatpush1.bf16.msra.mxu0 %v1184
        %1391 = vmatprep.subr.bf16.mxu0 %v1191
        %1392 = vmatpush1.bf16.msra.mxu0 %v1190
        %1393 = vmatprep.subr.bf16.mxu0 %v1197
        %1394 = vmatpush1.bf16.msra.mxu0 %v1196
        %1395 = vmatprep.subr.bf16.mxu0 %v1203
        %1396 = vmatpush1.bf16.msra.mxu0 %v1202
        %1397 = vmatprep.subr.bf16.mxu0 %v1209
        %1398 = vmatpush1.bf16.msra.mxu0 %v1208
        %1399 = vmatprep.subr.bf16.mxu0 %v1215
        %1400 = vmatpush1.bf16.msra.mxu0 %v1214
        %1401 = vmatprep.subr.bf16.mxu0 %v1221
        %1402 = vmatpush1.bf16.msra.mxu0 %v1220
        %1403 = vmatprep.subr.bf16.mxu0 %v1227
        %1404 = vmatpush1.bf16.msra.mxu0 %v1226
        %1405 = vmatprep.subr.bf16.mxu0 %v1233
        %1406 = vmatpush1.bf16.msra.mxu0 %v1232
        %1407 = vmatprep.mubr.bf16.mxu0 %v718
        %1408 = vmatmul.mubr.bf16.gmra.mrb[0].mxu0 %v717
        %v1409 = vpop.f32.mrb[0].mxu0
        %v1410 = vadd.f32 %v833, %v1409
        %v1411 = vpop.f32.mrb[0].mxu0
        %v1412 = vadd.f32 %v837, %v1411
        %v1413 = vpop.f32.mrb[0].mxu0
        %v1414 = vadd.f32 %v833, %v1413
        %v1415 = vpop.f32.mrb[0].mxu0
        %v1416 = vadd.f32 %v837, %v1415
        %1417 = vdwg.mxu0
        %1418 = vmatprep.subr.bf16.mxu0 %v1145
        %1419 = vmatpush1.bf16.msra.mxu0 %v1144
        %1420 = vmatprep.subr.bf16.mxu0 %v1151
        %1421 = vmatpush1.bf16.msra.mxu0 %v1150
        %1422 = vmatprep.subr.bf16.mxu0 %v1157
        %1423 = vmatpush1.bf16.msra.mxu0 %v1156
        %1424 = vmatprep.subr.bf16.mxu0 %v1163
        %1425 = vmatpush1.bf16.msra.mxu0 %v1162
        %1426 = vmatprep.subr.bf16.mxu0 %v1169
        %1427 = vmatpush1.bf16.msra.mxu0 %v1168
        %1428 = vmatprep.subr.bf16.mxu0 %v1175
        %1429 = vmatpush1.bf16.msra.mxu0 %v1174
        %1430 = vmatprep.subr.bf16.mxu0 %v1181
        %1431 = vmatpush1.bf16.msra.mxu0 %v1180
        %1432 = vmatprep.subr.bf16.mxu0 %v1187
        %1433 = vmatpush1.bf16.msra.mxu0 %v1186
        %1434 = vmatprep.subr.bf16.mxu0 %v1193
        %1435 = vmatpush1.bf16.msra.mxu0 %v1192
        %1436 = vmatprep.subr.bf16.mxu0 %v1199
        %1437 = vmatpush1.bf16.msra.mxu0 %v1198
        %1438 = vmatprep.subr.bf16.mxu0 %v1205
        %1439 = vmatpush1.bf16.msra.mxu0 %v1204
        %1440 = vmatprep.subr.bf16.mxu0 %v1211
        %1441 = vmatpush1.bf16.msra.mxu0 %v1210
        %1442 = vmatprep.subr.bf16.mxu0 %v1217
        %1443 = vmatpush1.bf16.msra.mxu0 %v1216
        %1444 = vmatprep.subr.bf16.mxu0 %v1223
        %1445 = vmatpush1.bf16.msra.mxu0 %v1222
        %1446 = vmatprep.subr.bf16.mxu0 %v1229
        %1447 = vmatpush1.bf16.msra.mxu0 %v1228
        %1448 = vmatprep.subr.bf16.mxu0 %v1235
        %1449 = vmatpush1.bf16.msra.mxu0 %v1234
        %1450 = vmatprep.mubr.bf16.mxu0 %v718
        %1451 = vmatmul.mubr.bf16.gmra.mrb[0].mxu0 %v717
        %v1452 = vpop.f32.mrb[0].mxu0
        %v1453 = vadd.f32 %v841, %v1452
        %v1454 = vpop.f32.mrb[0].mxu0
        %v1455 = vadd.f32 %v845, %v1454
        %v1456 = vpop.f32.mrb[0].mxu0
        %v1457 = vadd.f32 %v841, %v1456
        %v1458 = vpop.f32.mrb[0].mxu0
        %v1459 = vadd.f32 %v845, %v1458
        %1460 = vdwg.mxu0
        %s1461 = smul.u32 %s708, 64
        %s1462 = smul.addr %s1461, 4
        %s1463 = scalar_lea.vmem %s5, %s1462
        %v1464 = vld [vmem:[%s1463] sm:$0xff]
        %v1465 = vld [vmem:[%s1463 + $0x8] sm:$0xff]
        %v1466 = vld [vmem:[%s1463 + $0x10] sm:$0xff]
        %v1467 = vld [vmem:[%s1463 + $0x18] sm:$0xff]
        %v1468 = vld [vmem:[%s1463 + $0x20] sm:$0xff]
        %v1469 = vld [vmem:[%s1463 + $0x28] sm:$0xff]
        %v1470 = vld [vmem:[%s1463 + $0x30] sm:$0xff]
        %v1471 = vld [vmem:[%s1463 + $0x38] sm:$0xff]
        %v1472 = vld [vmem:[%s1463 + $0x40] sm:$0xff]
        %v1473 = vld [vmem:[%s1463 + $0x48] sm:$0xff]
        %v1474 = vld [vmem:[%s1463 + $0x50] sm:$0xff]
        %v1475 = vld [vmem:[%s1463 + $0x58] sm:$0xff]
        %v1476 = vld [vmem:[%s1463 + $0x60] sm:$0xff]
        %v1477 = vld [vmem:[%s1463 + $0x68] sm:$0xff]
        %v1478 = vld [vmem:[%s1463 + $0x70] sm:$0xff]
        %v1479 = vld [vmem:[%s1463 + $0x78] sm:$0xff]
        %v1480 = vld [vmem:[%s1463 + $0x80] sm:$0xff]
        %v1481 = vld [vmem:[%s1463 + $0x88] sm:$0xff]
        %v1482 = vld [vmem:[%s1463 + $0x90] sm:$0xff]
        %v1483 = vld [vmem:[%s1463 + $0x98] sm:$0xff]
        %v1484 = vld [vmem:[%s1463 + $0xa0] sm:$0xff]
        %v1485 = vld [vmem:[%s1463 + $0xa8] sm:$0xff]
        %v1486 = vld [vmem:[%s1463 + $0xb0] sm:$0xff]
        %v1487 = vld [vmem:[%s1463 + $0xb8] sm:$0xff]
        %v1488 = vld [vmem:[%s1463 + $0xc0] sm:$0xff]
        %v1489 = vld [vmem:[%s1463 + $0xc8] sm:$0xff]
        %v1490 = vld [vmem:[%s1463 + $0xd0] sm:$0xff]
        %v1491 = vld [vmem:[%s1463 + $0xd8] sm:$0xff]
        %v1492 = vld [vmem:[%s1463 + $0xe0] sm:$0xff]
        %v1493 = vld [vmem:[%s1463 + $0xe8] sm:$0xff]
        %v1494 = vld [vmem:[%s1463 + $0xf0] sm:$0xff]
        %v1495 = vld [vmem:[%s1463 + $0xf8] sm:$0xff]
        %v1496 = vpack.c.bf16 %v1371, %v1367
        %v1497 = vpack.c.bf16 %v1414, %v1410
        %1498 = vmatprep.subr.bf16.mxu0 0
        %1499 = vmatpush1.bf16.xpose.msra.mxu0 %v1497
        %1500 = vmatprep.subr.bf16.mxu0 0
        %1501 = vmatpush1.bf16.xpose.msra.mxu0 0
        %1502 = vmatprep.subr.bf16.mxu0 0
        %1503 = vmatpush1.bf16.xpose.msra.mxu0 0
        %1504 = vmatprep.subr.bf16.mxu0 0
        %1505 = vmatpush1.bf16.xpose.msra.mxu0 0
        %1506 = vmatprep.subr.bf16.mxu0 0
        %1507 = vmatpush1.bf16.xpose.msra.mxu0 0
        %1508 = vmatprep.subr.bf16.mxu0 0
        %1509 = vmatpush1.bf16.xpose.msra.mxu0 0
        %1510 = vmatprep.subr.bf16.mxu0 0
        %1511 = vmatpush1.bf16.xpose.msra.mxu0 0
        %1512 = vmatprep.subr.bf16.mxu0 0
        %1513 = vmatpush1.bf16.xpose.msra.mxu0 0
        %1514 = vmatprep.subr.bf16.mxu0 0
        %1515 = vmatpush1.bf16.xpose.msra.mxu0 0
        %1516 = vmatprep.subr.bf16.mxu0 0
        %1517 = vmatpush1.bf16.xpose.msra.mxu0 0
        %1518 = vmatprep.subr.bf16.mxu0 0
        %1519 = vmatpush1.bf16.xpose.msra.mxu0 0
        %1520 = vmatprep.subr.bf16.mxu0 0
        %1521 = vmatpush1.bf16.xpose.msra.mxu0 0
        %1522 = vmatprep.subr.bf16.mxu0 0
        %1523 = vmatpush1.bf16.xpose.msra.mxu0 0
        %1524 = vmatprep.subr.bf16.mxu0 0
        %1525 = vmatpush1.bf16.xpose.msra.mxu0 0
        %1526 = vmatprep.subr.bf16.mxu0 0
        %1527 = vmatpush1.bf16.xpose.msra.mxu0 0
        %1528 = vmatprep.subr.bf16.mxu0 0
        %1529 = vmatpush1.bf16.xpose.msra.mxu0 0
        %1530 = vmatprep.mubr.bf16.mxu0 0
        %1531 = vmatmul.mubr.bf16.gmra.mrb[0].mxu0 %v1496
        %v1532 = vpop.f32.mrb[0].mxu0
        %v1533 = vadd.f32 0.0, %v1532
        %v1534 = vpop.f32.mrb[0].mxu0
        %v1535 = vpop.f32.mrb[0].mxu0
        %v1536 = vadd.f32 0.0, %v1535
        %v1537 = vpop.f32.mrb[0].mxu0
        %1538 = vdwg.mxu0
        %v1539 = vmul.f32 %v1533, 0.088388346
        %v1540 = vmul.f32 %v1536, 0.088388346
        %vm1541 = vcmask 130048
        %v1542 = vsel %vm1541, %v1539, -inf
        %1543 = vmax.xlane.f32.xlu0 %v1542
        %v1544 = vpop.xlane.xlu0 %1543
        %v1545 = vsel %vm1541, %v1540, -inf
        %1546 = vmax.xlane.f32.xlu0 %v1545
        %v1547 = vpop.xlane.xlu0 %1546
        %v1548 = vsub.f32 %v1539, %v1544
        %v1549 = vsub.f32 %v1540, %v1547
        %v1550 = vmul.f32 %v1548, 1.442695
        %v1551 = vpow.pop %v1550
        %v1552 = vmul.f32 %v1549, 1.442695
        %v1553 = vpow.pop %v1552
        %v1554 = vsel %vm1541, %v1551, 0.0
        %1555 = vadd.xlane.f32.xlu0 %v1554
        %v1556 = vpop.xlane.xlu0 %1555
        %v1557 = vsel %vm1541, %v1553, 0.0
        %1558 = vadd.xlane.f32.xlu0 %v1557
        %v1559 = vpop.xlane.xlu0 %1558
        %v1560 = vrcp.pop %v1556
        %v1561 = vrcp.pop %v1559
        %v1562 = vmul.f32 %v1551, %v1560
        %v1563 = vmul.f32 %v1553, %v1561
        %v1564 = vpack.c.bf16 %v1563, %v1562
        %v1565 = vpack.c.bf16 %v1457, %v1453
        %v1567 = vsel %vm1541, %v1564, 0
        %1569 = vmatprep.subr.bf16.mxu0 0
        %1570 = vmatpush1.bf16.msra.mxu0 %v1565
        %1571 = vmatprep.subr.bf16.mxu0 0
        %1572 = vmatpush1.bf16.msra.mxu0 0
        %1573 = vmatprep.subr.bf16.mxu0 0
        %1574 = vmatpush1.bf16.msra.mxu0 0
        %1575 = vmatprep.subr.bf16.mxu0 0
        %1576 = vmatpush1.bf16.msra.mxu0 0
        %1577 = vmatprep.subr.bf16.mxu0 0
        %1578 = vmatpush1.bf16.msra.mxu0 0
        %1579 = vmatprep.subr.bf16.mxu0 0
        %1580 = vmatpush1.bf16.msra.mxu0 0
        %1581 = vmatprep.subr.bf16.mxu0 0
        %1582 = vmatpush1.bf16.msra.mxu0 0
        %1583 = vmatprep.subr.bf16.mxu0 0
        %1584 = vmatpush1.bf16.msra.mxu0 0
        %1585 = vmatprep.subr.bf16.mxu0 0
        %1586 = vmatpush1.bf16.msra.mxu0 0
        %1587 = vmatprep.subr.bf16.mxu0 0
        %1588 = vmatpush1.bf16.msra.mxu0 0
        %1589 = vmatprep.subr.bf16.mxu0 0
        %1590 = vmatpush1.bf16.msra.mxu0 0
        %1591 = vmatprep.subr.bf16.mxu0 0
        %1592 = vmatpush1.bf16.msra.mxu0 0
        %1593 = vmatprep.subr.bf16.mxu0 0
        %1594 = vmatpush1.bf16.msra.mxu0 0
        %1595 = vmatprep.subr.bf16.mxu0 0
        %1596 = vmatpush1.bf16.msra.mxu0 0
        %1597 = vmatprep.subr.bf16.mxu0 0
        %1598 = vmatpush1.bf16.msra.mxu0 0
        %1599 = vmatprep.subr.bf16.mxu0 0
        %1600 = vmatpush1.bf16.msra.mxu0 0
        %1601 = vmatprep.mubr.bf16.mxu0 0
        %1602 = vmatmul.mubr.bf16.gmra.mrb[0].mxu0 %v1567
        %v1603 = vpop.f32.mrb[0].mxu0
        %v1604 = vadd.f32 0.0, %v1603
        %v1605 = vpop.f32.mrb[0].mxu0
        %v1606 = vpop.f32.mrb[0].mxu0
        %v1607 = vadd.f32 0.0, %v1606
        %v1608 = vpop.f32.mrb[0].mxu0
        %1609 = vdwg.mxu0
        %v1610 = vpack.c.bf16 %v1607, %v1604
        %v1611 = vpack.c.bf16 %v1373, %v1369
        %v1612 = vpack.c.bf16 %v1416, %v1412
        %1613 = vmatprep.subr.bf16.mxu0 0
        %1614 = vmatpush1.bf16.xpose.msra.mxu0 %v1612
        %1615 = vmatprep.subr.bf16.mxu0 0
        %1616 = vmatpush1.bf16.xpose.msra.mxu0 0
        %1617 = vmatprep.subr.bf16.mxu0 0
        %1618 = vmatpush1.bf16.xpose.msra.mxu0 0
        %1619 = vmatprep.subr.bf16.mxu0 0
        %1620 = vmatpush1.bf16.xpose.msra.mxu0 0
        %1621 = vmatprep.subr.bf16.mxu0 0
        %1622 = vmatpush1.bf16.xpose.msra.mxu0 0
        %1623 = vmatprep.subr.bf16.mxu0 0
        %1624 = vmatpush1.bf16.xpose.msra.mxu0 0
        %1625 = vmatprep.subr.bf16.mxu0 0
        %1626 = vmatpush1.bf16.xpose.msra.mxu0 0
        %1627 = vmatprep.subr.bf16.mxu0 0
        %1628 = vmatpush1.bf16.xpose.msra.mxu0 0
        %1629 = vmatprep.subr.bf16.mxu0 0
        %1630 = vmatpush1.bf16.xpose.msra.mxu0 0
        %1631 = vmatprep.subr.bf16.mxu0 0
        %1632 = vmatpush1.bf16.xpose.msra.mxu0 0
        %1633 = vmatprep.subr.bf16.mxu0 0
        %1634 = vmatpush1.bf16.xpose.msra.mxu0 0
        %1635 = vmatprep.subr.bf16.mxu0 0
        %1636 = vmatpush1.bf16.xpose.msra.mxu0 0
        %1637 = vmatprep.subr.bf16.mxu0 0
        %1638 = vmatpush1.bf16.xpose.msra.mxu0 0
        %1639 = vmatprep.subr.bf16.mxu0 0
        %1640 = vmatpush1.bf16.xpose.msra.mxu0 0
        %1641 = vmatprep.subr.bf16.mxu0 0
        %1642 = vmatpush1.bf16.xpose.msra.mxu0 0
        %1643 = vmatprep.subr.bf16.mxu0 0
        %1644 = vmatpush1.bf16.xpose.msra.mxu0 0
        %1645 = vmatprep.mubr.bf16.mxu0 0
        %1646 = vmatmul.mubr.bf16.gmra.mrb[0].mxu0 %v1611
        %v1647 = vpop.f32.mrb[0].mxu0
        %v1648 = vadd.f32 0.0, %v1647
        %v1649 = vpop.f32.mrb[0].mxu0
        %v1650 = vpop.f32.mrb[0].mxu0
        %v1651 = vadd.f32 0.0, %v1650
        %v1652 = vpop.f32.mrb[0].mxu0
        %1653 = vdwg.mxu0
        %v1654 = vmul.f32 %v1648, 0.088388346
        %v1655 = vmul.f32 %v1651, 0.088388346
        %v1656 = vsel %vm1541, %v1654, -inf
        %1657 = vmax.xlane.f32.xlu0 %v1656
        %v1658 = vpop.xlane.xlu0 %1657
        %v1659 = vsel %vm1541, %v1655, -inf
        %1660 = vmax.xlane.f32.xlu0 %v1659
        %v1661 = vpop.xlane.xlu0 %1660
        %v1662 = vsub.f32 %v1654, %v1658
        %v1663 = vsub.f32 %v1655, %v1661
        %v1664 = vmul.f32 %v1662, 1.442695
        %v1665 = vpow.pop %v1664
        %v1666 = vmul.f32 %v1663, 1.442695
        %v1667 = vpow.pop %v1666
        %v1668 = vsel %vm1541, %v1665, 0.0
        %1669 = vadd.xlane.f32.xlu0 %v1668
        %v1670 = vpop.xlane.xlu0 %1669
        %v1671 = vsel %vm1541, %v1667, 0.0
        %1672 = vadd.xlane.f32.xlu0 %v1671
        %v1673 = vpop.xlane.xlu0 %1672
        %v1674 = vrcp.pop %v1670
        %v1675 = vrcp.pop %v1673
        %v1676 = vmul.f32 %v1665, %v1674
        %v1677 = vmul.f32 %v1667, %v1675
        %v1678 = vpack.c.bf16 %v1677, %v1676
        %v1679 = vpack.c.bf16 %v1459, %v1455
        %v1681 = vsel %vm1541, %v1678, 0
        %1683 = vmatprep.subr.bf16.mxu0 0
        %1684 = vmatpush1.bf16.msra.mxu0 %v1679
        %1685 = vmatprep.subr.bf16.mxu0 0
        %1686 = vmatpush1.bf16.msra.mxu0 0
        %1687 = vmatprep.subr.bf16.mxu0 0
        %1688 = vmatpush1.bf16.msra.mxu0 0
        %1689 = vmatprep.subr.bf16.mxu0 0
        %1690 = vmatpush1.bf16.msra.mxu0 0
        %1691 = vmatprep.subr.bf16.mxu0 0
        %1692 = vmatpush1.bf16.msra.mxu0 0
        %1693 = vmatprep.subr.bf16.mxu0 0
        %1694 = vmatpush1.bf16.msra.mxu0 0
        %1695 = vmatprep.subr.bf16.mxu0 0
        %1696 = vmatpush1.bf16.msra.mxu0 0
        %1697 = vmatprep.subr.bf16.mxu0 0
        %1698 = vmatpush1.bf16.msra.mxu0 0
        %1699 = vmatprep.subr.bf16.mxu0 0
        %1700 = vmatpush1.bf16.msra.mxu0 0
        %1701 = vmatprep.subr.bf16.mxu0 0
        %1702 = vmatpush1.bf16.msra.mxu0 0
        %1703 = vmatprep.subr.bf16.mxu0 0
        %1704 = vmatpush1.bf16.msra.mxu0 0
        %1705 = vmatprep.subr.bf16.mxu0 0
        %1706 = vmatpush1.bf16.msra.mxu0 0
        %1707 = vmatprep.subr.bf16.mxu0 0
        %1708 = vmatpush1.bf16.msra.mxu0 0
        %1709 = vmatprep.subr.bf16.mxu0 0
        %1710 = vmatpush1.bf16.msra.mxu0 0
        %1711 = vmatprep.subr.bf16.mxu0 0
        %1712 = vmatpush1.bf16.msra.mxu0 0
        %1713 = vmatprep.subr.bf16.mxu0 0
        %1714 = vmatpush1.bf16.msra.mxu0 0
        %1715 = vmatprep.mubr.bf16.mxu0 0
        %1716 = vmatmul.mubr.bf16.gmra.mrb[0].mxu0 %v1681
        %v1717 = vpop.f32.mrb[0].mxu0
        %v1718 = vadd.f32 0.0, %v1717
        %v1719 = vpop.f32.mrb[0].mxu0
        %v1720 = vpop.f32.mrb[0].mxu0
        %v1721 = vadd.f32 0.0, %v1720
        %v1722 = vpop.f32.mrb[0].mxu0
        %1723 = vdwg.mxu0
        %v1724 = vpack.c.bf16 %v1721, %v1718
        %v1741 = vunpack.c.l.b16 %v1480
        %v1742 = vunpack.c.h.b16 %v1480
        %v1743 = vunpack.c.l.b16 %v1481
        %v1744 = vunpack.c.h.b16 %v1481
        %v1745 = vunpack.c.l.b16 %v1482
        %v1746 = vunpack.c.h.b16 %v1482
        %v1747 = vunpack.c.l.b16 %v1483
        %v1748 = vunpack.c.h.b16 %v1483
        %v1749 = vunpack.c.l.b16 %v1484
        %v1750 = vunpack.c.h.b16 %v1484
        %v1751 = vunpack.c.l.b16 %v1485
        %v1752 = vunpack.c.h.b16 %v1485
        %v1753 = vunpack.c.l.b16 %v1486
        %v1754 = vunpack.c.h.b16 %v1486
        %v1755 = vunpack.c.l.b16 %v1487
        %v1756 = vunpack.c.h.b16 %v1487
        %v1757 = vunpack.c.l.b16 %v1488
        %v1758 = vunpack.c.h.b16 %v1488
        %v1759 = vunpack.c.l.b16 %v1489
        %v1760 = vunpack.c.h.b16 %v1489
        %v1761 = vunpack.c.l.b16 %v1490
        %v1762 = vunpack.c.h.b16 %v1490
        %v1763 = vunpack.c.l.b16 %v1491
        %v1764 = vunpack.c.h.b16 %v1491
        %v1765 = vunpack.c.l.b16 %v1492
        %v1766 = vunpack.c.h.b16 %v1492
        %v1767 = vunpack.c.l.b16 %v1493
        %v1768 = vunpack.c.h.b16 %v1493
        %v1769 = vunpack.c.l.b16 %v1494
        %v1770 = vunpack.c.h.b16 %v1494
        %v1771 = vunpack.c.l.b16 %v1495
        %v1772 = vunpack.c.h.b16 %v1495
        %v1773 = vpack.c.b16 %v1743, %v1741
        %v1774 = vpack.c.b16 %v1744, %v1742
        %v1775 = vpack.c.b16 %v1747, %v1745
        %v1776 = vpack.c.b16 %v1748, %v1746
        %v1777 = vpack.c.b16 %v1751, %v1749
        %v1778 = vpack.c.b16 %v1752, %v1750
        %v1779 = vpack.c.b16 %v1755, %v1753
        %v1780 = vpack.c.b16 %v1756, %v1754
        %v1781 = vpack.c.b16 %v1759, %v1757
        %v1782 = vpack.c.b16 %v1760, %v1758
        %v1783 = vpack.c.b16 %v1763, %v1761
        %v1784 = vpack.c.b16 %v1764, %v1762
        %v1785 = vpack.c.b16 %v1767, %v1765
        %v1786 = vpack.c.b16 %v1768, %v1766
        %v1787 = vpack.c.b16 %v1771, %v1769
        %v1788 = vpack.c.b16 %v1772, %v1770
        %1805 = vmatprep.subr.bf16.mxu0 %v1774
        %1806 = vmatpush1.bf16.msra.mxu0 %v1773
        %1807 = vmatprep.subr.bf16.mxu0 %v1776
        %1808 = vmatpush1.bf16.msra.mxu0 %v1775
        %1809 = vmatprep.subr.bf16.mxu0 %v1778
        %1810 = vmatpush1.bf16.msra.mxu0 %v1777
        %1811 = vmatprep.subr.bf16.mxu0 %v1780
        %1812 = vmatpush1.bf16.msra.mxu0 %v1779
        %1813 = vmatprep.subr.bf16.mxu0 %v1782
        %1814 = vmatpush1.bf16.msra.mxu0 %v1781
        %1815 = vmatprep.subr.bf16.mxu0 %v1784
        %1816 = vmatpush1.bf16.msra.mxu0 %v1783
        %1817 = vmatprep.subr.bf16.mxu0 %v1786
        %1818 = vmatpush1.bf16.msra.mxu0 %v1785
        %1819 = vmatprep.subr.bf16.mxu0 %v1788
        %1820 = vmatpush1.bf16.msra.mxu0 %v1787
        %1821 = vmatprep.subr.bf16.mxu0 0
        %1822 = vmatpush1.bf16.msra.mxu0 0
        %1823 = vmatprep.subr.bf16.mxu0 0
        %1824 = vmatpush1.bf16.msra.mxu0 0
        %1825 = vmatprep.subr.bf16.mxu0 0
        %1826 = vmatpush1.bf16.msra.mxu0 0
        %1827 = vmatprep.subr.bf16.mxu0 0
        %1828 = vmatpush1.bf16.msra.mxu0 0
        %1829 = vmatprep.subr.bf16.mxu0 0
        %1830 = vmatpush1.bf16.msra.mxu0 0
        %1831 = vmatprep.subr.bf16.mxu0 0
        %1832 = vmatpush1.bf16.msra.mxu0 0
        %1833 = vmatprep.subr.bf16.mxu0 0
        %1834 = vmatpush1.bf16.msra.mxu0 0
        %1835 = vmatprep.subr.bf16.mxu0 0
        %1836 = vmatpush1.bf16.msra.mxu0 0
        %1837 = vmatprep.mubr.bf16.mxu0 0
        %1838 = vmatmul.mubr.bf16.gmra.mrb[0].mxu0 %v1724
        %v1839 = vpop.f32.mrb[0].mxu0
        %v1840 = vadd.f32 0.0, %v1839
        %v1841 = vpop.f32.mrb[0].mxu0
        %v1842 = vadd.f32 0.0, %v1841
        %v1843 = vpop.f32.mrb[0].mxu0
        %v1844 = vadd.f32 0.0, %v1843
        %v1845 = vpop.f32.mrb[0].mxu0
        %v1846 = vadd.f32 0.0, %v1845
        %1847 = vdwg.mxu0
        %v1864 = vunpack.c.l.b16 %v1464
        %v1865 = vunpack.c.h.b16 %v1464
        %v1866 = vunpack.c.l.b16 %v1465
        %v1867 = vunpack.c.h.b16 %v1465
        %v1868 = vunpack.c.l.b16 %v1466
        %v1869 = vunpack.c.h.b16 %v1466
        %v1870 = vunpack.c.l.b16 %v1467
        %v1871 = vunpack.c.h.b16 %v1467
        %v1872 = vunpack.c.l.b16 %v1468
        %v1873 = vunpack.c.h.b16 %v1468
        %v1874 = vunpack.c.l.b16 %v1469
        %v1875 = vunpack.c.h.b16 %v1469
        %v1876 = vunpack.c.l.b16 %v1470
        %v1877 = vunpack.c.h.b16 %v1470
        %v1878 = vunpack.c.l.b16 %v1471
        %v1879 = vunpack.c.h.b16 %v1471
        %v1880 = vunpack.c.l.b16 %v1472
        %v1881 = vunpack.c.h.b16 %v1472
        %v1882 = vunpack.c.l.b16 %v1473
        %v1883 = vunpack.c.h.b16 %v1473
        %v1884 = vunpack.c.l.b16 %v1474
        %v1885 = vunpack.c.h.b16 %v1474
        %v1886 = vunpack.c.l.b16 %v1475
        %v1887 = vunpack.c.h.b16 %v1475
        %v1888 = vunpack.c.l.b16 %v1476
        %v1889 = vunpack.c.h.b16 %v1476
        %v1890 = vunpack.c.l.b16 %v1477
        %v1891 = vunpack.c.h.b16 %v1477
        %v1892 = vunpack.c.l.b16 %v1478
        %v1893 = vunpack.c.h.b16 %v1478
        %v1894 = vunpack.c.l.b16 %v1479
        %v1895 = vunpack.c.h.b16 %v1479
        %v1896 = vpack.c.b16 %v1866, %v1864
        %v1897 = vpack.c.b16 %v1867, %v1865
        %v1898 = vpack.c.b16 %v1870, %v1868
        %v1899 = vpack.c.b16 %v1871, %v1869
        %v1900 = vpack.c.b16 %v1874, %v1872
        %v1901 = vpack.c.b16 %v1875, %v1873
        %v1902 = vpack.c.b16 %v1878, %v1876
        %v1903 = vpack.c.b16 %v1879, %v1877
        %v1904 = vpack.c.b16 %v1882, %v1880
        %v1905 = vpack.c.b16 %v1883, %v1881
        %v1906 = vpack.c.b16 %v1886, %v1884
        %v1907 = vpack.c.b16 %v1887, %v1885
        %v1908 = vpack.c.b16 %v1890, %v1888
        %v1909 = vpack.c.b16 %v1891, %v1889
        %v1910 = vpack.c.b16 %v1894, %v1892
        %v1911 = vpack.c.b16 %v1895, %v1893
        %1928 = vmatprep.subr.bf16.mxu0 %v1897
        %1929 = vmatpush1.bf16.msra.mxu0 %v1896
        %1930 = vmatprep.subr.bf16.mxu0 %v1899
        %1931 = vmatpush1.bf16.msra.mxu0 %v1898
        %1932 = vmatprep.subr.bf16.mxu0 %v1901
        %1933 = vmatpush1.bf16.msra.mxu0 %v1900
        %1934 = vmatprep.subr.bf16.mxu0 %v1903
        %1935 = vmatpush1.bf16.msra.mxu0 %v1902
        %1936 = vmatprep.subr.bf16.mxu0 %v1905
        %1937 = vmatpush1.bf16.msra.mxu0 %v1904
        %1938 = vmatprep.subr.bf16.mxu0 %v1907
        %1939 = vmatpush1.bf16.msra.mxu0 %v1906
        %1940 = vmatprep.subr.bf16.mxu0 %v1909
        %1941 = vmatpush1.bf16.msra.mxu0 %v1908
        %1942 = vmatprep.subr.bf16.mxu0 %v1911
        %1943 = vmatpush1.bf16.msra.mxu0 %v1910
        %1944 = vmatprep.subr.bf16.mxu0 0
        %1945 = vmatpush1.bf16.msra.mxu0 0
        %1946 = vmatprep.subr.bf16.mxu0 0
        %1947 = vmatpush1.bf16.msra.mxu0 0
        %1948 = vmatprep.subr.bf16.mxu0 0
        %1949 = vmatpush1.bf16.msra.mxu0 0
        %1950 = vmatprep.subr.bf16.mxu0 0
        %1951 = vmatpush1.bf16.msra.mxu0 0
        %1952 = vmatprep.subr.bf16.mxu0 0
        %1953 = vmatpush1.bf16.msra.mxu0 0
        %1954 = vmatprep.subr.bf16.mxu0 0
        %1955 = vmatpush1.bf16.msra.mxu0 0
        %1956 = vmatprep.subr.bf16.mxu0 0
        %1957 = vmatpush1.bf16.msra.mxu0 0
        %1958 = vmatprep.subr.bf16.mxu0 0
        %1959 = vmatpush1.bf16.msra.mxu0 0
        %1960 = vmatprep.mubr.bf16.mxu0 0
        %1961 = vmatmul.mubr.bf16.gmra.mrb[0].mxu0 %v1610
        %v1962 = vpop.f32.mrb[0].mxu0
        %v1963 = vadd.f32 %v1840, %v1962
        %v1964 = vpop.f32.mrb[0].mxu0
        %v1965 = vadd.f32 %v1842, %v1964
        %v1966 = vpop.f32.mrb[0].mxu0
        %v1967 = vadd.f32 %v1844, %v1966
        %v1968 = vpop.f32.mrb[0].mxu0
        %v1969 = vadd.f32 %v1846, %v1968
        %1970 = vdwg.mxu0
        %s1971 = smul.u32 %s708, 2
        %s1972 = scalar_lea.vmem %s6, %s1971
        %v1973 = vld [vmem:[%s1972] sm:$0x3]
        %v1975 = vlaneseq
        %v1976 = vshrl.u32 %v1975, 7
        %v1977 = vsub.s32 0, %v1976
        %v1978 = vrot.slane %v1973, %v1977
        %v1979 = vlaneseq
        %v1980 = vshrl.u32 %v1979, 7
        %v1981 = vsub.s32 1, %v1980
        %v1982 = vrot.slane %v1973, %v1981
        %v1985 = vadd.f32 %v1963, %v1978
        %v1986 = vadd.f32 %v1965, %v1982
        %v1987 = vadd.f32 %v1967, %v1978
        %v1988 = vadd.f32 %v1969, %v1982
        %v1989 = vadd.f32 %v713, %v1985
        %v1990 = vadd.f32 %v714, %v1986
        %v1991 = vadd.f32 %v715, %v1987
        %v1992 = vadd.f32 %v716, %v1988
        %s1993 = scalar_lea.vmem %s7, %s1971
        %v1994 = vld [vmem:[%s1993] sm:$0x3]
        %s1995 = scalar_lea.vmem %s8, %s1971
        %v1996 = vld [vmem:[%s1995] sm:$0x3]
        %v1997 = vadd.f32 %v1989, %v1990
        %1998 = vadd.xlane.f32.xlu0 %v1997
        %v1999 = vpop.xlane.xlu0 %1998
        %v2000 = vadd.f32 %v1991, %v1992
        %2001 = vadd.xlane.f32.xlu0 %v2000
        %v2002 = vpop.xlane.xlu0 %2001
        %v2003 = vrcp.pop 256.0
        %v2004 = vmul.f32 %v1999, %v2003
        %v2005 = vmul.f32 %v2002, %v2003
        %v2006 = vsub.f32 %v1989, %v2004
        %v2007 = vsub.f32 %v1990, %v2004
        %v2008 = vsub.f32 %v1991, %v2005
        %v2009 = vsub.f32 %v1992, %v2005
        %v2010 = vmul.f32 %v2006, %v2006
        %v2011 = vmul.f32 %v2007, %v2007
        %v2012 = vmul.f32 %v2008, %v2008
        %v2013 = vmul.f32 %v2009, %v2009
        %v2014 = vadd.f32 %v2010, %v2011
        %2015 = vadd.xlane.f32.xlu0 %v2014
        %v2016 = vpop.xlane.xlu0 %2015
        %v2017 = vadd.f32 %v2012, %v2013
        %2018 = vadd.xlane.f32.xlu0 %v2017
        %v2019 = vpop.xlane.xlu0 %2018
        %v2020 = vmul.f32 %v2016, %v2003
        %v2021 = vmul.f32 %v2019, %v2003
        %v2022 = vadd.f32 %v2020, 1e-05
        %v2023 = vadd.f32 %v2021, 1e-05
        %v2024 = vrsqrt.pop %v2022
        %v2025 = vrsqrt.pop %v2023
        %v2026 = vmul.f32 %v2006, %v2024
        %v2027 = vmul.f32 %v2007, %v2024
        %v2028 = vmul.f32 %v2008, %v2025
        %v2029 = vmul.f32 %v2009, %v2025
        %v2031 = vlaneseq
        %v2032 = vshrl.u32 %v2031, 7
        %v2033 = vsub.s32 0, %v2032
        %v2034 = vrot.slane %v1994, %v2033
        %v2035 = vlaneseq
        %v2036 = vshrl.u32 %v2035, 7
        %v2037 = vsub.s32 1, %v2036
        %v2038 = vrot.slane %v1994, %v2037
        %v2041 = vmul.f32 %v2026, %v2034
        %v2042 = vmul.f32 %v2027, %v2038
        %v2043 = vmul.f32 %v2028, %v2034
        %v2044 = vmul.f32 %v2029, %v2038
        %v2046 = vlaneseq
        %v2047 = vshrl.u32 %v2046, 7
        %v2048 = vsub.s32 0, %v2047
        %v2049 = vrot.slane %v1996, %v2048
        %v2050 = vlaneseq
        %v2051 = vshrl.u32 %v2050, 7
        %v2052 = vsub.s32 1, %v2051
        %v2053 = vrot.slane %v1996, %v2052
        %v2056 = vadd.f32 %v2041, %v2049
        %v2057 = vadd.f32 %v2042, %v2053
        %v2058 = vadd.f32 %v2043, %v2049
        %v2059 = vadd.f32 %v2044, %v2053
        %v2060 = vpack.c.bf16 %v2058, %v2056
        %v2061 = vpack.c.bf16 %v2059, %v2057
        %s2062 = smul.u32 %s708, 128
        %s2063 = smul.addr %s2062, 4
        %s2064 = scalar_lea.vmem %s9, %s2063
        %v2065 = vld [vmem:[%s2064] sm:$0xff]
        %v2066 = vld [vmem:[%s2064 + $0x8] sm:$0xff]
        %v2067 = vld [vmem:[%s2064 + $0x10] sm:$0xff]
        %v2068 = vld [vmem:[%s2064 + $0x18] sm:$0xff]
        %v2069 = vld [vmem:[%s2064 + $0x20] sm:$0xff]
        %v2070 = vld [vmem:[%s2064 + $0x28] sm:$0xff]
        %v2071 = vld [vmem:[%s2064 + $0x30] sm:$0xff]
        %v2072 = vld [vmem:[%s2064 + $0x38] sm:$0xff]
        %v2073 = vld [vmem:[%s2064 + $0x40] sm:$0xff]
        %v2074 = vld [vmem:[%s2064 + $0x48] sm:$0xff]
        %v2075 = vld [vmem:[%s2064 + $0x50] sm:$0xff]
        %v2076 = vld [vmem:[%s2064 + $0x58] sm:$0xff]
        %v2077 = vld [vmem:[%s2064 + $0x60] sm:$0xff]
        %v2078 = vld [vmem:[%s2064 + $0x68] sm:$0xff]
        %v2079 = vld [vmem:[%s2064 + $0x70] sm:$0xff]
        %v2080 = vld [vmem:[%s2064 + $0x78] sm:$0xff]
        %v2081 = vld [vmem:[%s2064 + $0x80] sm:$0xff]
        %v2082 = vld [vmem:[%s2064 + $0x88] sm:$0xff]
        %v2083 = vld [vmem:[%s2064 + $0x90] sm:$0xff]
        %v2084 = vld [vmem:[%s2064 + $0x98] sm:$0xff]
        %v2085 = vld [vmem:[%s2064 + $0xa0] sm:$0xff]
        %v2086 = vld [vmem:[%s2064 + $0xa8] sm:$0xff]
        %v2087 = vld [vmem:[%s2064 + $0xb0] sm:$0xff]
        %v2088 = vld [vmem:[%s2064 + $0xb8] sm:$0xff]
        %v2089 = vld [vmem:[%s2064 + $0xc0] sm:$0xff]
        %v2090 = vld [vmem:[%s2064 + $0xc8] sm:$0xff]
        %v2091 = vld [vmem:[%s2064 + $0xd0] sm:$0xff]
        %v2092 = vld [vmem:[%s2064 + $0xd8] sm:$0xff]
        %v2093 = vld [vmem:[%s2064 + $0xe0] sm:$0xff]
        %v2094 = vld [vmem:[%s2064 + $0xe8] sm:$0xff]
        %v2095 = vld [vmem:[%s2064 + $0xf0] sm:$0xff]
        %v2096 = vld [vmem:[%s2064 + $0xf8] sm:$0xff]
        %v2097 = vld [vmem:[%s2064 + $0x100] sm:$0xff]
        %v2098 = vld [vmem:[%s2064 + $0x108] sm:$0xff]
        %v2099 = vld [vmem:[%s2064 + $0x110] sm:$0xff]
        %v2100 = vld [vmem:[%s2064 + $0x118] sm:$0xff]
        %v2101 = vld [vmem:[%s2064 + $0x120] sm:$0xff]
        %v2102 = vld [vmem:[%s2064 + $0x128] sm:$0xff]
        %v2103 = vld [vmem:[%s2064 + $0x130] sm:$0xff]
        %v2104 = vld [vmem:[%s2064 + $0x138] sm:$0xff]
        %v2105 = vld [vmem:[%s2064 + $0x140] sm:$0xff]
        %v2106 = vld [vmem:[%s2064 + $0x148] sm:$0xff]
        %v2107 = vld [vmem:[%s2064 + $0x150] sm:$0xff]
        %v2108 = vld [vmem:[%s2064 + $0x158] sm:$0xff]
        %v2109 = vld [vmem:[%s2064 + $0x160] sm:$0xff]
        %v2110 = vld [vmem:[%s2064 + $0x168] sm:$0xff]
        %v2111 = vld [vmem:[%s2064 + $0x170] sm:$0xff]
        %v2112 = vld [vmem:[%s2064 + $0x178] sm:$0xff]
        %v2113 = vld [vmem:[%s2064 + $0x180] sm:$0xff]
        %v2114 = vld [vmem:[%s2064 + $0x188] sm:$0xff]
        %v2115 = vld [vmem:[%s2064 + $0x190] sm:$0xff]
        %v2116 = vld [vmem:[%s2064 + $0x198] sm:$0xff]
        %v2117 = vld [vmem:[%s2064 + $0x1a0] sm:$0xff]
        %v2118 = vld [vmem:[%s2064 + $0x1a8] sm:$0xff]
        %v2119 = vld [vmem:[%s2064 + $0x1b0] sm:$0xff]
        %v2120 = vld [vmem:[%s2064 + $0x1b8] sm:$0xff]
        %v2121 = vld [vmem:[%s2064 + $0x1c0] sm:$0xff]
        %v2122 = vld [vmem:[%s2064 + $0x1c8] sm:$0xff]
        %v2123 = vld [vmem:[%s2064 + $0x1d0] sm:$0xff]
        %v2124 = vld [vmem:[%s2064 + $0x1d8] sm:$0xff]
        %v2125 = vld [vmem:[%s2064 + $0x1e0] sm:$0xff]
        %v2126 = vld [vmem:[%s2064 + $0x1e8] sm:$0xff]
        %v2127 = vld [vmem:[%s2064 + $0x1f0] sm:$0xff]
        %v2128 = vld [vmem:[%s2064 + $0x1f8] sm:$0xff]
        %s2129 = smul.u32 %s708, 4
        %s2130 = scalar_lea.vmem %s10, %s2129
        %v2131 = vld [vmem:[%s2130] sm:$0xf]
        %v2133 = vlaneseq
        %v2134 = vshrl.u32 %v2133, 7
        %v2135 = vsub.s32 0, %v2134
        %v2136 = vrot.slane %v2131, %v2135
        %v2137 = vlaneseq
        %v2138 = vshrl.u32 %v2137, 7
        %v2139 = vsub.s32 1, %v2138
        %v2140 = vrot.slane %v2131, %v2139
        %v2141 = vlaneseq
        %v2142 = vshrl.u32 %v2141, 7
        %v2143 = vsub.s32 2, %v2142
        %v2144 = vrot.slane %v2131, %v2143
        %v2145 = vlaneseq
        %v2146 = vshrl.u32 %v2145, 7
        %v2147 = vsub.s32 3, %v2146
        %v2148 = vrot.slane %v2131, %v2147
        %v2217 = vunpack.c.l.b16 %v2065
        %v2218 = vunpack.c.h.b16 %v2065
        %v2219 = vunpack.c.l.b16 %v2066
        %v2220 = vunpack.c.h.b16 %v2066
        %v2221 = vunpack.c.l.b16 %v2067
        %v2222 = vunpack.c.h.b16 %v2067
        %v2223 = vunpack.c.l.b16 %v2068
        %v2224 = vunpack.c.h.b16 %v2068
        %v2225 = vunpack.c.l.b16 %v2069
        %v2226 = vunpack.c.h.b16 %v2069
        %v2227 = vunpack.c.l.b16 %v2070
        %v2228 = vunpack.c.h.b16 %v2070
        %v2229 = vunpack.c.l.b16 %v2071
        %v2230 = vunpack.c.h.b16 %v2071
        %v2231 = vunpack.c.l.b16 %v2072
        %v2232 = vunpack.c.h.b16 %v2072
        %v2233 = vunpack.c.l.b16 %v2073
        %v2234 = vunpack.c.h.b16 %v2073
        %v2235 = vunpack.c.l.b16 %v2074
        %v2236 = vunpack.c.h.b16 %v2074
        %v2237 = vunpack.c.l.b16 %v2075
        %v2238 = vunpack.c.h.b16 %v2075
        %v2239 = vunpack.c.l.b16 %v2076
        %v2240 = vunpack.c.h.b16 %v2076
        %v2241 = vunpack.c.l.b16 %v2077
        %v2242 = vunpack.c.h.b16 %v2077
        %v2243 = vunpack.c.l.b16 %v2078
        %v2244 = vunpack.c.h.b16 %v2078
        %v2245 = vunpack.c.l.b16 %v2079
        %v2246 = vunpack.c.h.b16 %v2079
        %v2247 = vunpack.c.l.b16 %v2080
        %v2248 = vunpack.c.h.b16 %v2080
        %v2249 = vunpack.c.l.b16 %v2081
        %v2250 = vunpack.c.h.b16 %v2081
        %v2251 = vunpack.c.l.b16 %v2082
        %v2252 = vunpack.c.h.b16 %v2082
        %v2253 = vunpack.c.l.b16 %v2083
        %v2254 = vunpack.c.h.b16 %v2083
        %v2255 = vunpack.c.l.b16 %v2084
        %v2256 = vunpack.c.h.b16 %v2084
        %v2257 = vunpack.c.l.b16 %v2085
        %v2258 = vunpack.c.h.b16 %v2085
        %v2259 = vunpack.c.l.b16 %v2086
        %v2260 = vunpack.c.h.b16 %v2086
        %v2261 = vunpack.c.l.b16 %v2087
        %v2262 = vunpack.c.h.b16 %v2087
        %v2263 = vunpack.c.l.b16 %v2088
        %v2264 = vunpack.c.h.b16 %v2088
        %v2265 = vunpack.c.l.b16 %v2089
        %v2266 = vunpack.c.h.b16 %v2089
        %v2267 = vunpack.c.l.b16 %v2090
        %v2268 = vunpack.c.h.b16 %v2090
        %v2269 = vunpack.c.l.b16 %v2091
        %v2270 = vunpack.c.h.b16 %v2091
        %v2271 = vunpack.c.l.b16 %v2092
        %v2272 = vunpack.c.h.b16 %v2092
        %v2273 = vunpack.c.l.b16 %v2093
        %v2274 = vunpack.c.h.b16 %v2093
        %v2275 = vunpack.c.l.b16 %v2094
        %v2276 = vunpack.c.h.b16 %v2094
        %v2277 = vunpack.c.l.b16 %v2095
        %v2278 = vunpack.c.h.b16 %v2095
        %v2279 = vunpack.c.l.b16 %v2096
        %v2280 = vunpack.c.h.b16 %v2096
        %v2281 = vunpack.c.l.b16 %v2097
        %v2282 = vunpack.c.h.b16 %v2097
        %v2283 = vunpack.c.l.b16 %v2098
        %v2284 = vunpack.c.h.b16 %v2098
        %v2285 = vunpack.c.l.b16 %v2099
        %v2286 = vunpack.c.h.b16 %v2099
        %v2287 = vunpack.c.l.b16 %v2100
        %v2288 = vunpack.c.h.b16 %v2100
        %v2289 = vunpack.c.l.b16 %v2101
        %v2290 = vunpack.c.h.b16 %v2101
        %v2291 = vunpack.c.l.b16 %v2102
        %v2292 = vunpack.c.h.b16 %v2102
        %v2293 = vunpack.c.l.b16 %v2103
        %v2294 = vunpack.c.h.b16 %v2103
        %v2295 = vunpack.c.l.b16 %v2104
        %v2296 = vunpack.c.h.b16 %v2104
        %v2297 = vunpack.c.l.b16 %v2105
        %v2298 = vunpack.c.h.b16 %v2105
        %v2299 = vunpack.c.l.b16 %v2106
        %v2300 = vunpack.c.h.b16 %v2106
        %v2301 = vunpack.c.l.b16 %v2107
        %v2302 = vunpack.c.h.b16 %v2107
        %v2303 = vunpack.c.l.b16 %v2108
        %v2304 = vunpack.c.h.b16 %v2108
        %v2305 = vunpack.c.l.b16 %v2109
        %v2306 = vunpack.c.h.b16 %v2109
        %v2307 = vunpack.c.l.b16 %v2110
        %v2308 = vunpack.c.h.b16 %v2110
        %v2309 = vunpack.c.l.b16 %v2111
        %v2310 = vunpack.c.h.b16 %v2111
        %v2311 = vunpack.c.l.b16 %v2112
        %v2312 = vunpack.c.h.b16 %v2112
        %v2313 = vunpack.c.l.b16 %v2113
        %v2314 = vunpack.c.h.b16 %v2113
        %v2315 = vunpack.c.l.b16 %v2114
        %v2316 = vunpack.c.h.b16 %v2114
        %v2317 = vunpack.c.l.b16 %v2115
        %v2318 = vunpack.c.h.b16 %v2115
        %v2319 = vunpack.c.l.b16 %v2116
        %v2320 = vunpack.c.h.b16 %v2116
        %v2321 = vunpack.c.l.b16 %v2117
        %v2322 = vunpack.c.h.b16 %v2117
        %v2323 = vunpack.c.l.b16 %v2118
        %v2324 = vunpack.c.h.b16 %v2118
        %v2325 = vunpack.c.l.b16 %v2119
        %v2326 = vunpack.c.h.b16 %v2119
        %v2327 = vunpack.c.l.b16 %v2120
        %v2328 = vunpack.c.h.b16 %v2120
        %v2329 = vunpack.c.l.b16 %v2121
        %v2330 = vunpack.c.h.b16 %v2121
        %v2331 = vunpack.c.l.b16 %v2122
        %v2332 = vunpack.c.h.b16 %v2122
        %v2333 = vunpack.c.l.b16 %v2123
        %v2334 = vunpack.c.h.b16 %v2123
        %v2335 = vunpack.c.l.b16 %v2124
        %v2336 = vunpack.c.h.b16 %v2124
        %v2337 = vunpack.c.l.b16 %v2125
        %v2338 = vunpack.c.h.b16 %v2125
        %v2339 = vunpack.c.l.b16 %v2126
        %v2340 = vunpack.c.h.b16 %v2126
        %v2341 = vunpack.c.l.b16 %v2127
        %v2342 = vunpack.c.h.b16 %v2127
        %v2343 = vunpack.c.l.b16 %v2128
        %v2344 = vunpack.c.h.b16 %v2128
        %v2345 = vpack.c.b16 %v2221, %v2217
        %v2346 = vpack.c.b16 %v2222, %v2218
        %v2347 = vpack.c.b16 %v2223, %v2219
        %v2348 = vpack.c.b16 %v2224, %v2220
        %v2349 = vpack.c.b16 %v2229, %v2225
        %v2350 = vpack.c.b16 %v2230, %v2226
        %v2351 = vpack.c.b16 %v2231, %v2227
        %v2352 = vpack.c.b16 %v2232, %v2228
        %v2353 = vpack.c.b16 %v2237, %v2233
        %v2354 = vpack.c.b16 %v2238, %v2234
        %v2355 = vpack.c.b16 %v2239, %v2235
        %v2356 = vpack.c.b16 %v2240, %v2236
        %v2357 = vpack.c.b16 %v2245, %v2241
        %v2358 = vpack.c.b16 %v2246, %v2242
        %v2359 = vpack.c.b16 %v2247, %v2243
        %v2360 = vpack.c.b16 %v2248, %v2244
        %v2361 = vpack.c.b16 %v2253, %v2249
        %v2362 = vpack.c.b16 %v2254, %v2250
        %v2363 = vpack.c.b16 %v2255, %v2251
        %v2364 = vpack.c.b16 %v2256, %v2252
        %v2365 = vpack.c.b16 %v2261, %v2257
        %v2366 = vpack.c.b16 %v2262, %v2258
        %v2367 = vpack.c.b16 %v2263, %v2259
        %v2368 = vpack.c.b16 %v2264, %v2260
        %v2369 = vpack.c.b16 %v2269, %v2265
        %v2370 = vpack.c.b16 %v2270, %v2266
        %v2371 = vpack.c.b16 %v2271, %v2267
        %v2372 = vpack.c.b16 %v2272, %v2268
        %v2373 = vpack.c.b16 %v2277, %v2273
        %v2374 = vpack.c.b16 %v2278, %v2274
        %v2375 = vpack.c.b16 %v2279, %v2275
        %v2376 = vpack.c.b16 %v2280, %v2276
        %v2377 = vpack.c.b16 %v2285, %v2281
        %v2378 = vpack.c.b16 %v2286, %v2282
        %v2379 = vpack.c.b16 %v2287, %v2283
        %v2380 = vpack.c.b16 %v2288, %v2284
        %v2381 = vpack.c.b16 %v2293, %v2289
        %v2382 = vpack.c.b16 %v2294, %v2290
        %v2383 = vpack.c.b16 %v2295, %v2291
        %v2384 = vpack.c.b16 %v2296, %v2292
        %v2385 = vpack.c.b16 %v2301, %v2297
        %v2386 = vpack.c.b16 %v2302, %v2298
        %v2387 = vpack.c.b16 %v2303, %v2299
        %v2388 = vpack.c.b16 %v2304, %v2300
        %v2389 = vpack.c.b16 %v2309, %v2305
        %v2390 = vpack.c.b16 %v2310, %v2306
        %v2391 = vpack.c.b16 %v2311, %v2307
        %v2392 = vpack.c.b16 %v2312, %v2308
        %v2393 = vpack.c.b16 %v2317, %v2313
        %v2394 = vpack.c.b16 %v2318, %v2314
        %v2395 = vpack.c.b16 %v2319, %v2315
        %v2396 = vpack.c.b16 %v2320, %v2316
        %v2397 = vpack.c.b16 %v2325, %v2321
        %v2398 = vpack.c.b16 %v2326, %v2322
        %v2399 = vpack.c.b16 %v2327, %v2323
        %v2400 = vpack.c.b16 %v2328, %v2324
        %v2401 = vpack.c.b16 %v2333, %v2329
        %v2402 = vpack.c.b16 %v2334, %v2330
        %v2403 = vpack.c.b16 %v2335, %v2331
        %v2404 = vpack.c.b16 %v2336, %v2332
        %v2405 = vpack.c.b16 %v2341, %v2337
        %v2406 = vpack.c.b16 %v2342, %v2338
        %v2407 = vpack.c.b16 %v2343, %v2339
        %v2408 = vpack.c.b16 %v2344, %v2340
        %2473 = vmatprep.subr.bf16.mxu0 %v2346
        %2474 = vmatpush1.bf16.msra.mxu0 %v2345
        %2475 = vmatprep.subr.bf16.mxu0 %v2350
        %2476 = vmatpush1.bf16.msra.mxu0 %v2349
        %2477 = vmatprep.subr.bf16.mxu0 %v2354
        %2478 = vmatpush1.bf16.msra.mxu0 %v2353
        %2479 = vmatprep.subr.bf16.mxu0 %v2358
        %2480 = vmatpush1.bf16.msra.mxu0 %v2357
        %2481 = vmatprep.subr.bf16.mxu0 %v2362
        %2482 = vmatpush1.bf16.msra.mxu0 %v2361
        %2483 = vmatprep.subr.bf16.mxu0 %v2366
        %2484 = vmatpush1.bf16.msra.mxu0 %v2365
        %2485 = vmatprep.subr.bf16.mxu0 %v2370
        %2486 = vmatpush1.bf16.msra.mxu0 %v2369
        %2487 = vmatprep.subr.bf16.mxu0 %v2374
        %2488 = vmatpush1.bf16.msra.mxu0 %v2373
        %2489 = vmatprep.subr.bf16.mxu0 %v2378
        %2490 = vmatpush1.bf16.msra.mxu0 %v2377
        %2491 = vmatprep.subr.bf16.mxu0 %v2382
        %2492 = vmatpush1.bf16.msra.mxu0 %v2381
        %2493 = vmatprep.subr.bf16.mxu0 %v2386
        %2494 = vmatpush1.bf16.msra.mxu0 %v2385
        %2495 = vmatprep.subr.bf16.mxu0 %v2390
        %2496 = vmatpush1.bf16.msra.mxu0 %v2389
        %2497 = vmatprep.subr.bf16.mxu0 %v2394
        %2498 = vmatpush1.bf16.msra.mxu0 %v2393
        %2499 = vmatprep.subr.bf16.mxu0 %v2398
        %2500 = vmatpush1.bf16.msra.mxu0 %v2397
        %2501 = vmatprep.subr.bf16.mxu0 %v2402
        %2502 = vmatpush1.bf16.msra.mxu0 %v2401
        %2503 = vmatprep.subr.bf16.mxu0 %v2406
        %2504 = vmatpush1.bf16.msra.mxu0 %v2405
        %2505 = vmatprep.mubr.bf16.mxu0 %v2061
        %2506 = vmatmul.mubr.bf16.gmra.mrb[0].mxu0 %v2060
        %v2507 = vpop.f32.mrb[0].mxu0
        %v2508 = vadd.f32 %v2136, %v2507
        %v2509 = vpop.f32.mrb[0].mxu0
        %v2510 = vadd.f32 %v2140, %v2509
        %v2511 = vpop.f32.mrb[0].mxu0
        %v2512 = vadd.f32 %v2136, %v2511
        %v2513 = vpop.f32.mrb[0].mxu0
        %v2514 = vadd.f32 %v2140, %v2513
        %2515 = vdwg.mxu0
        %2516 = vmatprep.subr.bf16.mxu0 %v2348
        %2517 = vmatpush1.bf16.msra.mxu0 %v2347
        %2518 = vmatprep.subr.bf16.mxu0 %v2352
        %2519 = vmatpush1.bf16.msra.mxu0 %v2351
        %2520 = vmatprep.subr.bf16.mxu0 %v2356
        %2521 = vmatpush1.bf16.msra.mxu0 %v2355
        %2522 = vmatprep.subr.bf16.mxu0 %v2360
        %2523 = vmatpush1.bf16.msra.mxu0 %v2359
        %2524 = vmatprep.subr.bf16.mxu0 %v2364
        %2525 = vmatpush1.bf16.msra.mxu0 %v2363
        %2526 = vmatprep.subr.bf16.mxu0 %v2368
        %2527 = vmatpush1.bf16.msra.mxu0 %v2367
        %2528 = vmatprep.subr.bf16.mxu0 %v2372
        %2529 = vmatpush1.bf16.msra.mxu0 %v2371
        %2530 = vmatprep.subr.bf16.mxu0 %v2376
        %2531 = vmatpush1.bf16.msra.mxu0 %v2375
        %2532 = vmatprep.subr.bf16.mxu0 %v2380
        %2533 = vmatpush1.bf16.msra.mxu0 %v2379
        %2534 = vmatprep.subr.bf16.mxu0 %v2384
        %2535 = vmatpush1.bf16.msra.mxu0 %v2383
        %2536 = vmatprep.subr.bf16.mxu0 %v2388
        %2537 = vmatpush1.bf16.msra.mxu0 %v2387
        %2538 = vmatprep.subr.bf16.mxu0 %v2392
        %2539 = vmatpush1.bf16.msra.mxu0 %v2391
        %2540 = vmatprep.subr.bf16.mxu0 %v2396
        %2541 = vmatpush1.bf16.msra.mxu0 %v2395
        %2542 = vmatprep.subr.bf16.mxu0 %v2400
        %2543 = vmatpush1.bf16.msra.mxu0 %v2399
        %2544 = vmatprep.subr.bf16.mxu0 %v2404
        %2545 = vmatpush1.bf16.msra.mxu0 %v2403
        %2546 = vmatprep.subr.bf16.mxu0 %v2408
        %2547 = vmatpush1.bf16.msra.mxu0 %v2407
        %2548 = vmatprep.mubr.bf16.mxu0 %v2061
        %2549 = vmatmul.mubr.bf16.gmra.mrb[0].mxu0 %v2060
        %v2550 = vpop.f32.mrb[0].mxu0
        %v2551 = vadd.f32 %v2144, %v2550
        %v2552 = vpop.f32.mrb[0].mxu0
        %v2553 = vadd.f32 %v2148, %v2552
        %v2554 = vpop.f32.mrb[0].mxu0
        %v2555 = vadd.f32 %v2144, %v2554
        %v2556 = vpop.f32.mrb[0].mxu0
        %v2557 = vadd.f32 %v2148, %v2556
        %2558 = vdwg.mxu0
        %v2559 = vmul.f32 %v2508, 0.5
        %v2560 = vmul.f32 %v2510, 0.5
        %v2561 = vmul.f32 %v2551, 0.5
        %v2562 = vmul.f32 %v2553, 0.5
        %v2563 = vmul.f32 %v2512, 0.5
        %v2564 = vmul.f32 %v2514, 0.5
        %v2565 = vmul.f32 %v2555, 0.5
        %v2566 = vmul.f32 %v2557, 0.5
        %v2567 = vmul.f32 %v2508, 0.044715
        %v2568 = vmul.f32 %v2510, 0.044715
        %v2569 = vmul.f32 %v2551, 0.044715
        %v2570 = vmul.f32 %v2553, 0.044715
        %v2571 = vmul.f32 %v2512, 0.044715
        %v2572 = vmul.f32 %v2514, 0.044715
        %v2573 = vmul.f32 %v2555, 0.044715
        %v2574 = vmul.f32 %v2557, 0.044715
        %v2575 = vmul.f32 %v2567, %v2508
        %v2576 = vmul.f32 %v2568, %v2510
        %v2577 = vmul.f32 %v2569, %v2551
        %v2578 = vmul.f32 %v2570, %v2553
        %v2579 = vmul.f32 %v2571, %v2512
        %v2580 = vmul.f32 %v2572, %v2514
        %v2581 = vmul.f32 %v2573, %v2555
        %v2582 = vmul.f32 %v2574, %v2557
        %v2583 = vmul.f32 %v2575, %v2508
        %v2584 = vmul.f32 %v2576, %v2510
        %v2585 = vmul.f32 %v2577, %v2551
        %v2586 = vmul.f32 %v2578, %v2553
        %v2587 = vmul.f32 %v2579, %v2512
        %v2588 = vmul.f32 %v2580, %v2514
        %v2589 = vmul.f32 %v2581, %v2555
        %v2590 = vmul.f32 %v2582, %v2557
        %v2591 = vadd.f32 %v2508, %v2583
        %v2592 = vadd.f32 %v2510, %v2584
        %v2593 = vadd.f32 %v2551, %v2585
        %v2594 = vadd.f32 %v2553, %v2586
        %v2595 = vadd.f32 %v2512, %v2587
        %v2596 = vadd.f32 %v2514, %v2588
        %v2597 = vadd.f32 %v2555, %v2589
        %v2598 = vadd.f32 %v2557, %v2590
        %v2599 = vmul.f32 %v2591, 0.7978846
        %v2600 = vmul.f32 %v2592, 0.7978846
        %v2601 = vmul.f32 %v2593, 0.7978846
        %v2602 = vmul.f32 %v2594, 0.7978846
        %v2603 = vmul.f32 %v2595, 0.7978846
        %v2604 = vmul.f32 %v2596, 0.7978846
        %v2605 = vmul.f32 %v2597, 0.7978846
        %v2606 = vmul.f32 %v2598, 0.7978846
        %v2607 = vtanh.pop %v2599
        %v2608 = vtanh.pop %v2600
        %v2609 = vtanh.pop %v2601
        %v2610 = vtanh.pop %v2602
        %v2611 = vtanh.pop %v2603
        %v2612 = vtanh.pop %v2604
        %v2613 = vtanh.pop %v2605
        %v2614 = vtanh.pop %v2606
        %v2615 = vadd.f32 %v2607, 1.0
        %v2616 = vadd.f32 %v2608, 1.0
        %v2617 = vadd.f32 %v2609, 1.0
        %v2618 = vadd.f32 %v2610, 1.0
        %v2619 = vadd.f32 %v2611, 1.0
        %v2620 = vadd.f32 %v2612, 1.0
        %v2621 = vadd.f32 %v2613, 1.0
        %v2622 = vadd.f32 %v2614, 1.0
        %v2623 = vmul.f32 %v2559, %v2615
        %v2624 = vmul.f32 %v2560, %v2616
        %v2625 = vmul.f32 %v2561, %v2617
        %v2626 = vmul.f32 %v2562, %v2618
        %v2627 = vmul.f32 %v2563, %v2619
        %v2628 = vmul.f32 %v2564, %v2620
        %v2629 = vmul.f32 %v2565, %v2621
        %v2630 = vmul.f32 %v2566, %v2622
        %v2631 = vpack.c.bf16 %v2627, %v2623
        %v2632 = vpack.c.bf16 %v2628, %v2624
        %v2633 = vpack.c.bf16 %v2629, %v2625
        %v2634 = vpack.c.bf16 %v2630, %v2626
        %s2635 = smul.addr %s2062, 4
        %s2636 = scalar_lea.vmem %s11, %s2635
        %v2637 = vld [vmem:[%s2636] sm:$0xff]
        %v2638 = vld [vmem:[%s2636 + $0x8] sm:$0xff]
        %v2639 = vld [vmem:[%s2636 + $0x10] sm:$0xff]
        %v2640 = vld [vmem:[%s2636 + $0x18] sm:$0xff]
        %v2641 = vld [vmem:[%s2636 + $0x20] sm:$0xff]
        %v2642 = vld [vmem:[%s2636 + $0x28] sm:$0xff]
        %v2643 = vld [vmem:[%s2636 + $0x30] sm:$0xff]
        %v2644 = vld [vmem:[%s2636 + $0x38] sm:$0xff]
        %v2645 = vld [vmem:[%s2636 + $0x40] sm:$0xff]
        %v2646 = vld [vmem:[%s2636 + $0x48] sm:$0xff]
        %v2647 = vld [vmem:[%s2636 + $0x50] sm:$0xff]
        %v2648 = vld [vmem:[%s2636 + $0x58] sm:$0xff]
        %v2649 = vld [vmem:[%s2636 + $0x60] sm:$0xff]
        %v2650 = vld [vmem:[%s2636 + $0x68] sm:$0xff]
        %v2651 = vld [vmem:[%s2636 + $0x70] sm:$0xff]
        %v2652 = vld [vmem:[%s2636 + $0x78] sm:$0xff]
        %v2653 = vld [vmem:[%s2636 + $0x80] sm:$0xff]
        %v2654 = vld [vmem:[%s2636 + $0x88] sm:$0xff]
        %v2655 = vld [vmem:[%s2636 + $0x90] sm:$0xff]
        %v2656 = vld [vmem:[%s2636 + $0x98] sm:$0xff]
        %v2657 = vld [vmem:[%s2636 + $0xa0] sm:$0xff]
        %v2658 = vld [vmem:[%s2636 + $0xa8] sm:$0xff]
        %v2659 = vld [vmem:[%s2636 + $0xb0] sm:$0xff]
        %v2660 = vld [vmem:[%s2636 + $0xb8] sm:$0xff]
        %v2661 = vld [vmem:[%s2636 + $0xc0] sm:$0xff]
        %v2662 = vld [vmem:[%s2636 + $0xc8] sm:$0xff]
        %v2663 = vld [vmem:[%s2636 + $0xd0] sm:$0xff]
        %v2664 = vld [vmem:[%s2636 + $0xd8] sm:$0xff]
        %v2665 = vld [vmem:[%s2636 + $0xe0] sm:$0xff]
        %v2666 = vld [vmem:[%s2636 + $0xe8] sm:$0xff]
        %v2667 = vld [vmem:[%s2636 + $0xf0] sm:$0xff]
        %v2668 = vld [vmem:[%s2636 + $0xf8] sm:$0xff]
        %v2669 = vld [vmem:[%s2636 + $0x100] sm:$0xff]
        %v2670 = vld [vmem:[%s2636 + $0x108] sm:$0xff]
        %v2671 = vld [vmem:[%s2636 + $0x110] sm:$0xff]
        %v2672 = vld [vmem:[%s2636 + $0x118] sm:$0xff]
        %v2673 = vld [vmem:[%s2636 + $0x120] sm:$0xff]
        %v2674 = vld [vmem:[%s2636 + $0x128] sm:$0xff]
        %v2675 = vld [vmem:[%s2636 + $0x130] sm:$0xff]
        %v2676 = vld [vmem:[%s2636 + $0x138] sm:$0xff]
        %v2677 = vld [vmem:[%s2636 + $0x140] sm:$0xff]
        %v2678 = vld [vmem:[%s2636 + $0x148] sm:$0xff]
        %v2679 = vld [vmem:[%s2636 + $0x150] sm:$0xff]
        %v2680 = vld [vmem:[%s2636 + $0x158] sm:$0xff]
        %v2681 = vld [vmem:[%s2636 + $0x160] sm:$0xff]
        %v2682 = vld [vmem:[%s2636 + $0x168] sm:$0xff]
        %v2683 = vld [vmem:[%s2636 + $0x170] sm:$0xff]
        %v2684 = vld [vmem:[%s2636 + $0x178] sm:$0xff]
        %v2685 = vld [vmem:[%s2636 + $0x180] sm:$0xff]
        %v2686 = vld [vmem:[%s2636 + $0x188] sm:$0xff]
        %v2687 = vld [vmem:[%s2636 + $0x190] sm:$0xff]
        %v2688 = vld [vmem:[%s2636 + $0x198] sm:$0xff]
        %v2689 = vld [vmem:[%s2636 + $0x1a0] sm:$0xff]
        %v2690 = vld [vmem:[%s2636 + $0x1a8] sm:$0xff]
        %v2691 = vld [vmem:[%s2636 + $0x1b0] sm:$0xff]
        %v2692 = vld [vmem:[%s2636 + $0x1b8] sm:$0xff]
        %v2693 = vld [vmem:[%s2636 + $0x1c0] sm:$0xff]
        %v2694 = vld [vmem:[%s2636 + $0x1c8] sm:$0xff]
        %v2695 = vld [vmem:[%s2636 + $0x1d0] sm:$0xff]
        %v2696 = vld [vmem:[%s2636 + $0x1d8] sm:$0xff]
        %v2697 = vld [vmem:[%s2636 + $0x1e0] sm:$0xff]
        %v2698 = vld [vmem:[%s2636 + $0x1e8] sm:$0xff]
        %v2699 = vld [vmem:[%s2636 + $0x1f0] sm:$0xff]
        %v2700 = vld [vmem:[%s2636 + $0x1f8] sm:$0xff]
        %s2701 = scalar_lea.vmem %s12, %s1971
        %v2702 = vld [vmem:[%s2701] sm:$0x3]
        %v2704 = vlaneseq
        %v2705 = vshrl.u32 %v2704, 7
        %v2706 = vsub.s32 0, %v2705
        %v2707 = vrot.slane %v2702, %v2706
        %v2708 = vlaneseq
        %v2709 = vshrl.u32 %v2708, 7
        %v2710 = vsub.s32 1, %v2709
        %v2711 = vrot.slane %v2702, %v2710
        %v2778 = vunpack.c.l.b16 %v2637
        %v2779 = vunpack.c.h.b16 %v2637
        %v2780 = vunpack.c.l.b16 %v2638
        %v2781 = vunpack.c.h.b16 %v2638
        %v2782 = vunpack.c.l.b16 %v2639
        %v2783 = vunpack.c.h.b16 %v2639
        %v2784 = vunpack.c.l.b16 %v2640
        %v2785 = vunpack.c.h.b16 %v2640
        %v2786 = vunpack.c.l.b16 %v2641
        %v2787 = vunpack.c.h.b16 %v2641
        %v2788 = vunpack.c.l.b16 %v2642
        %v2789 = vunpack.c.h.b16 %v2642
        %v2790 = vunpack.c.l.b16 %v2643
        %v2791 = vunpack.c.h.b16 %v2643
        %v2792 = vunpack.c.l.b16 %v2644
        %v2793 = vunpack.c.h.b16 %v2644
        %v2794 = vunpack.c.l.b16 %v2645
        %v2795 = vunpack.c.h.b16 %v2645
        %v2796 = vunpack.c.l.b16 %v2646
        %v2797 = vunpack.c.h.b16 %v2646
        %v2798 = vunpack.c.l.b16 %v2647
        %v2799 = vunpack.c.h.b16 %v2647
        %v2800 = vunpack.c.l.b16 %v2648
        %v2801 = vunpack.c.h.b16 %v2648
        %v2802 = vunpack.c.l.b16 %v2649
        %v2803 = vunpack.c.h.b16 %v2649
        %v2804 = vunpack.c.l.b16 %v2650
        %v2805 = vunpack.c.h.b16 %v2650
        %v2806 = vunpack.c.l.b16 %v2651
        %v2807 = vunpack.c.h.b16 %v2651
        %v2808 = vunpack.c.l.b16 %v2652
        %v2809 = vunpack.c.h.b16 %v2652
        %v2810 = vunpack.c.l.b16 %v2653
        %v2811 = vunpack.c.h.b16 %v2653
        %v2812 = vunpack.c.l.b16 %v2654
        %v2813 = vunpack.c.h.b16 %v2654
        %v2814 = vunpack.c.l.b16 %v2655
        %v2815 = vunpack.c.h.b16 %v2655
        %v2816 = vunpack.c.l.b16 %v2656
        %v2817 = vunpack.c.h.b16 %v2656
        %v2818 = vunpack.c.l.b16 %v2657
        %v2819 = vunpack.c.h.b16 %v2657
        %v2820 = vunpack.c.l.b16 %v2658
        %v2821 = vunpack.c.h.b16 %v2658
        %v2822 = vunpack.c.l.b16 %v2659
        %v2823 = vunpack.c.h.b16 %v2659
        %v2824 = vunpack.c.l.b16 %v2660
        %v2825 = vunpack.c.h.b16 %v2660
        %v2826 = vunpack.c.l.b16 %v2661
        %v2827 = vunpack.c.h.b16 %v2661
        %v2828 = vunpack.c.l.b16 %v2662
        %v2829 = vunpack.c.h.b16 %v2662
        %v2830 = vunpack.c.l.b16 %v2663
        %v2831 = vunpack.c.h.b16 %v2663
        %v2832 = vunpack.c.l.b16 %v2664
        %v2833 = vunpack.c.h.b16 %v2664
        %v2834 = vunpack.c.l.b16 %v2665
        %v2835 = vunpack.c.h.b16 %v2665
        %v2836 = vunpack.c.l.b16 %v2666
        %v2837 = vunpack.c.h.b16 %v2666
        %v2838 = vunpack.c.l.b16 %v2667
        %v2839 = vunpack.c.h.b16 %v2667
        %v2840 = vunpack.c.l.b16 %v2668
        %v2841 = vunpack.c.h.b16 %v2668
        %v2842 = vunpack.c.l.b16 %v2669
        %v2843 = vunpack.c.h.b16 %v2669
        %v2844 = vunpack.c.l.b16 %v2670
        %v2845 = vunpack.c.h.b16 %v2670
        %v2846 = vunpack.c.l.b16 %v2671
        %v2847 = vunpack.c.h.b16 %v2671
        %v2848 = vunpack.c.l.b16 %v2672
        %v2849 = vunpack.c.h.b16 %v2672
        %v2850 = vunpack.c.l.b16 %v2673
        %v2851 = vunpack.c.h.b16 %v2673
        %v2852 = vunpack.c.l.b16 %v2674
        %v2853 = vunpack.c.h.b16 %v2674
        %v2854 = vunpack.c.l.b16 %v2675
        %v2855 = vunpack.c.h.b16 %v2675
        %v2856 = vunpack.c.l.b16 %v2676
        %v2857 = vunpack.c.h.b16 %v2676
        %v2858 = vunpack.c.l.b16 %v2677
        %v2859 = vunpack.c.h.b16 %v2677
        %v2860 = vunpack.c.l.b16 %v2678
        %v2861 = vunpack.c.h.b16 %v2678
        %v2862 = vunpack.c.l.b16 %v2679
        %v2863 = vunpack.c.h.b16 %v2679
        %v2864 = vunpack.c.l.b16 %v2680
        %v2865 = vunpack.c.h.b16 %v2680
        %v2866 = vunpack.c.l.b16 %v2681
        %v2867 = vunpack.c.h.b16 %v2681
        %v2868 = vunpack.c.l.b16 %v2682
        %v2869 = vunpack.c.h.b16 %v2682
        %v2870 = vunpack.c.l.b16 %v2683
        %v2871 = vunpack.c.h.b16 %v2683
        %v2872 = vunpack.c.l.b16 %v2684
        %v2873 = vunpack.c.h.b16 %v2684
        %v2874 = vunpack.c.l.b16 %v2685
        %v2875 = vunpack.c.h.b16 %v2685
        %v2876 = vunpack.c.l.b16 %v2686
        %v2877 = vunpack.c.h.b16 %v2686
        %v2878 = vunpack.c.l.b16 %v2687
        %v2879 = vunpack.c.h.b16 %v2687
        %v2880 = vunpack.c.l.b16 %v2688
        %v2881 = vunpack.c.h.b16 %v2688
        %v2882 = vunpack.c.l.b16 %v2689
        %v2883 = vunpack.c.h.b16 %v2689
        %v2884 = vunpack.c.l.b16 %v2690
        %v2885 = vunpack.c.h.b16 %v2690
        %v2886 = vunpack.c.l.b16 %v2691
        %v2887 = vunpack.c.h.b16 %v2691
        %v2888 = vunpack.c.l.b16 %v2692
        %v2889 = vunpack.c.h.b16 %v2692
        %v2890 = vunpack.c.l.b16 %v2693
        %v2891 = vunpack.c.h.b16 %v2693
        %v2892 = vunpack.c.l.b16 %v2694
        %v2893 = vunpack.c.h.b16 %v2694
        %v2894 = vunpack.c.l.b16 %v2695
        %v2895 = vunpack.c.h.b16 %v2695
        %v2896 = vunpack.c.l.b16 %v2696
        %v2897 = vunpack.c.h.b16 %v2696
        %v2898 = vunpack.c.l.b16 %v2697
        %v2899 = vunpack.c.h.b16 %v2697
        %v2900 = vunpack.c.l.b16 %v2698
        %v2901 = vunpack.c.h.b16 %v2698
        %v2902 = vunpack.c.l.b16 %v2699
        %v2903 = vunpack.c.h.b16 %v2699
        %v2904 = vunpack.c.l.b16 %v2700
        %v2905 = vunpack.c.h.b16 %v2700
        %v2906 = vpack.c.b16 %v2780, %v2778
        %v2907 = vpack.c.b16 %v2781, %v2779
        %v2908 = vpack.c.b16 %v2784, %v2782
        %v2909 = vpack.c.b16 %v2785, %v2783
        %v2910 = vpack.c.b16 %v2788, %v2786
        %v2911 = vpack.c.b16 %v2789, %v2787
        %v2912 = vpack.c.b16 %v2792, %v2790
        %v2913 = vpack.c.b16 %v2793, %v2791
        %v2914 = vpack.c.b16 %v2796, %v2794
        %v2915 = vpack.c.b16 %v2797, %v2795
        %v2916 = vpack.c.b16 %v2800, %v2798
        %v2917 = vpack.c.b16 %v2801, %v2799
        %v2918 = vpack.c.b16 %v2804, %v2802
        %v2919 = vpack.c.b16 %v2805, %v2803
        %v2920 = vpack.c.b16 %v2808, %v2806
        %v2921 = vpack.c.b16 %v2809, %v2807
        %v2922 = vpack.c.b16 %v2812, %v2810
        %v2923 = vpack.c.b16 %v2813, %v2811
        %v2924 = vpack.c.b16 %v2816, %v2814
        %v2925 = vpack.c.b16 %v2817, %v2815
        %v2926 = vpack.c.b16 %v2820, %v2818
        %v2927 = vpack.c.b16 %v2821, %v2819
        %v2928 = vpack.c.b16 %v2824, %v2822
        %v2929 = vpack.c.b16 %v2825, %v2823
        %v2930 = vpack.c.b16 %v2828, %v2826
        %v2931 = vpack.c.b16 %v2829, %v2827
        %v2932 = vpack.c.b16 %v2832, %v2830
        %v2933 = vpack.c.b16 %v2833, %v2831
        %v2934 = vpack.c.b16 %v2836, %v2834
        %v2935 = vpack.c.b16 %v2837, %v2835
        %v2936 = vpack.c.b16 %v2840, %v2838
        %v2937 = vpack.c.b16 %v2841, %v2839
        %v2938 = vpack.c.b16 %v2844, %v2842
        %v2939 = vpack.c.b16 %v2845, %v2843
        %v2940 = vpack.c.b16 %v2848, %v2846
        %v2941 = vpack.c.b16 %v2849, %v2847
        %v2942 = vpack.c.b16 %v2852, %v2850
        %v2943 = vpack.c.b16 %v2853, %v2851
        %v2944 = vpack.c.b16 %v2856, %v2854
        %v2945 = vpack.c.b16 %v2857, %v2855
        %v2946 = vpack.c.b16 %v2860, %v2858
        %v2947 = vpack.c.b16 %v2861, %v2859
        %v2948 = vpack.c.b16 %v2864, %v2862
        %v2949 = vpack.c.b16 %v2865, %v2863
        %v2950 = vpack.c.b16 %v2868, %v2866
        %v2951 = vpack.c.b16 %v2869, %v2867
        %v2952 = vpack.c.b16 %v2872, %v2870
        %v2953 = vpack.c.b16 %v2873, %v2871
        %v2954 = vpack.c.b16 %v2876, %v2874
        %v2955 = vpack.c.b16 %v2877, %v2875
        %v2956 = vpack.c.b16 %v2880, %v2878
        %v2957 = vpack.c.b16 %v2881, %v2879
        %v2958 = vpack.c.b16 %v2884, %v2882
        %v2959 = vpack.c.b16 %v2885, %v2883
        %v2960 = vpack.c.b16 %v2888, %v2886
        %v2961 = vpack.c.b16 %v2889, %v2887
        %v2962 = vpack.c.b16 %v2892, %v2890
        %v2963 = vpack.c.b16 %v2893, %v2891
        %v2964 = vpack.c.b16 %v2896, %v2894
        %v2965 = vpack.c.b16 %v2897, %v2895
        %v2966 = vpack.c.b16 %v2900, %v2898
        %v2967 = vpack.c.b16 %v2901, %v2899
        %v2968 = vpack.c.b16 %v2904, %v2902
        %v2969 = vpack.c.b16 %v2905, %v2903
        %3034 = vmatprep.subr.bf16.mxu0 %v2907
        %3035 = vmatpush1.bf16.msra.mxu0 %v2906
        %3036 = vmatprep.subr.bf16.mxu0 %v2909
        %3037 = vmatpush1.bf16.msra.mxu0 %v2908
        %3038 = vmatprep.subr.bf16.mxu0 %v2911
        %3039 = vmatpush1.bf16.msra.mxu0 %v2910
        %3040 = vmatprep.subr.bf16.mxu0 %v2913
        %3041 = vmatpush1.bf16.msra.mxu0 %v2912
        %3042 = vmatprep.subr.bf16.mxu0 %v2915
        %3043 = vmatpush1.bf16.msra.mxu0 %v2914
        %3044 = vmatprep.subr.bf16.mxu0 %v2917
        %3045 = vmatpush1.bf16.msra.mxu0 %v2916
        %3046 = vmatprep.subr.bf16.mxu0 %v2919
        %3047 = vmatpush1.bf16.msra.mxu0 %v2918
        %3048 = vmatprep.subr.bf16.mxu0 %v2921
        %3049 = vmatpush1.bf16.msra.mxu0 %v2920
        %3050 = vmatprep.subr.bf16.mxu0 %v2923
        %3051 = vmatpush1.bf16.msra.mxu0 %v2922
        %3052 = vmatprep.subr.bf16.mxu0 %v2925
        %3053 = vmatpush1.bf16.msra.mxu0 %v2924
        %3054 = vmatprep.subr.bf16.mxu0 %v2927
        %3055 = vmatpush1.bf16.msra.mxu0 %v2926
        %3056 = vmatprep.subr.bf16.mxu0 %v2929
        %3057 = vmatpush1.bf16.msra.mxu0 %v2928
        %3058 = vmatprep.subr.bf16.mxu0 %v2931
        %3059 = vmatpush1.bf16.msra.mxu0 %v2930
        %3060 = vmatprep.subr.bf16.mxu0 %v2933
        %3061 = vmatpush1.bf16.msra.mxu0 %v2932
        %3062 = vmatprep.subr.bf16.mxu0 %v2935
        %3063 = vmatpush1.bf16.msra.mxu0 %v2934
        %3064 = vmatprep.subr.bf16.mxu0 %v2937
        %3065 = vmatpush1.bf16.msra.mxu0 %v2936
        %3066 = vmatprep.mubr.bf16.mxu0 %v2632
        %3067 = vmatmul.mubr.bf16.gmra.mrb[0].mxu0 %v2631
        %v3068 = vpop.f32.mrb[0].mxu0
        %v3069 = vadd.f32 %v2707, %v3068
        %v3070 = vpop.f32.mrb[0].mxu0
        %v3071 = vadd.f32 %v2711, %v3070
        %v3072 = vpop.f32.mrb[0].mxu0
        %v3073 = vadd.f32 %v2707, %v3072
        %v3074 = vpop.f32.mrb[0].mxu0
        %v3075 = vadd.f32 %v2711, %v3074
        %3076 = vdwg.mxu0
        %3077 = vmatprep.subr.bf16.mxu0 %v2939
        %3078 = vmatpush1.bf16.msra.mxu0 %v2938
        %3079 = vmatprep.subr.bf16.mxu0 %v2941
        %3080 = vmatpush1.bf16.msra.mxu0 %v2940
        %3081 = vmatprep.subr.bf16.mxu0 %v2943
        %3082 = vmatpush1.bf16.msra.mxu0 %v2942
        %3083 = vmatprep.subr.bf16.mxu0 %v2945
        %3084 = vmatpush1.bf16.msra.mxu0 %v2944
        %3085 = vmatprep.subr.bf16.mxu0 %v2947
        %3086 = vmatpush1.bf16.msra.mxu0 %v2946
        %3087 = vmatprep.subr.bf16.mxu0 %v2949
        %3088 = vmatpush1.bf16.msra.mxu0 %v2948
        %3089 = vmatprep.subr.bf16.mxu0 %v2951
        %3090 = vmatpush1.bf16.msra.mxu0 %v2950
        %3091 = vmatprep.subr.bf16.mxu0 %v2953
        %3092 = vmatpush1.bf16.msra.mxu0 %v2952
        %3093 = vmatprep.subr.bf16.mxu0 %v2955
        %3094 = vmatpush1.bf16.msra.mxu0 %v2954
        %3095 = vmatprep.subr.bf16.mxu0 %v2957
        %3096 = vmatpush1.bf16.msra.mxu0 %v2956
        %3097 = vmatprep.subr.bf16.mxu0 %v2959
        %3098 = vmatpush1.bf16.msra.mxu0 %v2958
        %3099 = vmatprep.subr.bf16.mxu0 %v2961
        %3100 = vmatpush1.bf16.msra.mxu0 %v2960
        %3101 = vmatprep.subr.bf16.mxu0 %v2963
        %3102 = vmatpush1.bf16.msra.mxu0 %v2962
        %3103 = vmatprep.subr.bf16.mxu0 %v2965
        %3104 = vmatpush1.bf16.msra.mxu0 %v2964
        %3105 = vmatprep.subr.bf16.mxu0 %v2967
        %3106 = vmatpush1.bf16.msra.mxu0 %v2966
        %3107 = vmatprep.subr.bf16.mxu0 %v2969
        %3108 = vmatpush1.bf16.msra.mxu0 %v2968
        %3109 = vmatprep.mubr.bf16.mxu0 %v2634
        %3110 = vmatmul.mubr.bf16.gmra.mrb[0].mxu0 %v2633
        %v3111 = vpop.f32.mrb[0].mxu0
        %v3112 = vadd.f32 %v3069, %v3111
        %v3113 = vpop.f32.mrb[0].mxu0
        %v3114 = vadd.f32 %v3071, %v3113
        %v3115 = vpop.f32.mrb[0].mxu0
        %v3116 = vadd.f32 %v3073, %v3115
        %v3117 = vpop.f32.mrb[0].mxu0
        %v3118 = vadd.f32 %v3075, %v3117
        %3119 = vdwg.mxu0
        %v3120 = vadd.f32 %v2056, %v3112
        %v3121 = vadd.f32 %v2057, %v3114
        %v3122 = vadd.f32 %v2058, %v3116
        %v3123 = vadd.f32 %v2059, %v3118
        %s3124 = scalar_lea.vmem %s13, %s1971
        %v3125 = vld [vmem:[%s3124] sm:$0x3]
        %s3126 = scalar_lea.vmem %s14, %s1971
        %v3127 = vld [vmem:[%s3126] sm:$0x3]
        %v3128 = vadd.f32 %v3120, %v3121
        %3129 = vadd.xlane.f32.xlu0 %v3128
        %v3130 = vpop.xlane.xlu0 %3129
        %v3131 = vadd.f32 %v3122, %v3123
        %3132 = vadd.xlane.f32.xlu0 %v3131
        %v3133 = vpop.xlane.xlu0 %3132
        %v3134 = vmul.f32 %v3130, %v2003
        %v3135 = vmul.f32 %v3133, %v2003
        %v3136 = vsub.f32 %v3120, %v3134
        %v3137 = vsub.f32 %v3121, %v3134
        %v3138 = vsub.f32 %v3122, %v3135
        %v3139 = vsub.f32 %v3123, %v3135
        %v3140 = vmul.f32 %v3136, %v3136
        %v3141 = vmul.f32 %v3137, %v3137
        %v3142 = vmul.f32 %v3138, %v3138
        %v3143 = vmul.f32 %v3139, %v3139
        %v3144 = vadd.f32 %v3140, %v3141
        %3145 = vadd.xlane.f32.xlu0 %v3144
        %v3146 = vpop.xlane.xlu0 %3145
        %v3147 = vadd.f32 %v3142, %v3143
        %3148 = vadd.xlane.f32.xlu0 %v3147
        %v3149 = vpop.xlane.xlu0 %3148
        %v3150 = vmul.f32 %v3146, %v2003
        %v3151 = vmul.f32 %v3149, %v2003
        %v3152 = vadd.f32 %v3150, 1e-05
        %v3153 = vadd.f32 %v3151, 1e-05
        %v3154 = vrsqrt.pop %v3152
        %v3155 = vrsqrt.pop %v3153
        %v3156 = vmul.f32 %v3136, %v3154
        %v3157 = vmul.f32 %v3137, %v3154
        %v3158 = vmul.f32 %v3138, %v3155
        %v3159 = vmul.f32 %v3139, %v3155
        %v3161 = vlaneseq
        %v3162 = vshrl.u32 %v3161, 7
        %v3163 = vsub.s32 0, %v3162
        %v3164 = vrot.slane %v3125, %v3163
        %v3165 = vlaneseq
        %v3166 = vshrl.u32 %v3165, 7
        %v3167 = vsub.s32 1, %v3166
        %v3168 = vrot.slane %v3125, %v3167
        %v3171 = vmul.f32 %v3156, %v3164
        %v3172 = vmul.f32 %v3157, %v3168
        %v3173 = vmul.f32 %v3158, %v3164
        %v3174 = vmul.f32 %v3159, %v3168
        %v3176 = vlaneseq
        %v3177 = vshrl.u32 %v3176, 7
        %v3178 = vsub.s32 0, %v3177
        %v3179 = vrot.slane %v3127, %v3178
        %v3180 = vlaneseq
        %v3181 = vshrl.u32 %v3180, 7
        %v3182 = vsub.s32 1, %v3181
        %v3183 = vrot.slane %v3127, %v3182
        %v3186 = vadd.f32 %v3171, %v3179
        %v3187 = vadd.f32 %v3172, %v3183
        %v3188 = vadd.f32 %v3173, %v3179
        %v3189 = vadd.f32 %v3174, %v3183
      $region93: #{_lambda_.1} parent=87 // loop_footer
        %s712 = sadd.s32 1, %s708
      $region94: #{_lambda_.1} parent=87 // loop_footer_branch
        %707 = sbr.rel target = $region90
      $region95: #{_lambda_.1} parent=87 // loop_exit
        _
      %v3190 = vpack.c.bf16 %v715, %v713
      %v3191 = vpack.c.bf16 %v716, %v714
      %v3192 = vld [vmem:[%s15] sm:$0xf]
      %v3193 = vld [vmem:[%s15 + $0x4] sm:$0xf]
      %v3194 = vld [vmem:[%s15 + $0x8] sm:$0xf]
      %v3195 = vld [vmem:[%s15 + $0xc] sm:$0xf]
      %v3196 = vld [vmem:[%s15 + $0x10] sm:$0xf]
      %v3197 = vld [vmem:[%s15 + $0x14] sm:$0xf]
      %v3198 = vld [vmem:[%s15 + $0x18] sm:$0xf]
      %v3199 = vld [vmem:[%s15 + $0x1c] sm:$0xf]
      %v3200 = vld [vmem:[%s15 + $0x20] sm:$0xf]
      %v3201 = vld [vmem:[%s15 + $0x24] sm:$0xf]
      %v3202 = vld [vmem:[%s15 + $0x28] sm:$0xf]
      %v3203 = vld [vmem:[%s15 + $0x2c] sm:$0xf]
      %v3204 = vld [vmem:[%s15 + $0x30] sm:$0xf]
      %v3205 = vld [vmem:[%s15 + $0x34] sm:$0xf]
      %v3206 = vld [vmem:[%s15 + $0x38] sm:$0xf]
      %v3207 = vld [vmem:[%s15 + $0x3c] sm:$0xf]
      %v3208 = vld [vmem:[%s15 + $0x40] sm:$0xf]
      %v3209 = vld [vmem:[%s15 + $0x44] sm:$0xf]
      %v3210 = vld [vmem:[%s15 + $0x48] sm:$0xf]
      %v3211 = vld [vmem:[%s15 + $0x4c] sm:$0xf]
      %v3212 = vld [vmem:[%s15 + $0x50] sm:$0xf]
      %v3213 = vld [vmem:[%s15 + $0x54] sm:$0xf]
      %v3214 = vld [vmem:[%s15 + $0x58] sm:$0xf]
      %v3215 = vld [vmem:[%s15 + $0x5c] sm:$0xf]
      %v3216 = vld [vmem:[%s15 + $0x60] sm:$0xf]
      %v3217 = vld [vmem:[%s15 + $0x64] sm:$0xf]
      %v3218 = vld [vmem:[%s15 + $0x68] sm:$0xf]
      %v3219 = vld [vmem:[%s15 + $0x6c] sm:$0xf]
      %v3220 = vld [vmem:[%s15 + $0x70] sm:$0xf]
      %v3221 = vld [vmem:[%s15 + $0x74] sm:$0xf]
      %v3222 = vld [vmem:[%s15 + $0x78] sm:$0xf]
      %v3223 = vld [vmem:[%s15 + $0x7c] sm:$0xf]
      %v3224 = vld [vmem:[%s16] sm:$0x1]
      %v3226 = vlaneseq
      %v3227 = vshrl.u32 %v3226, 7
      %v3228 = vsub.s32 0, %v3227
      %v3229 = vrot.slane %v3224, %v3228
      %v3263 = vunpack.c.l.b16 %v3192
      %v3264 = vunpack.c.l.b16 %v3193
      %v3265 = vunpack.c.l.b16 %v3194
      %v3266 = vunpack.c.l.b16 %v3195
      %v3267 = vunpack.c.l.b16 %v3196
      %v3268 = vunpack.c.l.b16 %v3197
      %v3269 = vunpack.c.l.b16 %v3198
      %v3270 = vunpack.c.l.b16 %v3199
      %v3271 = vunpack.c.l.b16 %v3200
      %v3272 = vunpack.c.l.b16 %v3201
      %v3273 = vunpack.c.l.b16 %v3202
      %v3274 = vunpack.c.l.b16 %v3203
      %v3275 = vunpack.c.l.b16 %v3204
      %v3276 = vunpack.c.l.b16 %v3205
      %v3277 = vunpack.c.l.b16 %v3206
      %v3278 = vunpack.c.l.b16 %v3207
      %v3279 = vunpack.c.l.b16 %v3208
      %v3280 = vunpack.c.l.b16 %v3209
      %v3281 = vunpack.c.l.b16 %v3210
      %v3282 = vunpack.c.l.b16 %v3211
      %v3283 = vunpack.c.l.b16 %v3212
      %v3284 = vunpack.c.l.b16 %v3213
      %v3285 = vunpack.c.l.b16 %v3214
      %v3286 = vunpack.c.l.b16 %v3215
      %v3287 = vunpack.c.l.b16 %v3216
      %v3288 = vunpack.c.l.b16 %v3217
      %v3289 = vunpack.c.l.b16 %v3218
      %v3290 = vunpack.c.l.b16 %v3219
      %v3291 = vunpack.c.l.b16 %v3220
      %v3292 = vunpack.c.l.b16 %v3221
      %v3293 = vunpack.c.l.b16 %v3222
      %v3294 = vunpack.c.l.b16 %v3223
      %v3295 = vpack.c.b16 %v3264, %v3263
      %v3296 = vpack.c.b16 %v3266, %v3265
      %v3297 = vpack.c.b16 %v3268, %v3267
      %v3298 = vpack.c.b16 %v3270, %v3269
      %v3299 = vpack.c.b16 %v3272, %v3271
      %v3300 = vpack.c.b16 %v3274, %v3273
      %v3301 = vpack.c.b16 %v3276, %v3275
      %v3302 = vpack.c.b16 %v3278, %v3277
      %v3303 = vpack.c.b16 %v3280, %v3279
      %v3304 = vpack.c.b16 %v3282, %v3281
      %v3305 = vpack.c.b16 %v3284, %v3283
      %v3306 = vpack.c.b16 %v3286, %v3285
      %v3307 = vpack.c.b16 %v3288, %v3287
      %v3308 = vpack.c.b16 %v3290, %v3289
      %v3309 = vpack.c.b16 %v3292, %v3291
      %v3310 = vpack.c.b16 %v3294, %v3293
      %3327 = vmatprep.subr.bf16.mxu0 0
      %3328 = vmatpush1.bf16.msra.mxu0 %v3295
      %3329 = vmatprep.subr.bf16.mxu0 0
      %3330 = vmatpush1.bf16.msra.mxu0 %v3296
      %3331 = vmatprep.subr.bf16.mxu0 0
      %3332 = vmatpush1.bf16.msra.mxu0 %v3297
      %3333 = vmatprep.subr.bf16.mxu0 0
      %3334 = vmatpush1.bf16.msra.mxu0 %v3298
      %3335 = vmatprep.subr.bf16.mxu0 0
      %3336 = vmatpush1.bf16.msra.mxu0 %v3299
      %3337 = vmatprep.subr.bf16.mxu0 0
      %3338 = vmatpush1.bf16.msra.mxu0 %v3300
      %3339 = vmatprep.subr.bf16.mxu0 0
      %3340 = vmatpush1.bf16.msra.mxu0 %v3301
      %3341 = vmatprep.subr.bf16.mxu0 0
      %3342 = vmatpush1.bf16.msra.mxu0 %v3302
      %3343 = vmatprep.subr.bf16.mxu0 0
      %3344 = vmatpush1.bf16.msra.mxu0 %v3303
      %3345 = vmatprep.subr.bf16.mxu0 0
      %3346 = vmatpush1.bf16.msra.mxu0 %v3304
      %3347 = vmatprep.subr.bf16.mxu0 0
      %3348 = vmatpush1.bf16.msra.mxu0 %v3305
      %3349 = vmatprep.subr.bf16.mxu0 0
      %3350 = vmatpush1.bf16.msra.mxu0 %v3306
      %3351 = vmatprep.subr.bf16.mxu0 0
      %3352 = vmatpush1.bf16.msra.mxu0 %v3307
      %3353 = vmatprep.subr.bf16.mxu0 0
      %3354 = vmatpush1.bf16.msra.mxu0 %v3308
      %3355 = vmatprep.subr.bf16.mxu0 0
      %3356 = vmatpush1.bf16.msra.mxu0 %v3309
      %3357 = vmatprep.subr.bf16.mxu0 0
      %3358 = vmatpush1.bf16.msra.mxu0 %v3310
      %3359 = vmatprep.mubr.bf16.mxu0 %v3191
      %3360 = vmatmul.mubr.bf16.gmra.mrb[0].mxu0 %v3190
      %v3361 = vpop.f32.mrb[0].mxu0
      %v3362 = vadd.f32 %v3229, %v3361
      %v3363 = vpop.f32.mrb[0].mxu0
      %v3364 = vpop.f32.mrb[0].mxu0
      %v3365 = vadd.f32 %v3229, %v3364
      %v3366 = vpop.f32.mrb[0].mxu0
      %3367 = vdwg.mxu0
      %3368 = vst [vmem:[%s550] sm:$0xff] %v3362
      %3369 = vst [vmem:[%s550 + $0x8] sm:$0xff] %v3365
      %s3370 = smul.u32 2, %s28
      %p3371 = scmp.lt.s32.totalorder %s3370, 3
      %s3372 = scalar_select %p3371, %s3370, 3
      %s3373 = smul.addr %s3372, 8
      %s3374 = scalar_lea.vmem %s17, %s3373
      // Predicated region
      $region96: #{_lambda_.1} parent=87 // pred_check
        %p3375 = pneg %p408
      $region97: #{_lambda_.1} parent=87 // pred_check_branch
        %3377 = sbr.rel (%p3375) target = $region99
      $region98: #{_lambda_.1} parent=87 // pred_region
        %s3378 = smul.u32 2, %s28
      $region99: #{_lambda_.1} parent=87 // pred_fallthru
        _
    $region88: #{_lambda_.1} parent=5 // pred_fallthru
      _
    %p3379 = scmp.le.s32.totalorder 2, %s23
    // Predicated region
    $region100: #{_lambda_.1} parent=5 // pred_check
      %p3380 = pneg %p3379
    $region101: #{_lambda_.1} parent=5 // pred_check_branch
      %3382 = sbr.rel (%p3380) target = $region103
    $region102: #{_lambda_.1} parent=5 // pred_region
      %s3383 = ssub.s32 %s23, 2
      // Predicated region
      $region104: #{_lambda_.1} parent=102 // pred_check
        %p3384 = pneg %p414
      $region105: #{_lambda_.1} parent=102 // pred_check_branch
        %3386 = sbr.rel (%p3384) target = $region107
      $region106: #{_lambda_.1} parent=102 // pred_region
        %s3387 = smul.u32 2, %s29
        %p3388 = scmp.lt.s32.totalorder %s3387, 3
        %s3389 = scalar_select %p3388, %s3387, 3
        %s3390 = smul.addr %s3389, 8
        %s3391 = scalar_lea.vmem %s17, %s3390
      $region107: #{_lambda_.1} parent=102 // pred_fallthru
        _
    $region103: #{_lambda_.1} parent=5 // pred_fallthru
      _
  $region6: #{_lambda_.1} parent=0 // loop_footer
    %s27 = sadd.s32 1, %s23
  $region7: #{_lambda_.1} parent=0 // loop_footer_branch
    %22 = sbr.rel target = $region3
  $region8: #{_lambda_.1} parent=0 // loop_exit
    _

</llo_original>
